<compile_context>
chip_gen: v6e
topology: v6e:2x2x1
jax: 0.10.0
libtpu: 0.0.40
codegen_flags: <defaults>
</compile_context>

<pallas_src>
import math
import jax
import jax.numpy as jnp
from jax.experimental import pallas as pl
from jax.experimental.pallas import tpu as pltpu


def _make_encoder_kernel(n_layers, T, Bb, H, E):
    """Fused multi-layer LSTM encoder kernel (one batch block of Bb rows).

    Refs (in order):
      len_ref : (Bb, 1)            int32   valid length per batch row
      x_ref   : (T, Bb, E)         f32     embeddings (time-major)
      per layer l: wih_T (in_dim, 4H) [proj dtype], whh_T (H, 4H) f32,
                   bias (1, 4H) f32 (= b_ih + b_hh)
      out_ref : (T, Bb, H)         f32     per-step output of the LAST layer
      hn_ref  : (n_layers, Bb, H)  f32     final hidden state per layer
      cn_ref  : (n_layers, Bb, H)  f32     final cell state per layer
      gx_scr  : (T, Bb, 4H)        f32     scratch for the hoisted input projection
    """
    G = 4 * H

    def kernel(*refs):
        len_ref = refs[0]
        x_ref = refs[1]
        w_refs = refs[2:2 + 3 * n_layers]
        out_ref, hn_ref, cn_ref = refs[2 + 3 * n_layers:5 + 3 * n_layers]
        gx_scr = refs[5 + 3 * n_layers]

        # ---- hoisted out of both loops: validity mask built ONCE -------------
        lens = len_ref[...]                                        # (Bb, 1) int32
        t_iota = jax.lax.broadcasted_iota(jnp.int32, (T, Bb, 1), 0)
        valid = t_iota < lens[None, :, :]                          # (T, Bb, 1) bool

        x_flat = x_ref[...].reshape(T * Bb, E)                     # (T*Bb, E)

        for l in range(n_layers):
            wih_ref, whh_ref, b_ref = w_refs[3 * l:3 * l + 3]

            # ---- hoisted input projection: ONE big MXU matmul over all timesteps.
            # (operands may be bf16 on v6e/v7x; accumulation stays f32)
            gx_scr[...] = (jnp.dot(x_flat.astype(wih_ref.dtype), wih_ref[...],
                                   preferred_element_type=jnp.float32)
                           + b_ref[...]).reshape(T, Bb, G)

            whh = whh_ref[...]                                     # (H, 4H) f32

            # ---- true sequential part: only h @ W_hh per step (unrolled; T small).
            h = jnp.zeros((Bb, H), jnp.float32)
            c = jnp.zeros((Bb, H), jnp.float32)
            hs = []
            for t in range(T):
                gates = gx_scr[t] + jnp.dot(h, whh,
                                            preferred_element_type=jnp.float32)
                # full-tile transcendentals (EUP slot, otherwise idle), then
                # lane-slice the activated values -> no per-gate sigmoid/tanh calls.
                sg = jax.nn.sigmoid(gates)                         # (Bb, 4H)
                tg = jnp.tanh(gates)                               # (Bb, 4H)
                i_g = sg[:, 0 * H:1 * H]                           # PyTorch order i,f,g,o
                f_g = sg[:, 1 * H:2 * H]
                g_g = tg[:, 2 * H:3 * H]
                o_g = sg[:, 3 * H:4 * H]

                c_new = f_g * c + i_g * g_g
                h_new = o_g * jnp.tanh(c_new)

                v = valid[t]                                       # (Bb, 1) bool
                h = jnp.where(v, h_new, h)                         # freeze past length
                c = jnp.where(v, c_new, c)
                hs.append(h_new)                                   # unmasked; masked below

            # output zeroing in ONE vectorized pass, off the serial chain;
            # this masked activation is what the next layer consumes.
            y = jnp.where(valid, jnp.stack(hs, axis=0), 0.0)       # (T, Bb, H)

            hn_ref[l] = h
            cn_ref[l] = c
            if l + 1 < n_layers:
                x_flat = y.reshape(T * Bb, H)                      # stays on-chip
            else:
                out_ref[...] = y                                   # single slab store

    return kernel


def init_lstm_params(key, emb_dim, hid_dim, n_layers):
    """Deterministic PyTorch-style init: U(-1/sqrt(hid), 1/sqrt(hid))."""
    k = 1.0 / math.sqrt(hid_dim)
    params = []
    for layer in range(n_layers):
        in_dim = emb_dim if layer == 0 else hid_dim
        key, k1, k2, k3, k4 = jax.random.split(key, 5)
        w_ih = jax.random.uniform(k1, (4 * hid_dim, in_dim), jnp.float32, -k, k)
        w_hh = jax.random.uniform(k2, (4 * hid_dim, hid_dim), jnp.float32, -k, k)
        b_ih = jax.random.uniform(k3, (4 * hid_dim,), jnp.float32, -k, k)
        b_hh = jax.random.uniform(k4, (4 * hid_dim,), jnp.float32, -k, k)
        params.append({
            "wih_T": jnp.transpose(w_ih),                      # (in_dim, 4H)
            "whh_T": jnp.transpose(w_hh),                      # (H, 4H)
            "bias": (b_ih + b_hh).reshape(1, 4 * hid_dim),     # (1, 4H)
        })
    return params


def rnn_encoder_forward(src, src_len, params, *, block_b=None,
                        proj_dtype=jnp.float32):
    """Equivalent of RNNEncoder.forward (model_type='lstm', eval mode).

    src     : (B, T, E) float32  (batch_first, like PyTorch)
    src_len : (B,)      int32    valid lengths (assumed 1 <= len <= T, like
                                 pack_padded_sequence; len==0 rows yield zeros)
    proj_dtype : dtype for the hoisted input-projection matmul operands
                 (jnp.bfloat16 recommended on v6e/v7x; recurrence stays f32).
    returns : output (B, T, H) zero-padded past each length,
              (h_n, c_n) each (n_layers, B, H)
    """
    B, T, E = src.shape
    H = params[0]["whh_T"].shape[0]
    n_layers = len(params)

    # Pad batch to a multiple of 8 (f32 sublane count): aligned tiles + occupancy.
    B_pad = max(8, ((B + 7) // 8) * 8)
    if block_b is None:
        block_b = B_pad            # one batch block at small B; shrink to shard on v7x
    assert B_pad % block_b == 0 and block_b % 8 == 0

    x = jnp.transpose(src.astype(jnp.float32), (1, 0, 2))          # (T, B, E)
    lens = src_len.astype(jnp.int32)
    if B_pad != B:
        x = jnp.pad(x, ((0, 0), (0, B_pad - B), (0, 0)))
        lens = jnp.pad(lens, (0, B_pad - B))                       # padded rows: len=0
    lens = lens.reshape(B_pad, 1)

    weight_args, weight_specs = [], []
    for p in params:
        wih = p["wih_T"].astype(proj_dtype)
        weight_args += [wih, p["whh_T"], p["bias"]]
        weight_specs += [
            pl.BlockSpec(wih.shape, lambda i: (0, 0)),
            pl.BlockSpec(p["whh_T"].shape, lambda i: (0, 0)),
            pl.BlockSpec(p["bias"].shape, lambda i: (0, 0)),
        ]

    kernel = _make_encoder_kernel(n_layers, T, block_b, H, E)
    grid = (B_pad // block_b,)                                     # batch-parallel axis

    out, h_n, c_n = pl.pallas_call(
        kernel,
        out_shape=(jax.ShapeDtypeStruct((T, B_pad, H), jnp.float32),
                   jax.ShapeDtypeStruct((n_layers, B_pad, H), jnp.float32),
                   jax.ShapeDtypeStruct((n_layers, B_pad, H), jnp.float32)),
        grid=grid,
        in_specs=[pl.BlockSpec((block_b, 1), lambda i: (i, 0)),        # lengths
                  pl.BlockSpec((T, block_b, E), lambda i: (0, i, 0)),  # embeddings
                  ] + weight_specs,
        out_specs=(pl.BlockSpec((T, block_b, H), lambda i: (0, i, 0)),
                   pl.BlockSpec((n_layers, block_b, H), lambda i: (0, i, 0)),
                   pl.BlockSpec((n_layers, block_b, H), lambda i: (0, i, 0))),
        scratch_shapes=[pltpu.VMEM((T, block_b, 4 * H), jnp.float32)],
        compiler_params=pltpu.CompilerParams(
            dimension_semantics=("parallel",)),                    # independent batch blocks
    )(lens, x, *weight_args)

    output = jnp.transpose(out, (1, 0, 2))[:B]                     # (B, T, H)
    h_n = h_n[:, :B, :]
    c_n = c_n[:, :B, :]
    # NOTE: pad_packed_sequence truncates time to max(src_len); we return full-T
    # (zero past each length) so this wrapper is jittable with no host sync.
    return output, (h_n, c_n)


def rnn_encoder_reference(src, src_len, params):
    """Pure-JAX f32 reference for correctness checking (same packed-LSTM semantics)."""
    B, T, E = src.shape
    H = params[0]["whh_T"].shape[0]
    x = src.astype(jnp.float32)
    hs, cs = [], []
    for p in params:
        wih_T, whh_T, bias = p["wih_T"], p["whh_T"], p["bias"]
        h = jnp.zeros((B, H), jnp.float32)
        c = jnp.zeros((B, H), jnp.float32)
        outs = []
        for t in range(T):
            gates = x[:, t, :] @ wih_T + h @ whh_T + bias
            i_g = jax.nn.sigmoid(gates[:, 0 * H:1 * H])
            f_g = jax.nn.sigmoid(gates[:, 1 * H:2 * H])
            g_g = jnp.tanh(gates[:, 2 * H:3 * H])
            o_g = jax.nn.sigmoid(gates[:, 3 * H:4 * H])
            c_new = f_g * c + i_g * g_g
            h_new = o_g * jnp.tanh(c_new)
            valid = (t < src_len).reshape(B, 1)
            h = jnp.where(valid, h_new, h)
            c = jnp.where(valid, c_new, c)
            outs.append(jnp.where(valid, h_new, jnp.zeros_like(h_new)))
        x = jnp.stack(outs, axis=1)
        hs.append(h)
        cs.append(c)
    return x, (jnp.stack(hs, axis=0), jnp.stack(cs, axis=0))


if __name__ == "__main__":
    # Small shapes consistent with the module: emb_dim=16, hid_dim=32, n_layers=2
    B, T, E, H, NL = 2, 8, 16, 32, 2

    key = jax.random.PRNGKey(0)
    key, k_src = jax.random.split(key)
    src = jax.random.normal(k_src, (B, T, E), dtype=jnp.float32)
    src_len = jnp.array([T, 5], dtype=jnp.int32)               # max length == T

    params = init_lstm_params(key, E, H, NL)

    # ---- exact-semantics (f32) path ----
    output, (h_n, c_n) = rnn_encoder_forward(src, src_len, params)
    jax.block_until_ready((output, h_n, c_n))

    assert output.shape == (B, T, H)
    assert h_n.shape == (NL, B, H) and c_n.shape == (NL, B, H)
    # padded positions of the shorter sequence must be exactly zero
    assert float(jnp.max(jnp.abs(output[1, 5:, :]))) == 0.0

    ref_out, (ref_h, ref_c) = rnn_encoder_reference(src, src_len, params)
    assert float(jnp.max(jnp.abs(output - ref_out))) < 1e-4
    assert float(jnp.max(jnp.abs(h_n - ref_h))) < 1e-4
    assert float(jnp.max(jnp.abs(c_n - ref_c))) < 1e-4

    # ---- bf16 input-projection path (recommended on v6e/v7x; recurrence stays f32) ----
    out_bf, (h_bf, c_bf) = rnn_encoder_forward(src, src_len, params,
                                               proj_dtype=jnp.bfloat16)
    jax.block_until_ready((out_bf, h_bf, c_bf))
    assert float(jnp.max(jnp.abs(out_bf - ref_out))) < 5e-2
    assert float(jnp.max(jnp.abs(out_bf[1, 5:, :]))) == 0.0

    print("KERNEL_OK")
</pallas_src>

<mosaic_0001>
module attributes {stable_mosaic.version = 11 : i64} {
  func.func @kernel(%arg0: i32, %arg1: memref<8x1xi32, #tpu.memory_space<vmem>>, %arg2: memref<8x8x16xf32, #tpu.memory_space<vmem>>, %arg3: memref<16x128xf32, #tpu.memory_space<vmem>>, %arg4: memref<32x128xf32, #tpu.memory_space<vmem>>, %arg5: memref<1x128xf32, #tpu.memory_space<vmem>>, %arg6: memref<32x128xf32, #tpu.memory_space<vmem>>, %arg7: memref<32x128xf32, #tpu.memory_space<vmem>>, %arg8: memref<1x128xf32, #tpu.memory_space<vmem>>, %arg9: memref<8x8x32xf32, #tpu.memory_space<vmem>>, %arg10: memref<2x8x32xf32, #tpu.memory_space<vmem>>, %arg11: memref<2x8x32xf32, #tpu.memory_space<vmem>>, %arg12: memref<8x8x128xf32, #tpu.memory_space<vmem>>) attributes {dimension_semantics = [#tpu.dimension_semantics<parallel>], iteration_bounds = array<i64: 1>, scalar_prefetch = 0 : i64, scratch_operands = 1 : i64, tpu.core_type = #tpu.core_type<tc>, window_params = [{transform_indices = @transform_0, window_bounds = array<i64: 8, 1>}, {transform_indices = @transform_1, window_bounds = array<i64: 8, 8, 16>}, {pipeline_mode = #tpu.pipeline_mode<synchronous>, transform_indices = @transform_2, window_bounds = array<i64: 16, 128>}, {pipeline_mode = #tpu.pipeline_mode<synchronous>, transform_indices = @transform_3, window_bounds = array<i64: 32, 128>}, {pipeline_mode = #tpu.pipeline_mode<synchronous>, transform_indices = @transform_4, window_bounds = array<i64: 1, 128>}, {pipeline_mode = #tpu.pipeline_mode<synchronous>, transform_indices = @transform_5, window_bounds = array<i64: 32, 128>}, {pipeline_mode = #tpu.pipeline_mode<synchronous>, transform_indices = @transform_6, window_bounds = array<i64: 32, 128>}, {pipeline_mode = #tpu.pipeline_mode<synchronous>, transform_indices = @transform_7, window_bounds = array<i64: 1, 128>}, {transform_indices = @transform_8, window_bounds = array<i64: 8, 8, 32>}, {transform_indices = @transform_9, window_bounds = array<i64: 2, 8, 32>}, {transform_indices = @transform_10, window_bounds = array<i64: 2, 8, 32>}]} {
    %c0 = arith.constant 0 : index
    %c0_0 = arith.constant 0 : index
    %0 = vector.load %arg1[%c0, %c0_0] : memref<8x1xi32, #tpu.memory_space<vmem>>, vector<8x1xi32>
    %1 = tpu.iota {dimensions = array<i32: 0>} : vector<8x8x1xi32>
    %2 = vector.shape_cast %0 : vector<8x1xi32> to vector<1x8x1xi32>
    %3 = vector.broadcast %2 : vector<1x8x1xi32> to vector<8x8x1xi32>
    %4 = arith.cmpi slt, %1, %3 : vector<8x8x1xi32>
    %c0_1 = arith.constant 0 : index
    %c0_2 = arith.constant 0 : index
    %c0_3 = arith.constant 0 : index
    %5 = vector.load %arg2[%c0_1, %c0_2, %c0_3] : memref<8x8x16xf32, #tpu.memory_space<vmem>>, vector<8x8x16xf32>
    %6 = vector.shape_cast %5 : vector<8x8x16xf32> to vector<64x16xf32>
    %c0_4 = arith.constant 0 : index
    %c0_5 = arith.constant 0 : index
    %7 = vector.load %arg3[%c0_4, %c0_5] : memref<16x128xf32, #tpu.memory_space<vmem>>, vector<16x128xf32>
    %cst = arith.constant dense<0.000000e+00> : vector<64x128xf32>
    %8 = tpu.matmul %6, %7, %cst {dimension_numbers = #tpu.dot_dimension_numbers<[1], [0], [0], [1], [0, 0, 1, 1], [], []>} : vector<64x16xf32>, vector<16x128xf32>, vector<64x128xf32> -> vector<64x128xf32>
    %c0_6 = arith.constant 0 : index
    %c0_7 = arith.constant 0 : index
    %9 = vector.load %arg5[%c0_6, %c0_7] : memref<1x128xf32, #tpu.memory_space<vmem>>, vector<1x128xf32>
    %10 = vector.broadcast %9 : vector<1x128xf32> to vector<64x128xf32>
    %11 = arith.addf %8, %10 : vector<64x128xf32>
    %12 = vector.shape_cast %11 : vector<64x128xf32> to vector<8x8x128xf32>
    %c0_8 = arith.constant 0 : index
    %c0_9 = arith.constant 0 : index
    %c0_10 = arith.constant 0 : index
    %13 = vector.load %arg12[%c0_8, %c0_9, %c0_10] : memref<8x8x128xf32, #tpu.memory_space<vmem>>, vector<8x8x128xf32>
    tpu.vector_store %arg12[%c0_8, %c0_9, %c0_10], %12 {strides = array<i32>} : memref<8x8x128xf32, #tpu.memory_space<vmem>>, vector<8x8x128xf32>,
    %c0_11 = arith.constant 0 : index
    %c0_12 = arith.constant 0 : index
    %14 = vector.load %arg4[%c0_11, %c0_12] : memref<32x128xf32, #tpu.memory_space<vmem>>, vector<32x128xf32>
    %cst_13 = arith.constant 0.000000e+00 : f32
    %15 = vector.broadcast %cst_13 : f32 to vector<8x32xf32>
    %cst_14 = arith.constant 0.000000e+00 : f32
    %16 = vector.broadcast %cst_14 : f32 to vector<8x32xf32>
    %c0_15 = arith.constant 0 : index
    %c0_16 = arith.constant 0 : index
    %c0_17 = arith.constant 0 : index
    %17 = vector.load %arg12[%c0_15, %c0_16, %c0_17] : memref<8x8x128xf32, #tpu.memory_space<vmem>>, vector<1x8x128xf32>
    %18 = vector.shape_cast %17 : vector<1x8x128xf32> to vector<8x128xf32>
    %cst_18 = arith.constant dense<0.000000e+00> : vector<8x128xf32>
    %19 = tpu.matmul %15, %14, %cst_18 {dimension_numbers = #tpu.dot_dimension_numbers<[1], [0], [0], [1], [0, 0, 1, 1], [], []>} : vector<8x32xf32>, vector<32x128xf32>, vector<8x128xf32> -> vector<8x128xf32>
    %20 = arith.addf %18, %19 : vector<8x128xf32>
    %21 = arith.negf %20 : vector<8x128xf32>
    %22 = math.exp %21 : vector<8x128xf32>
    %cst_19 = arith.constant 1.000000e+00 : f32
    %23 = vector.broadcast %cst_19 : f32 to vector<8x128xf32>
    %24 = arith.addf %23, %22 : vector<8x128xf32>
    %25 = arith.divf %23, %24 : vector<8x128xf32>
    %26 = math.tanh %20 : vector<8x128xf32>
    %27 = vector.extract_strided_slice %25 {offsets = [0, 0], sizes = [8, 32], strides = [1, 1]} : vector<8x128xf32> to vector<8x32xf32>
    %28 = vector.extract_strided_slice %25 {offsets = [0, 32], sizes = [8, 32], strides = [1, 1]} : vector<8x128xf32> to vector<8x32xf32>
    %29 = vector.extract_strided_slice %26 {offsets = [0, 64], sizes = [8, 32], strides = [1, 1]} : vector<8x128xf32> to vector<8x32xf32>
    %30 = vector.extract_strided_slice %25 {offsets = [0, 96], sizes = [8, 32], strides = [1, 1]} : vector<8x128xf32> to vector<8x32xf32>
    %31 = arith.mulf %28, %16 : vector<8x32xf32>
    %32 = arith.mulf %27, %29 : vector<8x32xf32>
    %33 = arith.addf %31, %32 : vector<8x32xf32>
    %34 = math.tanh %33 : vector<8x32xf32>
    %35 = arith.mulf %30, %34 : vector<8x32xf32>
    %36 = vector.extract_strided_slice %4 {offsets = [0, 0, 0], sizes = [1, 8, 1], strides = [1, 1, 1]} : vector<8x8x1xi1> to vector<1x8x1xi1>
    %37 = vector.shape_cast %36 : vector<1x8x1xi1> to vector<8x1xi1>
    %38 = vector.shape_cast %37 : vector<8x1xi1> to vector<8x1xi1>
    %39 = vector.broadcast %38 : vector<8x1xi1> to vector<8x32xi1>
    %40 = arith.select %39, %35, %15 : vector<8x32xi1>, vector<8x32xf32>
    %41 = vector.shape_cast %37 : vector<8x1xi1> to vector<8x1xi1>
    %42 = vector.broadcast %41 : vector<8x1xi1> to vector<8x32xi1>
    %43 = arith.select %42, %33, %16 : vector<8x32xi1>, vector<8x32xf32>
    %c1 = arith.constant 1 : index
    %c0_20 = arith.constant 0 : index
    %c0_21 = arith.constant 0 : index
    %44 = vector.load %arg12[%c1, %c0_20, %c0_21] : memref<8x8x128xf32, #tpu.memory_space<vmem>>, vector<1x8x128xf32>
    %45 = vector.shape_cast %44 : vector<1x8x128xf32> to vector<8x128xf32>
    %cst_22 = arith.constant dense<0.000000e+00> : vector<8x128xf32>
    %46 = tpu.matmul %40, %14, %cst_22 {dimension_numbers = #tpu.dot_dimension_numbers<[1], [0], [0], [1], [0, 0, 1, 1], [], []>} : vector<8x32xf32>, vector<32x128xf32>, vector<8x128xf32> -> vector<8x128xf32>
    %47 = arith.addf %45, %46 : vector<8x128xf32>
    %48 = arith.negf %47 : vector<8x128xf32>
    %49 = math.exp %48 : vector<8x128xf32>
    %cst_23 = arith.constant 1.000000e+00 : f32
    %50 = vector.broadcast %cst_23 : f32 to vector<8x128xf32>
    %51 = arith.addf %50, %49 : vector<8x128xf32>
    %52 = arith.divf %50, %51 : vector<8x128xf32>
    %53 = math.tanh %47 : vector<8x128xf32>
    %54 = vector.extract_strided_slice %52 {offsets = [0, 0], sizes = [8, 32], strides = [1, 1]} : vector<8x128xf32> to vector<8x32xf32>
    %55 = vector.extract_strided_slice %52 {offsets = [0, 32], sizes = [8, 32], strides = [1, 1]} : vector<8x128xf32> to vector<8x32xf32>
    %56 = vector.extract_strided_slice %53 {offsets = [0, 64], sizes = [8, 32], strides = [1, 1]} : vector<8x128xf32> to vector<8x32xf32>
    %57 = vector.extract_strided_slice %52 {offsets = [0, 96], sizes = [8, 32], strides = [1, 1]} : vector<8x128xf32> to vector<8x32xf32>
    %58 = arith.mulf %55, %43 : vector<8x32xf32>
    %59 = arith.mulf %54, %56 : vector<8x32xf32>
    %60 = arith.addf %58, %59 : vector<8x32xf32>
    %61 = math.tanh %60 : vector<8x32xf32>
    %62 = arith.mulf %57, %61 : vector<8x32xf32>
    %63 = vector.extract_strided_slice %4 {offsets = [1, 0, 0], sizes = [1, 8, 1], strides = [1, 1, 1]} : vector<8x8x1xi1> to vector<1x8x1xi1>
    %64 = vector.shape_cast %63 : vector<1x8x1xi1> to vector<8x1xi1>
    %65 = vector.shape_cast %64 : vector<8x1xi1> to vector<8x1xi1>
    %66 = vector.broadcast %65 : vector<8x1xi1> to vector<8x32xi1>
    %67 = arith.select %66, %62, %40 : vector<8x32xi1>, vector<8x32xf32>
    %68 = vector.shape_cast %64 : vector<8x1xi1> to vector<8x1xi1>
    %69 = vector.broadcast %68 : vector<8x1xi1> to vector<8x32xi1>
    %70 = arith.select %69, %60, %43 : vector<8x32xi1>, vector<8x32xf32>
    %c2 = arith.constant 2 : index
    %c0_24 = arith.constant 0 : index
    %c0_25 = arith.constant 0 : index
    %71 = vector.load %arg12[%c2, %c0_24, %c0_25] : memref<8x8x128xf32, #tpu.memory_space<vmem>>, vector<1x8x128xf32>
    %72 = vector.shape_cast %71 : vector<1x8x128xf32> to vector<8x128xf32>
    %cst_26 = arith.constant dense<0.000000e+00> : vector<8x128xf32>
    %73 = tpu.matmul %67, %14, %cst_26 {dimension_numbers = #tpu.dot_dimension_numbers<[1], [0], [0], [1], [0, 0, 1, 1], [], []>} : vector<8x32xf32>, vector<32x128xf32>, vector<8x128xf32> -> vector<8x128xf32>
    %74 = arith.addf %72, %73 : vector<8x128xf32>
    %75 = arith.negf %74 : vector<8x128xf32>
    %76 = math.exp %75 : vector<8x128xf32>
    %cst_27 = arith.constant 1.000000e+00 : f32
    %77 = vector.broadcast %cst_27 : f32 to vector<8x128xf32>
    %78 = arith.addf %77, %76 : vector<8x128xf32>
    %79 = arith.divf %77, %78 : vector<8x128xf32>
    %80 = math.tanh %74 : vector<8x128xf32>
    %81 = vector.extract_strided_slice %79 {offsets = [0, 0], sizes = [8, 32], strides = [1, 1]} : vector<8x128xf32> to vector<8x32xf32>
    %82 = vector.extract_strided_slice %79 {offsets = [0, 32], sizes = [8, 32], strides = [1, 1]} : vector<8x128xf32> to vector<8x32xf32>
    %83 = vector.extract_strided_slice %80 {offsets = [0, 64], sizes = [8, 32], strides = [1, 1]} : vector<8x128xf32> to vector<8x32xf32>
    %84 = vector.extract_strided_slice %79 {offsets = [0, 96], sizes = [8, 32], strides = [1, 1]} : vector<8x128xf32> to vector<8x32xf32>
    %85 = arith.mulf %82, %70 : vector<8x32xf32>
    %86 = arith.mulf %81, %83 : vector<8x32xf32>
    %87 = arith.addf %85, %86 : vector<8x32xf32>
    %88 = math.tanh %87 : vector<8x32xf32>
    %89 = arith.mulf %84, %88 : vector<8x32xf32>
    %90 = vector.extract_strided_slice %4 {offsets = [2, 0, 0], sizes = [1, 8, 1], strides = [1, 1, 1]} : vector<8x8x1xi1> to vector<1x8x1xi1>
    %91 = vector.shape_cast %90 : vector<1x8x1xi1> to vector<8x1xi1>
    %92 = vector.shape_cast %91 : vector<8x1xi1> to vector<8x1xi1>
    %93 = vector.broadcast %92 : vector<8x1xi1> to vector<8x32xi1>
    %94 = arith.select %93, %89, %67 : vector<8x32xi1>, vector<8x32xf32>
    %95 = vector.shape_cast %91 : vector<8x1xi1> to vector<8x1xi1>
    %96 = vector.broadcast %95 : vector<8x1xi1> to vector<8x32xi1>
    %97 = arith.select %96, %87, %70 : vector<8x32xi1>, vector<8x32xf32>
    %c3 = arith.constant 3 : index
    %c0_28 = arith.constant 0 : index
    %c0_29 = arith.constant 0 : index
    %98 = vector.load %arg12[%c3, %c0_28, %c0_29] : memref<8x8x128xf32, #tpu.memory_space<vmem>>, vector<1x8x128xf32>
    %99 = vector.shape_cast %98 : vector<1x8x128xf32> to vector<8x128xf32>
    %cst_30 = arith.constant dense<0.000000e+00> : vector<8x128xf32>
    %100 = tpu.matmul %94, %14, %cst_30 {dimension_numbers = #tpu.dot_dimension_numbers<[1], [0], [0], [1], [0, 0, 1, 1], [], []>} : vector<8x32xf32>, vector<32x128xf32>, vector<8x128xf32> -> vector<8x128xf32>
    %101 = arith.addf %99, %100 : vector<8x128xf32>
    %102 = arith.negf %101 : vector<8x128xf32>
    %103 = math.exp %102 : vector<8x128xf32>
    %cst_31 = arith.constant 1.000000e+00 : f32
    %104 = vector.broadcast %cst_31 : f32 to vector<8x128xf32>
    %105 = arith.addf %104, %103 : vector<8x128xf32>
    %106 = arith.divf %104, %105 : vector<8x128xf32>
    %107 = math.tanh %101 : vector<8x128xf32>
    %108 = vector.extract_strided_slice %106 {offsets = [0, 0], sizes = [8, 32], strides = [1, 1]} : vector<8x128xf32> to vector<8x32xf32>
    %109 = vector.extract_strided_slice %106 {offsets = [0, 32], sizes = [8, 32], strides = [1, 1]} : vector<8x128xf32> to vector<8x32xf32>
    %110 = vector.extract_strided_slice %107 {offsets = [0, 64], sizes = [8, 32], strides = [1, 1]} : vector<8x128xf32> to vector<8x32xf32>
    %111 = vector.extract_strided_slice %106 {offsets = [0, 96], sizes = [8, 32], strides = [1, 1]} : vector<8x128xf32> to vector<8x32xf32>
    %112 = arith.mulf %109, %97 : vector<8x32xf32>
    %113 = arith.mulf %108, %110 : vector<8x32xf32>
    %114 = arith.addf %112, %113 : vector<8x32xf32>
    %115 = math.tanh %114 : vector<8x32xf32>
    %116 = arith.mulf %111, %115 : vector<8x32xf32>
    %117 = vector.extract_strided_slice %4 {offsets = [3, 0, 0], sizes = [1, 8, 1], strides = [1, 1, 1]} : vector<8x8x1xi1> to vector<1x8x1xi1>
    %118 = vector.shape_cast %117 : vector<1x8x1xi1> to vector<8x1xi1>
    %119 = vector.shape_cast %118 : vector<8x1xi1> to vector<8x1xi1>
    %120 = vector.broadcast %119 : vector<8x1xi1> to vector<8x32xi1>
    %121 = arith.select %120, %116, %94 : vector<8x32xi1>, vector<8x32xf32>
    %122 = vector.shape_cast %118 : vector<8x1xi1> to vector<8x1xi1>
    %123 = vector.broadcast %122 : vector<8x1xi1> to vector<8x32xi1>
    %124 = arith.select %123, %114, %97 : vector<8x32xi1>, vector<8x32xf32>
    %c4 = arith.constant 4 : index
    %c0_32 = arith.constant 0 : index
    %c0_33 = arith.constant 0 : index
    %125 = vector.load %arg12[%c4, %c0_32, %c0_33] : memref<8x8x128xf32, #tpu.memory_space<vmem>>, vector<1x8x128xf32>
    %126 = vector.shape_cast %125 : vector<1x8x128xf32> to vector<8x128xf32>
    %cst_34 = arith.constant dense<0.000000e+00> : vector<8x128xf32>
    %127 = tpu.matmul %121, %14, %cst_34 {dimension_numbers = #tpu.dot_dimension_numbers<[1], [0], [0], [1], [0, 0, 1, 1], [], []>} : vector<8x32xf32>, vector<32x128xf32>, vector<8x128xf32> -> vector<8x128xf32>
    %128 = arith.addf %126, %127 : vector<8x128xf32>
    %129 = arith.negf %128 : vector<8x128xf32>
    %130 = math.exp %129 : vector<8x128xf32>
    %cst_35 = arith.constant 1.000000e+00 : f32
    %131 = vector.broadcast %cst_35 : f32 to vector<8x128xf32>
    %132 = arith.addf %131, %130 : vector<8x128xf32>
    %133 = arith.divf %131, %132 : vector<8x128xf32>
    %134 = math.tanh %128 : vector<8x128xf32>
    %135 = vector.extract_strided_slice %133 {offsets = [0, 0], sizes = [8, 32], strides = [1, 1]} : vector<8x128xf32> to vector<8x32xf32>
    %136 = vector.extract_strided_slice %133 {offsets = [0, 32], sizes = [8, 32], strides = [1, 1]} : vector<8x128xf32> to vector<8x32xf32>
    %137 = vector.extract_strided_slice %134 {offsets = [0, 64], sizes = [8, 32], strides = [1, 1]} : vector<8x128xf32> to vector<8x32xf32>
    %138 = vector.extract_strided_slice %133 {offsets = [0, 96], sizes = [8, 32], strides = [1, 1]} : vector<8x128xf32> to vector<8x32xf32>
    %139 = arith.mulf %136, %124 : vector<8x32xf32>
    %140 = arith.mulf %135, %137 : vector<8x32xf32>
    %141 = arith.addf %139, %140 : vector<8x32xf32>
    %142 = math.tanh %141 : vector<8x32xf32>
    %143 = arith.mulf %138, %142 : vector<8x32xf32>
    %144 = vector.extract_strided_slice %4 {offsets = [4, 0, 0], sizes = [1, 8, 1], strides = [1, 1, 1]} : vector<8x8x1xi1> to vector<1x8x1xi1>
    %145 = vector.shape_cast %144 : vector<1x8x1xi1> to vector<8x1xi1>
    %146 = vector.shape_cast %145 : vector<8x1xi1> to vector<8x1xi1>
    %147 = vector.broadcast %146 : vector<8x1xi1> to vector<8x32xi1>
    %148 = arith.select %147, %143, %121 : vector<8x32xi1>, vector<8x32xf32>
    %149 = vector.shape_cast %145 : vector<8x1xi1> to vector<8x1xi1>
    %150 = vector.broadcast %149 : vector<8x1xi1> to vector<8x32xi1>
    %151 = arith.select %150, %141, %124 : vector<8x32xi1>, vector<8x32xf32>
    %c5 = arith.constant 5 : index
    %c0_36 = arith.constant 0 : index
    %c0_37 = arith.constant 0 : index
    %152 = vector.load %arg12[%c5, %c0_36, %c0_37] : memref<8x8x128xf32, #tpu.memory_space<vmem>>, vector<1x8x128xf32>
    %153 = vector.shape_cast %152 : vector<1x8x128xf32> to vector<8x128xf32>
    %cst_38 = arith.constant dense<0.000000e+00> : vector<8x128xf32>
    %154 = tpu.matmul %148, %14, %cst_38 {dimension_numbers = #tpu.dot_dimension_numbers<[1], [0], [0], [1], [0, 0, 1, 1], [], []>} : vector<8x32xf32>, vector<32x128xf32>, vector<8x128xf32> -> vector<8x128xf32>
    %155 = arith.addf %153, %154 : vector<8x128xf32>
    %156 = arith.negf %155 : vector<8x128xf32>
    %157 = math.exp %156 : vector<8x128xf32>
    %cst_39 = arith.constant 1.000000e+00 : f32
    %158 = vector.broadcast %cst_39 : f32 to vector<8x128xf32>
    %159 = arith.addf %158, %157 : vector<8x128xf32>
    %160 = arith.divf %158, %159 : vector<8x128xf32>
    %161 = math.tanh %155 : vector<8x128xf32>
    %162 = vector.extract_strided_slice %160 {offsets = [0, 0], sizes = [8, 32], strides = [1, 1]} : vector<8x128xf32> to vector<8x32xf32>
    %163 = vector.extract_strided_slice %160 {offsets = [0, 32], sizes = [8, 32], strides = [1, 1]} : vector<8x128xf32> to vector<8x32xf32>
    %164 = vector.extract_strided_slice %161 {offsets = [0, 64], sizes = [8, 32], strides = [1, 1]} : vector<8x128xf32> to vector<8x32xf32>
    %165 = vector.extract_strided_slice %160 {offsets = [0, 96], sizes = [8, 32], strides = [1, 1]} : vector<8x128xf32> to vector<8x32xf32>
    %166 = arith.mulf %163, %151 : vector<8x32xf32>
    %167 = arith.mulf %162, %164 : vector<8x32xf32>
    %168 = arith.addf %166, %167 : vector<8x32xf32>
    %169 = math.tanh %168 : vector<8x32xf32>
    %170 = arith.mulf %165, %169 : vector<8x32xf32>
    %171 = vector.extract_strided_slice %4 {offsets = [5, 0, 0], sizes = [1, 8, 1], strides = [1, 1, 1]} : vector<8x8x1xi1> to vector<1x8x1xi1>
    %172 = vector.shape_cast %171 : vector<1x8x1xi1> to vector<8x1xi1>
    %173 = vector.shape_cast %172 : vector<8x1xi1> to vector<8x1xi1>
    %174 = vector.broadcast %173 : vector<8x1xi1> to vector<8x32xi1>
    %175 = arith.select %174, %170, %148 : vector<8x32xi1>, vector<8x32xf32>
    %176 = vector.shape_cast %172 : vector<8x1xi1> to vector<8x1xi1>
    %177 = vector.broadcast %176 : vector<8x1xi1> to vector<8x32xi1>
    %178 = arith.select %177, %168, %151 : vector<8x32xi1>, vector<8x32xf32>
    %c6 = arith.constant 6 : index
    %c0_40 = arith.constant 0 : index
    %c0_41 = arith.constant 0 : index
    %179 = vector.load %arg12[%c6, %c0_40, %c0_41] : memref<8x8x128xf32, #tpu.memory_space<vmem>>, vector<1x8x128xf32>
    %180 = vector.shape_cast %179 : vector<1x8x128xf32> to vector<8x128xf32>
    %cst_42 = arith.constant dense<0.000000e+00> : vector<8x128xf32>
    %181 = tpu.matmul %175, %14, %cst_42 {dimension_numbers = #tpu.dot_dimension_numbers<[1], [0], [0], [1], [0, 0, 1, 1], [], []>} : vector<8x32xf32>, vector<32x128xf32>, vector<8x128xf32> -> vector<8x128xf32>
    %182 = arith.addf %180, %181 : vector<8x128xf32>
    %183 = arith.negf %182 : vector<8x128xf32>
    %184 = math.exp %183 : vector<8x128xf32>
    %cst_43 = arith.constant 1.000000e+00 : f32
    %185 = vector.broadcast %cst_43 : f32 to vector<8x128xf32>
    %186 = arith.addf %185, %184 : vector<8x128xf32>
    %187 = arith.divf %185, %186 : vector<8x128xf32>
    %188 = math.tanh %182 : vector<8x128xf32>
    %189 = vector.extract_strided_slice %187 {offsets = [0, 0], sizes = [8, 32], strides = [1, 1]} : vector<8x128xf32> to vector<8x32xf32>
    %190 = vector.extract_strided_slice %187 {offsets = [0, 32], sizes = [8, 32], strides = [1, 1]} : vector<8x128xf32> to vector<8x32xf32>
    %191 = vector.extract_strided_slice %188 {offsets = [0, 64], sizes = [8, 32], strides = [1, 1]} : vector<8x128xf32> to vector<8x32xf32>
    %192 = vector.extract_strided_slice %187 {offsets = [0, 96], sizes = [8, 32], strides = [1, 1]} : vector<8x128xf32> to vector<8x32xf32>
    %193 = arith.mulf %190, %178 : vector<8x32xf32>
    %194 = arith.mulf %189, %191 : vector<8x32xf32>
    %195 = arith.addf %193, %194 : vector<8x32xf32>
    %196 = math.tanh %195 : vector<8x32xf32>
    %197 = arith.mulf %192, %196 : vector<8x32xf32>
    %198 = vector.extract_strided_slice %4 {offsets = [6, 0, 0], sizes = [1, 8, 1], strides = [1, 1, 1]} : vector<8x8x1xi1> to vector<1x8x1xi1>
    %199 = vector.shape_cast %198 : vector<1x8x1xi1> to vector<8x1xi1>
    %200 = vector.shape_cast %199 : vector<8x1xi1> to vector<8x1xi1>
    %201 = vector.broadcast %200 : vector<8x1xi1> to vector<8x32xi1>
    %202 = arith.select %201, %197, %175 : vector<8x32xi1>, vector<8x32xf32>
    %203 = vector.shape_cast %199 : vector<8x1xi1> to vector<8x1xi1>
    %204 = vector.broadcast %203 : vector<8x1xi1> to vector<8x32xi1>
    %205 = arith.select %204, %195, %178 : vector<8x32xi1>, vector<8x32xf32>
    %c7 = arith.constant 7 : index
    %c0_44 = arith.constant 0 : index
    %c0_45 = arith.constant 0 : index
    %206 = vector.load %arg12[%c7, %c0_44, %c0_45] : memref<8x8x128xf32, #tpu.memory_space<vmem>>, vector<1x8x128xf32>
    %207 = vector.shape_cast %206 : vector<1x8x128xf32> to vector<8x128xf32>
    %cst_46 = arith.constant dense<0.000000e+00> : vector<8x128xf32>
    %208 = tpu.matmul %202, %14, %cst_46 {dimension_numbers = #tpu.dot_dimension_numbers<[1], [0], [0], [1], [0, 0, 1, 1], [], []>} : vector<8x32xf32>, vector<32x128xf32>, vector<8x128xf32> -> vector<8x128xf32>
    %209 = arith.addf %207, %208 : vector<8x128xf32>
    %210 = arith.negf %209 : vector<8x128xf32>
    %211 = math.exp %210 : vector<8x128xf32>
    %cst_47 = arith.constant 1.000000e+00 : f32
    %212 = vector.broadcast %cst_47 : f32 to vector<8x128xf32>
    %213 = arith.addf %212, %211 : vector<8x128xf32>
    %214 = arith.divf %212, %213 : vector<8x128xf32>
    %215 = math.tanh %209 : vector<8x128xf32>
    %216 = vector.extract_strided_slice %214 {offsets = [0, 0], sizes = [8, 32], strides = [1, 1]} : vector<8x128xf32> to vector<8x32xf32>
    %217 = vector.extract_strided_slice %214 {offsets = [0, 32], sizes = [8, 32], strides = [1, 1]} : vector<8x128xf32> to vector<8x32xf32>
    %218 = vector.extract_strided_slice %215 {offsets = [0, 64], sizes = [8, 32], strides = [1, 1]} : vector<8x128xf32> to vector<8x32xf32>
    %219 = vector.extract_strided_slice %214 {offsets = [0, 96], sizes = [8, 32], strides = [1, 1]} : vector<8x128xf32> to vector<8x32xf32>
    %220 = arith.mulf %217, %205 : vector<8x32xf32>
    %221 = arith.mulf %216, %218 : vector<8x32xf32>
    %222 = arith.addf %220, %221 : vector<8x32xf32>
    %223 = math.tanh %222 : vector<8x32xf32>
    %224 = arith.mulf %219, %223 : vector<8x32xf32>
    %225 = vector.extract_strided_slice %4 {offsets = [7, 0, 0], sizes = [1, 8, 1], strides = [1, 1, 1]} : vector<8x8x1xi1> to vector<1x8x1xi1>
    %226 = vector.shape_cast %225 : vector<1x8x1xi1> to vector<8x1xi1>
    %227 = vector.shape_cast %226 : vector<8x1xi1> to vector<8x1xi1>
    %228 = vector.broadcast %227 : vector<8x1xi1> to vector<8x32xi1>
    %229 = arith.select %228, %224, %202 : vector<8x32xi1>, vector<8x32xf32>
    %230 = vector.shape_cast %226 : vector<8x1xi1> to vector<8x1xi1>
    %231 = vector.broadcast %230 : vector<8x1xi1> to vector<8x32xi1>
    %232 = arith.select %231, %222, %205 : vector<8x32xi1>, vector<8x32xf32>
    %233 = vector.shape_cast %35 : vector<8x32xf32> to vector<1x8x32xf32>
    %234 = vector.shape_cast %62 : vector<8x32xf32> to vector<1x8x32xf32>
    %235 = vector.shape_cast %89 : vector<8x32xf32> to vector<1x8x32xf32>
    %236 = vector.shape_cast %116 : vector<8x32xf32> to vector<1x8x32xf32>
    %237 = vector.shape_cast %143 : vector<8x32xf32> to vector<1x8x32xf32>
    %238 = vector.shape_cast %170 : vector<8x32xf32> to vector<1x8x32xf32>
    %239 = vector.shape_cast %197 : vector<8x32xf32> to vector<1x8x32xf32>
    %240 = vector.shape_cast %224 : vector<8x32xf32> to vector<1x8x32xf32>
    %241 = tpu.concatenate %233, %234, %235, %236, %237, %238, %239, %240 in 0 : vector<1x8x32xf32>, vector<1x8x32xf32>, vector<1x8x32xf32>, vector<1x8x32xf32>, vector<1x8x32xf32>, vector<1x8x32xf32>, vector<1x8x32xf32>, vector<1x8x32xf32> -> vector<8x8x32xf32>
    %cst_48 = arith.constant 0.000000e+00 : f32
    %242 = vector.shape_cast %4 : vector<8x8x1xi1> to vector<8x8x1xi1>
    %243 = vector.broadcast %242 : vector<8x8x1xi1> to vector<8x8x32xi1>
    %244 = vector.broadcast %cst_48 : f32 to vector<8x8x32xf32>
    %245 = arith.select %243, %241, %244 : vector<8x8x32xi1>, vector<8x8x32xf32>
    %c0_49 = arith.constant 0 : index
    %c0_50 = arith.constant 0 : index
    %c0_51 = arith.constant 0 : index
    %246 = vector.load %arg10[%c0_49, %c0_50, %c0_51] : memref<2x8x32xf32, #tpu.memory_space<vmem>>, vector<1x8x32xf32>
    %247 = vector.shape_cast %246 : vector<1x8x32xf32> to vector<8x32xf32>
    %248 = vector.shape_cast %229 : vector<8x32xf32> to vector<1x8x32xf32>
    tpu.vector_store %arg10[%c0_49, %c0_50, %c0_51], %248 {strides = array<i32>} : memref<2x8x32xf32, #tpu.memory_space<vmem>>, vector<1x8x32xf32>,
    %c0_52 = arith.constant 0 : index
    %c0_53 = arith.constant 0 : index
    %c0_54 = arith.constant 0 : index
    %249 = vector.load %arg11[%c0_52, %c0_53, %c0_54] : memref<2x8x32xf32, #tpu.memory_space<vmem>>, vector<1x8x32xf32>
    %250 = vector.shape_cast %249 : vector<1x8x32xf32> to vector<8x32xf32>
    %251 = vector.shape_cast %232 : vector<8x32xf32> to vector<1x8x32xf32>
    tpu.vector_store %arg11[%c0_52, %c0_53, %c0_54], %251 {strides = array<i32>} : memref<2x8x32xf32, #tpu.memory_space<vmem>>, vector<1x8x32xf32>,
    %252 = vector.shape_cast %245 : vector<8x8x32xf32> to vector<64x32xf32>
    %c0_55 = arith.constant 0 : index
    %c0_56 = arith.constant 0 : index
    %253 = vector.load %arg6[%c0_55, %c0_56] : memref<32x128xf32, #tpu.memory_space<vmem>>, vector<32x128xf32>
    %cst_57 = arith.constant dense<0.000000e+00> : vector<64x128xf32>
    %254 = tpu.matmul %252, %253, %cst_57 {dimension_numbers = #tpu.dot_dimension_numbers<[1], [0], [0], [1], [0, 0, 1, 1], [], []>} : vector<64x32xf32>, vector<32x128xf32>, vector<64x128xf32> -> vector<64x128xf32>
    %c0_58 = arith.constant 0 : index
    %c0_59 = arith.constant 0 : index
    %255 = vector.load %arg8[%c0_58, %c0_59] : memref<1x128xf32, #tpu.memory_space<vmem>>, vector<1x128xf32>
    %256 = vector.broadcast %255 : vector<1x128xf32> to vector<64x128xf32>
    %257 = arith.addf %254, %256 : vector<64x128xf32>
    %258 = vector.shape_cast %257 : vector<64x128xf32> to vector<8x8x128xf32>
    %c0_60 = arith.constant 0 : index
    %c0_61 = arith.constant 0 : index
    %c0_62 = arith.constant 0 : index
    %259 = vector.load %arg12[%c0_60, %c0_61, %c0_62] : memref<8x8x128xf32, #tpu.memory_space<vmem>>, vector<8x8x128xf32>
    tpu.vector_store %arg12[%c0_60, %c0_61, %c0_62], %258 {strides = array<i32>} : memref<8x8x128xf32, #tpu.memory_space<vmem>>, vector<8x8x128xf32>,
    %c0_63 = arith.constant 0 : index
    %c0_64 = arith.constant 0 : index
    %260 = vector.load %arg7[%c0_63, %c0_64] : memref<32x128xf32, #tpu.memory_space<vmem>>, vector<32x128xf32>
    %cst_65 = arith.constant 0.000000e+00 : f32
    %261 = vector.broadcast %cst_65 : f32 to vector<8x32xf32>
    %cst_66 = arith.constant 0.000000e+00 : f32
    %262 = vector.broadcast %cst_66 : f32 to vector<8x32xf32>
    %c0_67 = arith.constant 0 : index
    %c0_68 = arith.constant 0 : index
    %c0_69 = arith.constant 0 : index
    %263 = vector.load %arg12[%c0_67, %c0_68, %c0_69] : memref<8x8x128xf32, #tpu.memory_space<vmem>>, vector<1x8x128xf32>
    %264 = vector.shape_cast %263 : vector<1x8x128xf32> to vector<8x128xf32>
    %cst_70 = arith.constant dense<0.000000e+00> : vector<8x128xf32>
    %265 = tpu.matmul %261, %260, %cst_70 {dimension_numbers = #tpu.dot_dimension_numbers<[1], [0], [0], [1], [0, 0, 1, 1], [], []>} : vector<8x32xf32>, vector<32x128xf32>, vector<8x128xf32> -> vector<8x128xf32>
    %266 = arith.addf %264, %265 : vector<8x128xf32>
    %267 = arith.negf %266 : vector<8x128xf32>
    %268 = math.exp %267 : vector<8x128xf32>
    %cst_71 = arith.constant 1.000000e+00 : f32
    %269 = vector.broadcast %cst_71 : f32 to vector<8x128xf32>
    %270 = arith.addf %269, %268 : vector<8x128xf32>
    %271 = arith.divf %269, %270 : vector<8x128xf32>
    %272 = math.tanh %266 : vector<8x128xf32>
    %273 = vector.extract_strided_slice %271 {offsets = [0, 0], sizes = [8, 32], strides = [1, 1]} : vector<8x128xf32> to vector<8x32xf32>
    %274 = vector.extract_strided_slice %271 {offsets = [0, 32], sizes = [8, 32], strides = [1, 1]} : vector<8x128xf32> to vector<8x32xf32>
    %275 = vector.extract_strided_slice %272 {offsets = [0, 64], sizes = [8, 32], strides = [1, 1]} : vector<8x128xf32> to vector<8x32xf32>
    %276 = vector.extract_strided_slice %271 {offsets = [0, 96], sizes = [8, 32], strides = [1, 1]} : vector<8x128xf32> to vector<8x32xf32>
    %277 = arith.mulf %274, %262 : vector<8x32xf32>
    %278 = arith.mulf %273, %275 : vector<8x32xf32>
    %279 = arith.addf %277, %278 : vector<8x32xf32>
    %280 = math.tanh %279 : vector<8x32xf32>
    %281 = arith.mulf %276, %280 : vector<8x32xf32>
    %282 = vector.extract_strided_slice %4 {offsets = [0, 0, 0], sizes = [1, 8, 1], strides = [1, 1, 1]} : vector<8x8x1xi1> to vector<1x8x1xi1>
    %283 = vector.shape_cast %282 : vector<1x8x1xi1> to vector<8x1xi1>
    %284 = vector.shape_cast %283 : vector<8x1xi1> to vector<8x1xi1>
    %285 = vector.broadcast %284 : vector<8x1xi1> to vector<8x32xi1>
    %286 = arith.select %285, %281, %261 : vector<8x32xi1>, vector<8x32xf32>
    %287 = vector.shape_cast %283 : vector<8x1xi1> to vector<8x1xi1>
    %288 = vector.broadcast %287 : vector<8x1xi1> to vector<8x32xi1>
    %289 = arith.select %288, %279, %262 : vector<8x32xi1>, vector<8x32xf32>
    %c1_72 = arith.constant 1 : index
    %c0_73 = arith.constant 0 : index
    %c0_74 = arith.constant 0 : index
    %290 = vector.load %arg12[%c1_72, %c0_73, %c0_74] : memref<8x8x128xf32, #tpu.memory_space<vmem>>, vector<1x8x128xf32>
    %291 = vector.shape_cast %290 : vector<1x8x128xf32> to vector<8x128xf32>
    %cst_75 = arith.constant dense<0.000000e+00> : vector<8x128xf32>
    %292 = tpu.matmul %286, %260, %cst_75 {dimension_numbers = #tpu.dot_dimension_numbers<[1], [0], [0], [1], [0, 0, 1, 1], [], []>} : vector<8x32xf32>, vector<32x128xf32>, vector<8x128xf32> -> vector<8x128xf32>
    %293 = arith.addf %291, %292 : vector<8x128xf32>
    %294 = arith.negf %293 : vector<8x128xf32>
    %295 = math.exp %294 : vector<8x128xf32>
    %cst_76 = arith.constant 1.000000e+00 : f32
    %296 = vector.broadcast %cst_76 : f32 to vector<8x128xf32>
    %297 = arith.addf %296, %295 : vector<8x128xf32>
    %298 = arith.divf %296, %297 : vector<8x128xf32>
    %299 = math.tanh %293 : vector<8x128xf32>
    %300 = vector.extract_strided_slice %298 {offsets = [0, 0], sizes = [8, 32], strides = [1, 1]} : vector<8x128xf32> to vector<8x32xf32>
    %301 = vector.extract_strided_slice %298 {offsets = [0, 32], sizes = [8, 32], strides = [1, 1]} : vector<8x128xf32> to vector<8x32xf32>
    %302 = vector.extract_strided_slice %299 {offsets = [0, 64], sizes = [8, 32], strides = [1, 1]} : vector<8x128xf32> to vector<8x32xf32>
    %303 = vector.extract_strided_slice %298 {offsets = [0, 96], sizes = [8, 32], strides = [1, 1]} : vector<8x128xf32> to vector<8x32xf32>
    %304 = arith.mulf %301, %289 : vector<8x32xf32>
    %305 = arith.mulf %300, %302 : vector<8x32xf32>
    %306 = arith.addf %304, %305 : vector<8x32xf32>
    %307 = math.tanh %306 : vector<8x32xf32>
    %308 = arith.mulf %303, %307 : vector<8x32xf32>
    %309 = vector.extract_strided_slice %4 {offsets = [1, 0, 0], sizes = [1, 8, 1], strides = [1, 1, 1]} : vector<8x8x1xi1> to vector<1x8x1xi1>
    %310 = vector.shape_cast %309 : vector<1x8x1xi1> to vector<8x1xi1>
    %311 = vector.shape_cast %310 : vector<8x1xi1> to vector<8x1xi1>
    %312 = vector.broadcast %311 : vector<8x1xi1> to vector<8x32xi1>
    %313 = arith.select %312, %308, %286 : vector<8x32xi1>, vector<8x32xf32>
    %314 = vector.shape_cast %310 : vector<8x1xi1> to vector<8x1xi1>
    %315 = vector.broadcast %314 : vector<8x1xi1> to vector<8x32xi1>
    %316 = arith.select %315, %306, %289 : vector<8x32xi1>, vector<8x32xf32>
    %c2_77 = arith.constant 2 : index
    %c0_78 = arith.constant 0 : index
    %c0_79 = arith.constant 0 : index
    %317 = vector.load %arg12[%c2_77, %c0_78, %c0_79] : memref<8x8x128xf32, #tpu.memory_space<vmem>>, vector<1x8x128xf32>
    %318 = vector.shape_cast %317 : vector<1x8x128xf32> to vector<8x128xf32>
    %cst_80 = arith.constant dense<0.000000e+00> : vector<8x128xf32>
    %319 = tpu.matmul %313, %260, %cst_80 {dimension_numbers = #tpu.dot_dimension_numbers<[1], [0], [0], [1], [0, 0, 1, 1], [], []>} : vector<8x32xf32>, vector<32x128xf32>, vector<8x128xf32> -> vector<8x128xf32>
    %320 = arith.addf %318, %319 : vector<8x128xf32>
    %321 = arith.negf %320 : vector<8x128xf32>
    %322 = math.exp %321 : vector<8x128xf32>
    %cst_81 = arith.constant 1.000000e+00 : f32
    %323 = vector.broadcast %cst_81 : f32 to vector<8x128xf32>
    %324 = arith.addf %323, %322 : vector<8x128xf32>
    %325 = arith.divf %323, %324 : vector<8x128xf32>
    %326 = math.tanh %320 : vector<8x128xf32>
    %327 = vector.extract_strided_slice %325 {offsets = [0, 0], sizes = [8, 32], strides = [1, 1]} : vector<8x128xf32> to vector<8x32xf32>
    %328 = vector.extract_strided_slice %325 {offsets = [0, 32], sizes = [8, 32], strides = [1, 1]} : vector<8x128xf32> to vector<8x32xf32>
    %329 = vector.extract_strided_slice %326 {offsets = [0, 64], sizes = [8, 32], strides = [1, 1]} : vector<8x128xf32> to vector<8x32xf32>
    %330 = vector.extract_strided_slice %325 {offsets = [0, 96], sizes = [8, 32], strides = [1, 1]} : vector<8x128xf32> to vector<8x32xf32>
    %331 = arith.mulf %328, %316 : vector<8x32xf32>
    %332 = arith.mulf %327, %329 : vector<8x32xf32>
    %333 = arith.addf %331, %332 : vector<8x32xf32>
    %334 = math.tanh %333 : vector<8x32xf32>
    %335 = arith.mulf %330, %334 : vector<8x32xf32>
    %336 = vector.extract_strided_slice %4 {offsets = [2, 0, 0], sizes = [1, 8, 1], strides = [1, 1, 1]} : vector<8x8x1xi1> to vector<1x8x1xi1>
    %337 = vector.shape_cast %336 : vector<1x8x1xi1> to vector<8x1xi1>
    %338 = vector.shape_cast %337 : vector<8x1xi1> to vector<8x1xi1>
    %339 = vector.broadcast %338 : vector<8x1xi1> to vector<8x32xi1>
    %340 = arith.select %339, %335, %313 : vector<8x32xi1>, vector<8x32xf32>
    %341 = vector.shape_cast %337 : vector<8x1xi1> to vector<8x1xi1>
    %342 = vector.broadcast %341 : vector<8x1xi1> to vector<8x32xi1>
    %343 = arith.select %342, %333, %316 : vector<8x32xi1>, vector<8x32xf32>
    %c3_82 = arith.constant 3 : index
    %c0_83 = arith.constant 0 : index
    %c0_84 = arith.constant 0 : index
    %344 = vector.load %arg12[%c3_82, %c0_83, %c0_84] : memref<8x8x128xf32, #tpu.memory_space<vmem>>, vector<1x8x128xf32>
    %345 = vector.shape_cast %344 : vector<1x8x128xf32> to vector<8x128xf32>
    %cst_85 = arith.constant dense<0.000000e+00> : vector<8x128xf32>
    %346 = tpu.matmul %340, %260, %cst_85 {dimension_numbers = #tpu.dot_dimension_numbers<[1], [0], [0], [1], [0, 0, 1, 1], [], []>} : vector<8x32xf32>, vector<32x128xf32>, vector<8x128xf32> -> vector<8x128xf32>
    %347 = arith.addf %345, %346 : vector<8x128xf32>
    %348 = arith.negf %347 : vector<8x128xf32>
    %349 = math.exp %348 : vector<8x128xf32>
    %cst_86 = arith.constant 1.000000e+00 : f32
    %350 = vector.broadcast %cst_86 : f32 to vector<8x128xf32>
    %351 = arith.addf %350, %349 : vector<8x128xf32>
    %352 = arith.divf %350, %351 : vector<8x128xf32>
    %353 = math.tanh %347 : vector<8x128xf32>
    %354 = vector.extract_strided_slice %352 {offsets = [0, 0], sizes = [8, 32], strides = [1, 1]} : vector<8x128xf32> to vector<8x32xf32>
    %355 = vector.extract_strided_slice %352 {offsets = [0, 32], sizes = [8, 32], strides = [1, 1]} : vector<8x128xf32> to vector<8x32xf32>
    %356 = vector.extract_strided_slice %353 {offsets = [0, 64], sizes = [8, 32], strides = [1, 1]} : vector<8x128xf32> to vector<8x32xf32>
    %357 = vector.extract_strided_slice %352 {offsets = [0, 96], sizes = [8, 32], strides = [1, 1]} : vector<8x128xf32> to vector<8x32xf32>
    %358 = arith.mulf %355, %343 : vector<8x32xf32>
    %359 = arith.mulf %354, %356 : vector<8x32xf32>
    %360 = arith.addf %358, %359 : vector<8x32xf32>
    %361 = math.tanh %360 : vector<8x32xf32>
    %362 = arith.mulf %357, %361 : vector<8x32xf32>
    %363 = vector.extract_strided_slice %4 {offsets = [3, 0, 0], sizes = [1, 8, 1], strides = [1, 1, 1]} : vector<8x8x1xi1> to vector<1x8x1xi1>
    %364 = vector.shape_cast %363 : vector<1x8x1xi1> to vector<8x1xi1>
    %365 = vector.shape_cast %364 : vector<8x1xi1> to vector<8x1xi1>
    %366 = vector.broadcast %365 : vector<8x1xi1> to vector<8x32xi1>
    %367 = arith.select %366, %362, %340 : vector<8x32xi1>, vector<8x32xf32>
    %368 = vector.shape_cast %364 : vector<8x1xi1> to vector<8x1xi1>
    %369 = vector.broadcast %368 : vector<8x1xi1> to vector<8x32xi1>
    %370 = arith.select %369, %360, %343 : vector<8x32xi1>, vector<8x32xf32>
    %c4_87 = arith.constant 4 : index
    %c0_88 = arith.constant 0 : index
    %c0_89 = arith.constant 0 : index
    %371 = vector.load %arg12[%c4_87, %c0_88, %c0_89] : memref<8x8x128xf32, #tpu.memory_space<vmem>>, vector<1x8x128xf32>
    %372 = vector.shape_cast %371 : vector<1x8x128xf32> to vector<8x128xf32>
    %cst_90 = arith.constant dense<0.000000e+00> : vector<8x128xf32>
    %373 = tpu.matmul %367, %260, %cst_90 {dimension_numbers = #tpu.dot_dimension_numbers<[1], [0], [0], [1], [0, 0, 1, 1], [], []>} : vector<8x32xf32>, vector<32x128xf32>, vector<8x128xf32> -> vector<8x128xf32>
    %374 = arith.addf %372, %373 : vector<8x128xf32>
    %375 = arith.negf %374 : vector<8x128xf32>
    %376 = math.exp %375 : vector<8x128xf32>
    %cst_91 = arith.constant 1.000000e+00 : f32
    %377 = vector.broadcast %cst_91 : f32 to vector<8x128xf32>
    %378 = arith.addf %377, %376 : vector<8x128xf32>
    %379 = arith.divf %377, %378 : vector<8x128xf32>
    %380 = math.tanh %374 : vector<8x128xf32>
    %381 = vector.extract_strided_slice %379 {offsets = [0, 0], sizes = [8, 32], strides = [1, 1]} : vector<8x128xf32> to vector<8x32xf32>
    %382 = vector.extract_strided_slice %379 {offsets = [0, 32], sizes = [8, 32], strides = [1, 1]} : vector<8x128xf32> to vector<8x32xf32>
    %383 = vector.extract_strided_slice %380 {offsets = [0, 64], sizes = [8, 32], strides = [1, 1]} : vector<8x128xf32> to vector<8x32xf32>
    %384 = vector.extract_strided_slice %379 {offsets = [0, 96], sizes = [8, 32], strides = [1, 1]} : vector<8x128xf32> to vector<8x32xf32>
    %385 = arith.mulf %382, %370 : vector<8x32xf32>
    %386 = arith.mulf %381, %383 : vector<8x32xf32>
    %387 = arith.addf %385, %386 : vector<8x32xf32>
    %388 = math.tanh %387 : vector<8x32xf32>
    %389 = arith.mulf %384, %388 : vector<8x32xf32>
    %390 = vector.extract_strided_slice %4 {offsets = [4, 0, 0], sizes = [1, 8, 1], strides = [1, 1, 1]} : vector<8x8x1xi1> to vector<1x8x1xi1>
    %391 = vector.shape_cast %390 : vector<1x8x1xi1> to vector<8x1xi1>
    %392 = vector.shape_cast %391 : vector<8x1xi1> to vector<8x1xi1>
    %393 = vector.broadcast %392 : vector<8x1xi1> to vector<8x32xi1>
    %394 = arith.select %393, %389, %367 : vector<8x32xi1>, vector<8x32xf32>
    %395 = vector.shape_cast %391 : vector<8x1xi1> to vector<8x1xi1>
    %396 = vector.broadcast %395 : vector<8x1xi1> to vector<8x32xi1>
    %397 = arith.select %396, %387, %370 : vector<8x32xi1>, vector<8x32xf32>
    %c5_92 = arith.constant 5 : index
    %c0_93 = arith.constant 0 : index
    %c0_94 = arith.constant 0 : index
    %398 = vector.load %arg12[%c5_92, %c0_93, %c0_94] : memref<8x8x128xf32, #tpu.memory_space<vmem>>, vector<1x8x128xf32>
    %399 = vector.shape_cast %398 : vector<1x8x128xf32> to vector<8x128xf32>
    %cst_95 = arith.constant dense<0.000000e+00> : vector<8x128xf32>
    %400 = tpu.matmul %394, %260, %cst_95 {dimension_numbers = #tpu.dot_dimension_numbers<[1], [0], [0], [1], [0, 0, 1, 1], [], []>} : vector<8x32xf32>, vector<32x128xf32>, vector<8x128xf32> -> vector<8x128xf32>
    %401 = arith.addf %399, %400 : vector<8x128xf32>
    %402 = arith.negf %401 : vector<8x128xf32>
    %403 = math.exp %402 : vector<8x128xf32>
    %cst_96 = arith.constant 1.000000e+00 : f32
    %404 = vector.broadcast %cst_96 : f32 to vector<8x128xf32>
    %405 = arith.addf %404, %403 : vector<8x128xf32>
    %406 = arith.divf %404, %405 : vector<8x128xf32>
    %407 = math.tanh %401 : vector<8x128xf32>
    %408 = vector.extract_strided_slice %406 {offsets = [0, 0], sizes = [8, 32], strides = [1, 1]} : vector<8x128xf32> to vector<8x32xf32>
    %409 = vector.extract_strided_slice %406 {offsets = [0, 32], sizes = [8, 32], strides = [1, 1]} : vector<8x128xf32> to vector<8x32xf32>
    %410 = vector.extract_strided_slice %407 {offsets = [0, 64], sizes = [8, 32], strides = [1, 1]} : vector<8x128xf32> to vector<8x32xf32>
    %411 = vector.extract_strided_slice %406 {offsets = [0, 96], sizes = [8, 32], strides = [1, 1]} : vector<8x128xf32> to vector<8x32xf32>
    %412 = arith.mulf %409, %397 : vector<8x32xf32>
    %413 = arith.mulf %408, %410 : vector<8x32xf32>
    %414 = arith.addf %412, %413 : vector<8x32xf32>
    %415 = math.tanh %414 : vector<8x32xf32>
    %416 = arith.mulf %411, %415 : vector<8x32xf32>
    %417 = vector.extract_strided_slice %4 {offsets = [5, 0, 0], sizes = [1, 8, 1], strides = [1, 1, 1]} : vector<8x8x1xi1> to vector<1x8x1xi1>
    %418 = vector.shape_cast %417 : vector<1x8x1xi1> to vector<8x1xi1>
    %419 = vector.shape_cast %418 : vector<8x1xi1> to vector<8x1xi1>
    %420 = vector.broadcast %419 : vector<8x1xi1> to vector<8x32xi1>
    %421 = arith.select %420, %416, %394 : vector<8x32xi1>, vector<8x32xf32>
    %422 = vector.shape_cast %418 : vector<8x1xi1> to vector<8x1xi1>
    %423 = vector.broadcast %422 : vector<8x1xi1> to vector<8x32xi1>
    %424 = arith.select %423, %414, %397 : vector<8x32xi1>, vector<8x32xf32>
    %c6_97 = arith.constant 6 : index
    %c0_98 = arith.constant 0 : index
    %c0_99 = arith.constant 0 : index
    %425 = vector.load %arg12[%c6_97, %c0_98, %c0_99] : memref<8x8x128xf32, #tpu.memory_space<vmem>>, vector<1x8x128xf32>
    %426 = vector.shape_cast %425 : vector<1x8x128xf32> to vector<8x128xf32>
    %cst_100 = arith.constant dense<0.000000e+00> : vector<8x128xf32>
    %427 = tpu.matmul %421, %260, %cst_100 {dimension_numbers = #tpu.dot_dimension_numbers<[1], [0], [0], [1], [0, 0, 1, 1], [], []>} : vector<8x32xf32>, vector<32x128xf32>, vector<8x128xf32> -> vector<8x128xf32>
    %428 = arith.addf %426, %427 : vector<8x128xf32>
    %429 = arith.negf %428 : vector<8x128xf32>
    %430 = math.exp %429 : vector<8x128xf32>
    %cst_101 = arith.constant 1.000000e+00 : f32
    %431 = vector.broadcast %cst_101 : f32 to vector<8x128xf32>
    %432 = arith.addf %431, %430 : vector<8x128xf32>
    %433 = arith.divf %431, %432 : vector<8x128xf32>
    %434 = math.tanh %428 : vector<8x128xf32>
    %435 = vector.extract_strided_slice %433 {offsets = [0, 0], sizes = [8, 32], strides = [1, 1]} : vector<8x128xf32> to vector<8x32xf32>
    %436 = vector.extract_strided_slice %433 {offsets = [0, 32], sizes = [8, 32], strides = [1, 1]} : vector<8x128xf32> to vector<8x32xf32>
    %437 = vector.extract_strided_slice %434 {offsets = [0, 64], sizes = [8, 32], strides = [1, 1]} : vector<8x128xf32> to vector<8x32xf32>
    %438 = vector.extract_strided_slice %433 {offsets = [0, 96], sizes = [8, 32], strides = [1, 1]} : vector<8x128xf32> to vector<8x32xf32>
    %439 = arith.mulf %436, %424 : vector<8x32xf32>
    %440 = arith.mulf %435, %437 : vector<8x32xf32>
    %441 = arith.addf %439, %440 : vector<8x32xf32>
    %442 = math.tanh %441 : vector<8x32xf32>
    %443 = arith.mulf %438, %442 : vector<8x32xf32>
    %444 = vector.extract_strided_slice %4 {offsets = [6, 0, 0], sizes = [1, 8, 1], strides = [1, 1, 1]} : vector<8x8x1xi1> to vector<1x8x1xi1>
    %445 = vector.shape_cast %444 : vector<1x8x1xi1> to vector<8x1xi1>
    %446 = vector.shape_cast %445 : vector<8x1xi1> to vector<8x1xi1>
    %447 = vector.broadcast %446 : vector<8x1xi1> to vector<8x32xi1>
    %448 = arith.select %447, %443, %421 : vector<8x32xi1>, vector<8x32xf32>
    %449 = vector.shape_cast %445 : vector<8x1xi1> to vector<8x1xi1>
    %450 = vector.broadcast %449 : vector<8x1xi1> to vector<8x32xi1>
    %451 = arith.select %450, %441, %424 : vector<8x32xi1>, vector<8x32xf32>
    %c7_102 = arith.constant 7 : index
    %c0_103 = arith.constant 0 : index
    %c0_104 = arith.constant 0 : index
    %452 = vector.load %arg12[%c7_102, %c0_103, %c0_104] : memref<8x8x128xf32, #tpu.memory_space<vmem>>, vector<1x8x128xf32>
    %453 = vector.shape_cast %452 : vector<1x8x128xf32> to vector<8x128xf32>
    %cst_105 = arith.constant dense<0.000000e+00> : vector<8x128xf32>
    %454 = tpu.matmul %448, %260, %cst_105 {dimension_numbers = #tpu.dot_dimension_numbers<[1], [0], [0], [1], [0, 0, 1, 1], [], []>} : vector<8x32xf32>, vector<32x128xf32>, vector<8x128xf32> -> vector<8x128xf32>
    %455 = arith.addf %453, %454 : vector<8x128xf32>
    %456 = arith.negf %455 : vector<8x128xf32>
    %457 = math.exp %456 : vector<8x128xf32>
    %cst_106 = arith.constant 1.000000e+00 : f32
    %458 = vector.broadcast %cst_106 : f32 to vector<8x128xf32>
    %459 = arith.addf %458, %457 : vector<8x128xf32>
    %460 = arith.divf %458, %459 : vector<8x128xf32>
    %461 = math.tanh %455 : vector<8x128xf32>
    %462 = vector.extract_strided_slice %460 {offsets = [0, 0], sizes = [8, 32], strides = [1, 1]} : vector<8x128xf32> to vector<8x32xf32>
    %463 = vector.extract_strided_slice %460 {offsets = [0, 32], sizes = [8, 32], strides = [1, 1]} : vector<8x128xf32> to vector<8x32xf32>
    %464 = vector.extract_strided_slice %461 {offsets = [0, 64], sizes = [8, 32], strides = [1, 1]} : vector<8x128xf32> to vector<8x32xf32>
    %465 = vector.extract_strided_slice %460 {offsets = [0, 96], sizes = [8, 32], strides = [1, 1]} : vector<8x128xf32> to vector<8x32xf32>
    %466 = arith.mulf %463, %451 : vector<8x32xf32>
    %467 = arith.mulf %462, %464 : vector<8x32xf32>
    %468 = arith.addf %466, %467 : vector<8x32xf32>
    %469 = math.tanh %468 : vector<8x32xf32>
    %470 = arith.mulf %465, %469 : vector<8x32xf32>
    %471 = vector.extract_strided_slice %4 {offsets = [7, 0, 0], sizes = [1, 8, 1], strides = [1, 1, 1]} : vector<8x8x1xi1> to vector<1x8x1xi1>
    %472 = vector.shape_cast %471 : vector<1x8x1xi1> to vector<8x1xi1>
    %473 = vector.shape_cast %472 : vector<8x1xi1> to vector<8x1xi1>
    %474 = vector.broadcast %473 : vector<8x1xi1> to vector<8x32xi1>
    %475 = arith.select %474, %470, %448 : vector<8x32xi1>, vector<8x32xf32>
    %476 = vector.shape_cast %472 : vector<8x1xi1> to vector<8x1xi1>
    %477 = vector.broadcast %476 : vector<8x1xi1> to vector<8x32xi1>
    %478 = arith.select %477, %468, %451 : vector<8x32xi1>, vector<8x32xf32>
    %479 = vector.shape_cast %281 : vector<8x32xf32> to vector<1x8x32xf32>
    %480 = vector.shape_cast %308 : vector<8x32xf32> to vector<1x8x32xf32>
    %481 = vector.shape_cast %335 : vector<8x32xf32> to vector<1x8x32xf32>
    %482 = vector.shape_cast %362 : vector<8x32xf32> to vector<1x8x32xf32>
    %483 = vector.shape_cast %389 : vector<8x32xf32> to vector<1x8x32xf32>
    %484 = vector.shape_cast %416 : vector<8x32xf32> to vector<1x8x32xf32>
    %485 = vector.shape_cast %443 : vector<8x32xf32> to vector<1x8x32xf32>
    %486 = vector.shape_cast %470 : vector<8x32xf32> to vector<1x8x32xf32>
    %487 = tpu.concatenate %479, %480, %481, %482, %483, %484, %485, %486 in 0 : vector<1x8x32xf32>, vector<1x8x32xf32>, vector<1x8x32xf32>, vector<1x8x32xf32>, vector<1x8x32xf32>, vector<1x8x32xf32>, vector<1x8x32xf32>, vector<1x8x32xf32> -> vector<8x8x32xf32>
    %cst_107 = arith.constant 0.000000e+00 : f32
    %488 = vector.shape_cast %4 : vector<8x8x1xi1> to vector<8x8x1xi1>
    %489 = vector.broadcast %488 : vector<8x8x1xi1> to vector<8x8x32xi1>
    %490 = vector.broadcast %cst_107 : f32 to vector<8x8x32xf32>
    %491 = arith.select %489, %487, %490 : vector<8x8x32xi1>, vector<8x8x32xf32>
    %c1_108 = arith.constant 1 : index
    %c0_109 = arith.constant 0 : index
    %c0_110 = arith.constant 0 : index
    %492 = vector.load %arg10[%c1_108, %c0_109, %c0_110] : memref<2x8x32xf32, #tpu.memory_space<vmem>>, vector<1x8x32xf32>
    %493 = vector.shape_cast %492 : vector<1x8x32xf32> to vector<8x32xf32>
    %494 = vector.shape_cast %475 : vector<8x32xf32> to vector<1x8x32xf32>
    tpu.vector_store %arg10[%c1_108, %c0_109, %c0_110], %494 {strides = array<i32>} : memref<2x8x32xf32, #tpu.memory_space<vmem>>, vector<1x8x32xf32>,
    %c1_111 = arith.constant 1 : index
    %c0_112 = arith.constant 0 : index
    %c0_113 = arith.constant 0 : index
    %495 = vector.load %arg11[%c1_111, %c0_112, %c0_113] : memref<2x8x32xf32, #tpu.memory_space<vmem>>, vector<1x8x32xf32>
    %496 = vector.shape_cast %495 : vector<1x8x32xf32> to vector<8x32xf32>
    %497 = vector.shape_cast %478 : vector<8x32xf32> to vector<1x8x32xf32>
    tpu.vector_store %arg11[%c1_111, %c0_112, %c0_113], %497 {strides = array<i32>} : memref<2x8x32xf32, #tpu.memory_space<vmem>>, vector<1x8x32xf32>,
    %c0_114 = arith.constant 0 : index
    %c0_115 = arith.constant 0 : index
    %c0_116 = arith.constant 0 : index
    %498 = vector.load %arg9[%c0_114, %c0_115, %c0_116] : memref<8x8x32xf32, #tpu.memory_space<vmem>>, vector<8x8x32xf32>
    tpu.vector_store %arg9[%c0_114, %c0_115, %c0_116], %491 {strides = array<i32>} : memref<8x8x32xf32, #tpu.memory_space<vmem>>, vector<8x8x32xf32>,
    return
  }
  func.func @transform_0(%arg0: i32) -> (i32, i32) {
    %c0_i32 = arith.constant 0 : i32
    %c0_i32_0 = arith.constant 0 : i32
    return %arg0, %c0_i32 : i32, i32
  }
  func.func @transform_1(%arg0: i32) -> (i32, i32, i32) {
    %c0_i32 = arith.constant 0 : i32
    %c0_i32_0 = arith.constant 0 : i32
    %c0_i32_1 = arith.constant 0 : i32
    return %c0_i32, %arg0, %c0_i32_0 : i32, i32, i32
  }
  func.func @transform_2(%arg0: i32) -> (i32, i32) {
    %c0_i32 = arith.constant 0 : i32
    %c0_i32_0 = arith.constant 0 : i32
    %c0_i32_1 = arith.constant 0 : i32
    return %c0_i32, %c0_i32_0 : i32, i32
  }
  func.func @transform_3(%arg0: i32) -> (i32, i32) {
    %c0_i32 = arith.constant 0 : i32
    %c0_i32_0 = arith.constant 0 : i32
    %c0_i32_1 = arith.constant 0 : i32
    return %c0_i32, %c0_i32_0 : i32, i32
  }
  func.func @transform_4(%arg0: i32) -> (i32, i32) {
    %c0_i32 = arith.constant 0 : i32
    %c0_i32_0 = arith.constant 0 : i32
    %c0_i32_1 = arith.constant 0 : i32
    return %c0_i32, %c0_i32_0 : i32, i32
  }
  func.func @transform_5(%arg0: i32) -> (i32, i32) {
    %c0_i32 = arith.constant 0 : i32
    %c0_i32_0 = arith.constant 0 : i32
    %c0_i32_1 = arith.constant 0 : i32
    return %c0_i32, %c0_i32_0 : i32, i32
  }
  func.func @transform_6(%arg0: i32) -> (i32, i32) {
    %c0_i32 = arith.constant 0 : i32
    %c0_i32_0 = arith.constant 0 : i32
    %c0_i32_1 = arith.constant 0 : i32
    return %c0_i32, %c0_i32_0 : i32, i32
  }
  func.func @transform_7(%arg0: i32) -> (i32, i32) {
    %c0_i32 = arith.constant 0 : i32
    %c0_i32_0 = arith.constant 0 : i32
    %c0_i32_1 = arith.constant 0 : i32
    return %c0_i32, %c0_i32_0 : i32, i32
  }
  func.func @transform_8(%arg0: i32) -> (i32, i32, i32) {
    %c0_i32 = arith.constant 0 : i32
    %c0_i32_0 = arith.constant 0 : i32
    %c0_i32_1 = arith.constant 0 : i32
    return %c0_i32, %arg0, %c0_i32_0 : i32, i32, i32
  }
  func.func @transform_9(%arg0: i32) -> (i32, i32, i32) {
    %c0_i32 = arith.constant 0 : i32
    %c0_i32_0 = arith.constant 0 : i32
    %c0_i32_1 = arith.constant 0 : i32
    return %c0_i32, %arg0, %c0_i32_0 : i32, i32, i32
  }
  func.func @transform_10(%arg0: i32) -> (i32, i32, i32) {
    %c0_i32 = arith.constant 0 : i32
    %c0_i32_0 = arith.constant 0 : i32
    %c0_i32_1 = arith.constant 0 : i32
    return %c0_i32, %arg0, %c0_i32_0 : i32, i32, i32
  }
}

</mosaic_0001>

<llo_original>
// kernel: tpu_custom_call.1
$region0: #{tpu_custom_call.1}
  #allocation0 [shape = 'u32[]', space=smem, size = 0x4, offset = 0x4, fixed_abs, tag = 'smem constant byte address 0x4 - core index']
  #allocation1 [shape = 'u32[144,128]{1,0:T(1,128)}', space=vmem, size = 0x12000, scoped, tag = 'internal scratch']
  #allocation2 [shape = 'f32[8,8,128]{2,1,0:T(8,128)}', space=vmem, size = 0x8000, scoped, tag = 'scratch operand']
  %s0 = inlined_call_operand.vmem [shape: s32[8,1], index: 0, kind: input, shape index: {}]
  %s1 = inlined_call_operand.hbm [shape: f32[8,8,16], index: 1, kind: input, shape index: {}]
  %s2 = inlined_call_operand.hbm [shape: f32[16,128], index: 2, kind: input, shape index: {}]
  %s3 = inlined_call_operand.hbm [shape: f32[32,128], index: 3, kind: input, shape index: {}]
  %s4 = inlined_call_operand.vmem [shape: f32[1,128], index: 4, kind: input, shape index: {}]
  %s5 = inlined_call_operand.hbm [shape: f32[32,128], index: 5, kind: input, shape index: {}]
  %s6 = inlined_call_operand.hbm [shape: f32[32,128], index: 6, kind: input, shape index: {}]
  %s7 = inlined_call_operand.vmem [shape: f32[1,128], index: 7, kind: input, shape index: {}]
  %s8 = inlined_call_operand.hbm [shape: f32[8,8,32], index: 8, kind: output, shape index: {0}]
  %s9 = inlined_call_operand.hbm [shape: f32[2,8,32], index: 9, kind: output, shape index: {1}]
  %s10 = inlined_call_operand.hbm [shape: f32[2,8,32], index: 10, kind: output, shape index: {2}]
  %11 = xla_tuple %s8, %s9, %s10
  %s12 = sld [smem:[#allocation0]]
  $region78: #{tpu_custom_call.1} parent=0
    _
  %s14 = ssub.s32 1, %s12
  %s15 = scalar_select 0, %s14, %s12
  $region1: #{tpu_custom_call.1} parent=0
    #allocation3 [shape = 'u8[32768]{0}', space=vmem, size = 0x8000, scoped, tag = 'input window, operand 1, single buffered']
    #allocation4 [shape = 's32[1]{0}', space=sflag, size = 0x4, scoped, tag = 'scoped memory for tpu_custom_call.1']
    #allocation5 [shape = 's32[1]{0}', space=sflag, size = 0x4, scoped, tag = 'scoped memory for tpu_custom_call.1']
    #allocation6 [shape = 'u8[8192]{0}', space=vmem, size = 0x2000, scoped, tag = 'input window, operand 2, single buffered']
    #allocation7 [shape = 's32[1]{0}', space=sflag, size = 0x4, scoped, tag = 'scoped memory for tpu_custom_call.1']
    #allocation8 [shape = 'u8[16384]{0}', space=vmem, size = 0x4000, scoped, tag = 'input window, operand 3, single buffered']
    #allocation9 [shape = 'u8[16384]{0}', space=vmem, size = 0x4000, scoped, tag = 'input window, operand 5, single buffered']
    #allocation10 [shape = 's32[1]{0}', space=sflag, size = 0x4, scoped, tag = 'scoped memory for tpu_custom_call.1']
    #allocation11 [shape = 'u8[16384]{0}', space=vmem, size = 0x4000, scoped, tag = 'input window, operand 6, single buffered']
    #allocation12 [shape = 'u8[32768]{0}', space=vmem, size = 0x8000, scoped, tag = 'output window, operand 0, single buffered']
    #allocation13 [shape = 'u8[8192]{0}', space=vmem, size = 0x2000, scoped, tag = 'output window, operand 1, single buffered']
    #allocation14 [shape = 's32[1]{0}', space=sflag, size = 0x4, scoped, tag = 'scoped memory for tpu_custom_call.1']
    #allocation15 [shape = 'u8[8192]{0}', space=vmem, size = 0x2000, scoped, tag = 'output window, operand 2, single buffered']
    %16 = vsyncpa [#allocation4], 0
    %17 = vsyncpa [#allocation7], 0
    %18 = vsyncpa [#allocation10], 0
    %19 = vsyncpa [#allocation5], 0
    %20 = vsyncpa [#allocation14], 0
    // Predicated region
    $region2: #{tpu_custom_call.1} parent=1 // pred_check
      _
    $region3: #{tpu_custom_call.1} parent=1 // pred_check_branch
      %22 = sbr.rel (0) target = $region5
    $region4: #{tpu_custom_call.1} parent=1 // pred_region
      _
    $region5: #{tpu_custom_call.1} parent=1 // pred_fallthru
      _
    // Predicated region
    $region6: #{tpu_custom_call.1} parent=1 // pred_check
      _
    $region7: #{tpu_custom_call.1} parent=1 // pred_check_branch
      %24 = sbr.rel (0) target = $region9
    $region8: #{tpu_custom_call.1} parent=1 // pred_region
      %s26 = ssub.s32 1024, 1024
      %27 = vsyncadd [#allocation4], %s26
      %s28 = sshll.u32 [#allocation3], 4
      %s29 = int_to_ptr.vmem [resolvable:$true] %s28
      %34 = dma.hbm_to_vmem [thread:$0]  %s1, 1024, %s29, [#allocation4], 128, 128, 8
    $region9: #{tpu_custom_call.1} parent=1 // pred_fallthru
      _
    // Predicated region
    $region10: #{tpu_custom_call.1} parent=1 // pred_check
      _
    $region11: #{tpu_custom_call.1} parent=1 // pred_check_branch
      %36 = sbr.rel (0) target = $region13
    $region12: #{tpu_custom_call.1} parent=1 // pred_region
      %s38 = ssub.s32 256, 256
      %39 = vsyncadd [#allocation7], %s38
      %s40 = sshll.u32 [#allocation6], 4
      %s41 = int_to_ptr.vmem [resolvable:$true] %s40
      %46 = dma.hbm_to_vmem [thread:$0]  %s2, 256, %s41, [#allocation7], 128, 128, 8
    $region13: #{tpu_custom_call.1} parent=1 // pred_fallthru
      _
    // Predicated region
    $region14: #{tpu_custom_call.1} parent=1 // pred_check
      _
    $region15: #{tpu_custom_call.1} parent=1 // pred_check_branch
      %48 = sbr.rel (0) target = $region17
    $region16: #{tpu_custom_call.1} parent=1 // pred_region
      %s50 = ssub.s32 512, 512
      %51 = vsyncadd [#allocation7], %s50
      %s52 = sshll.u32 [#allocation8], 4
      %s53 = int_to_ptr.vmem [resolvable:$true] %s52
      %58 = dma.hbm_to_vmem [thread:$0]  %s3, 512, %s53, [#allocation7], 128, 128, 8
    $region17: #{tpu_custom_call.1} parent=1 // pred_fallthru
      _
    // Predicated region
    $region18: #{tpu_custom_call.1} parent=1 // pred_check
      _
    $region19: #{tpu_custom_call.1} parent=1 // pred_check_branch
      %60 = sbr.rel (0) target = $region21
    $region20: #{tpu_custom_call.1} parent=1 // pred_region
      _
    $region21: #{tpu_custom_call.1} parent=1 // pred_fallthru
      _
    // Predicated region
    $region22: #{tpu_custom_call.1} parent=1 // pred_check
      _
    $region23: #{tpu_custom_call.1} parent=1 // pred_check_branch
      %62 = sbr.rel (0) target = $region25
    $region24: #{tpu_custom_call.1} parent=1 // pred_region
      %s64 = ssub.s32 512, 512
      %65 = vsyncadd [#allocation10], %s64
      %s66 = sshll.u32 [#allocation9], 4
      %s67 = int_to_ptr.vmem [resolvable:$true] %s66
      %72 = dma.hbm_to_vmem [thread:$0]  %s5, 512, %s67, [#allocation10], 128, 128, 8
    $region25: #{tpu_custom_call.1} parent=1 // pred_fallthru
      _
    // Predicated region
    $region26: #{tpu_custom_call.1} parent=1 // pred_check
      _
    $region27: #{tpu_custom_call.1} parent=1 // pred_check_branch
      %74 = sbr.rel (0) target = $region29
    $region28: #{tpu_custom_call.1} parent=1 // pred_region
      %s76 = ssub.s32 512, 512
      %77 = vsyncadd [#allocation10], %s76
      %s78 = sshll.u32 [#allocation11], 4
      %s79 = int_to_ptr.vmem [resolvable:$true] %s78
      %84 = dma.hbm_to_vmem [thread:$0]  %s6, 512, %s79, [#allocation10], 128, 128, 8
    $region29: #{tpu_custom_call.1} parent=1 // pred_fallthru
      _
    // Predicated region
    $region30: #{tpu_custom_call.1} parent=1 // pred_check
      _
    $region31: #{tpu_custom_call.1} parent=1 // pred_check_branch
      %86 = sbr.rel (0) target = $region33
    $region32: #{tpu_custom_call.1} parent=1 // pred_region
      _
    $region33: #{tpu_custom_call.1} parent=1 // pred_fallthru
      _
    // Predicated region
    $region34: #{tpu_custom_call.1} parent=1 // pred_check
      _
    $region35: #{tpu_custom_call.1} parent=1 // pred_check_branch
      %88 = sbr.rel (0) target = $region37
    $region36: #{tpu_custom_call.1} parent=1 // pred_region
      %89 = dma.done [#allocation4], 1024
    $region37: #{tpu_custom_call.1} parent=1 // pred_fallthru
      _
    // Predicated region
    $region38: #{tpu_custom_call.1} parent=1 // pred_check
      _
    $region39: #{tpu_custom_call.1} parent=1 // pred_check_branch
      %91 = sbr.rel (0) target = $region41
    $region40: #{tpu_custom_call.1} parent=1 // pred_region
      %92 = dma.done [#allocation7], 256
    $region41: #{tpu_custom_call.1} parent=1 // pred_fallthru
      _
    // Predicated region
    $region42: #{tpu_custom_call.1} parent=1 // pred_check
      _
    $region43: #{tpu_custom_call.1} parent=1 // pred_check_branch
      %94 = sbr.rel (0) target = $region45
    $region44: #{tpu_custom_call.1} parent=1 // pred_region
      %95 = dma.done [#allocation7], 512
    $region45: #{tpu_custom_call.1} parent=1 // pred_fallthru
      _
    // Predicated region
    $region46: #{tpu_custom_call.1} parent=1 // pred_check
      _
    $region47: #{tpu_custom_call.1} parent=1 // pred_check_branch
      %97 = sbr.rel (0) target = $region49
    $region48: #{tpu_custom_call.1} parent=1 // pred_region
      %98 = dma.done [#allocation10], 512
    $region49: #{tpu_custom_call.1} parent=1 // pred_fallthru
      _
    // Predicated region
    $region50: #{tpu_custom_call.1} parent=1 // pred_check
      _
    $region51: #{tpu_custom_call.1} parent=1 // pred_check_branch
      %100 = sbr.rel (0) target = $region53
    $region52: #{tpu_custom_call.1} parent=1 // pred_region
      %101 = dma.done [#allocation10], 512
    $region53: #{tpu_custom_call.1} parent=1 // pred_fallthru
      _
    %v102 = vld [vmem:[%s0] sm:$0xff]
    %vm103 = vcmp.gt.s32.totalorder %v102, 0
    %vm104 = vcmp.gt.s32.totalorder %v102, 1
    %vm105 = vcmp.gt.s32.totalorder %v102, 2
    %vm106 = vcmp.gt.s32.totalorder %v102, 3
    %vm107 = vcmp.gt.s32.totalorder %v102, 4
    %vm108 = vcmp.gt.s32.totalorder %v102, 5
    %vm109 = vcmp.gt.s32.totalorder %v102, 6
    %vm110 = vcmp.gt.s32.totalorder %v102, 7
    %v111 = vld [vmem:[#allocation3] sm:$0xff]
    %v112 = vld [vmem:[#allocation3 + $0x8] sm:$0xff]
    %v113 = vld [vmem:[#allocation3 + $0x10] sm:$0xff]
    %v114 = vld [vmem:[#allocation3 + $0x18] sm:$0xff]
    %v115 = vld [vmem:[#allocation3 + $0x20] sm:$0xff]
    %v116 = vld [vmem:[#allocation3 + $0x28] sm:$0xff]
    %v117 = vld [vmem:[#allocation3 + $0x30] sm:$0xff]
    %v118 = vld [vmem:[#allocation3 + $0x38] sm:$0xff]
    %v119 = vld [vmem:[#allocation6] sm:$0xff]
    %v120 = vld [vmem:[#allocation6 + $0x8] sm:$0xff]
    %v121 = vld [vmem:[%s4] sm:$0x1]
    %v123 = vlaneseq
    %v124 = vshrl.u32 %v123, 7
    %v125 = vsub.s32 0, %v124
    %v126 = vrot.slane %v121, %v125
    %vm128 = vcmask 130048
    %v130 = vsel %vm128, %v111, 0
    %v133 = vsel %vm128, %v112, 0
    %v136 = vsel %vm128, %v113, 0
    %v139 = vsel %vm128, %v114, 0
    %v142 = vsel %vm128, %v115, 0
    %v145 = vsel %vm128, %v116, 0
    %v148 = vsel %vm128, %v117, 0
    %v151 = vsel %vm128, %v118, 0
    %153 = vmatprep.subr.mxu0 0.0
    %154 = vmatpush1.msra.mxu0 0.0
    %155 = vmatprep.subr.mxu0 0.0
    %156 = vmatpush1.msra.mxu0 0.0
    %157 = vmatprep.subr.mxu0 0.0
    %158 = vmatpush1.msra.mxu0 0.0
    %159 = vmatprep.subr.mxu0 0.0
    %160 = vmatpush1.msra.mxu0 0.0
    %161 = vmatprep.subr.mxu0 0.0
    %162 = vmatpush1.msra.mxu0 0.0
    %163 = vmatprep.subr.mxu0 0.0
    %164 = vmatpush1.msra.mxu0 0.0
    %165 = vmatprep.subr.mxu0 0.0
    %166 = vmatpush1.msra.mxu0 0.0
    %167 = vmatprep.subr.mxu0 0.0
    %168 = vmatpush1.msra.mxu0 0.0
    %169 = vmatprep.subr.mxu0 0.0
    %170 = vmatpush1.msra.mxu0 0.0
    %171 = vmatprep.subr.mxu0 0.0
    %172 = vmatpush1.msra.mxu0 0.0
    %173 = vmatprep.subr.mxu0 0.0
    %174 = vmatpush1.msra.mxu0 0.0
    %175 = vmatprep.subr.mxu0 0.0
    %176 = vmatpush1.msra.mxu0 0.0
    %177 = vmatprep.subr.mxu0 0.0
    %178 = vmatpush1.msra.mxu0 0.0
    %179 = vmatprep.subr.mxu0 0.0
    %180 = vmatpush1.msra.mxu0 0.0
    %181 = vmatprep.subr.mxu0 0.0
    %182 = vmatpush1.msra.mxu0 %v120
    %183 = vmatprep.subr.mxu0 0.0
    %184 = vmatpush1.msra.mxu0 %v119
    %185 = vmatprep.subr.mxu0 0.0
    %186 = vmatpush2.msra.mxu0 0.0
    %187 = vmatprep.subr.mxu0 0.0
    %188 = vmatpush2.msra.mxu0 0.0
    %189 = vmatprep.subr.mxu0 0.0
    %190 = vmatpush2.msra.mxu0 0.0
    %191 = vmatprep.subr.mxu0 0.0
    %192 = vmatpush2.msra.mxu0 0.0
    %193 = vmatprep.subr.mxu0 0.0
    %194 = vmatpush2.msra.mxu0 0.0
    %195 = vmatprep.subr.mxu0 0.0
    %196 = vmatpush2.msra.mxu0 0.0
    %197 = vmatprep.subr.mxu0 0.0
    %198 = vmatpush2.msra.mxu0 0.0
    %199 = vmatprep.subr.mxu0 0.0
    %200 = vmatpush2.msra.mxu0 0.0
    %201 = vmatprep.subr.mxu0 0.0
    %202 = vmatpush2.msra.mxu0 0.0
    %203 = vmatprep.subr.mxu0 0.0
    %204 = vmatpush2.msra.mxu0 0.0
    %205 = vmatprep.subr.mxu0 0.0
    %206 = vmatpush2.msra.mxu0 0.0
    %207 = vmatprep.subr.mxu0 0.0
    %208 = vmatpush2.msra.mxu0 0.0
    %209 = vmatprep.subr.mxu0 0.0
    %210 = vmatpush2.msra.mxu0 0.0
    %211 = vmatprep.subr.mxu0 0.0
    %212 = vmatpush2.msra.mxu0 0.0
    %213 = vmatprep.subr.mxu0 0.0
    %214 = vmatpush2.msra.mxu0 0.0
    %215 = vmatprep.subr.mxu0 0.0
    %216 = vmatpush2.msra.mxu0 0.0
    %217 = vmatprep.mubr.f32.mxu0 0.0
    %218 = vmatmul.mubr.f32.gmra.mxu0 %v130
    %v219 = vpop.f32.mrf.mxu0
    %v220 = vadd.f32 %v126, %v219
    %v221 = vpop.f32.mrf.mxu0
    %222 = vmatprep.mubr.f32.mxu0 0.0
    %223 = vmatmul.mubr.f32.gmra.mxu0 %v133
    %v224 = vpop.f32.mrf.mxu0
    %v225 = vadd.f32 %v126, %v224
    %v226 = vpop.f32.mrf.mxu0
    %227 = vmatprep.mubr.f32.mxu0 0.0
    %228 = vmatmul.mubr.f32.gmra.mxu0 %v136
    %v229 = vpop.f32.mrf.mxu0
    %v230 = vadd.f32 %v126, %v229
    %v231 = vpop.f32.mrf.mxu0
    %232 = vmatprep.mubr.f32.mxu0 0.0
    %233 = vmatmul.mubr.f32.gmra.mxu0 %v139
    %v234 = vpop.f32.mrf.mxu0
    %v235 = vadd.f32 %v126, %v234
    %v236 = vpop.f32.mrf.mxu0
    %237 = vmatprep.mubr.f32.mxu0 0.0
    %238 = vmatmul.mubr.f32.gmra.mxu0 %v142
    %v239 = vpop.f32.mrf.mxu0
    %v240 = vadd.f32 %v126, %v239
    %v241 = vpop.f32.mrf.mxu0
    %242 = vmatprep.mubr.f32.mxu0 0.0
    %243 = vmatmul.mubr.f32.gmra.mxu0 %v145
    %v244 = vpop.f32.mrf.mxu0
    %v245 = vadd.f32 %v126, %v244
    %v246 = vpop.f32.mrf.mxu0
    %247 = vmatprep.mubr.f32.mxu0 0.0
    %248 = vmatmul.mubr.f32.gmra.mxu0 %v148
    %v249 = vpop.f32.mrf.mxu0
    %v250 = vadd.f32 %v126, %v249
    %v251 = vpop.f32.mrf.mxu0
    %252 = vmatprep.mubr.f32.mxu0 0.0
    %253 = vmatmul.mubr.f32.gmra.mxu0 %v151
    %v254 = vpop.f32.mrf.mxu0
    %v255 = vadd.f32 %v126, %v254
    %v256 = vpop.f32.mrf.mxu0
    %257 = vdwg.mxu0
    %258 = vst [vmem:[#allocation2] sm:$0xff] %v220
    %259 = vst [vmem:[#allocation2 + $0x8] sm:$0xff] %v225
    %260 = vst [vmem:[#allocation2 + $0x10] sm:$0xff] %v230
    %261 = vst [vmem:[#allocation2 + $0x18] sm:$0xff] %v235
    %262 = vst [vmem:[#allocation2 + $0x20] sm:$0xff] %v240
    %263 = vst [vmem:[#allocation2 + $0x28] sm:$0xff] %v245
    %264 = vst [vmem:[#allocation2 + $0x30] sm:$0xff] %v250
    %265 = vst [vmem:[#allocation2 + $0x38] sm:$0xff] %v255
    %v266 = vld [vmem:[#allocation8] sm:$0xff]
    %v267 = vld [vmem:[#allocation8 + $0x8] sm:$0xff]
    %v268 = vld [vmem:[#allocation8 + $0x10] sm:$0xff]
    %v269 = vld [vmem:[#allocation8 + $0x18] sm:$0xff]
    %v270 = vld [vmem:[#allocation2] sm:$0xff]
    %vm271 = vcmask 261120
    %v273 = vsel %vm271, 0.0, 0
    %275 = vmatprep.subr.mxu0 0.0
    %276 = vmatpush1.msra.mxu0 0.0
    %277 = vmatprep.subr.mxu0 0.0
    %278 = vmatpush1.msra.mxu0 0.0
    %279 = vmatprep.subr.mxu0 0.0
    %280 = vmatpush1.msra.mxu0 0.0
    %281 = vmatprep.subr.mxu0 0.0
    %282 = vmatpush1.msra.mxu0 0.0
    %283 = vmatprep.subr.mxu0 0.0
    %284 = vmatpush1.msra.mxu0 0.0
    %285 = vmatprep.subr.mxu0 0.0
    %286 = vmatpush1.msra.mxu0 0.0
    %287 = vmatprep.subr.mxu0 0.0
    %288 = vmatpush1.msra.mxu0 0.0
    %289 = vmatprep.subr.mxu0 0.0
    %290 = vmatpush1.msra.mxu0 0.0
    %291 = vmatprep.subr.mxu0 0.0
    %292 = vmatpush1.msra.mxu0 0.0
    %293 = vmatprep.subr.mxu0 0.0
    %294 = vmatpush1.msra.mxu0 0.0
    %295 = vmatprep.subr.mxu0 0.0
    %296 = vmatpush1.msra.mxu0 0.0
    %297 = vmatprep.subr.mxu0 0.0
    %298 = vmatpush1.msra.mxu0 0.0
    %299 = vmatprep.subr.mxu0 0.0
    %300 = vmatpush1.msra.mxu0 %v269
    %301 = vmatprep.subr.mxu0 0.0
    %302 = vmatpush1.msra.mxu0 %v268
    %303 = vmatprep.subr.mxu0 0.0
    %304 = vmatpush1.msra.mxu0 %v267
    %305 = vmatprep.subr.mxu0 0.0
    %306 = vmatpush1.msra.mxu0 %v266
    %307 = vmatprep.subr.mxu0 0.0
    %308 = vmatpush2.msra.mxu0 0.0
    %309 = vmatprep.subr.mxu0 0.0
    %310 = vmatpush2.msra.mxu0 0.0
    %311 = vmatprep.subr.mxu0 0.0
    %312 = vmatpush2.msra.mxu0 0.0
    %313 = vmatprep.subr.mxu0 0.0
    %314 = vmatpush2.msra.mxu0 0.0
    %315 = vmatprep.subr.mxu0 0.0
    %316 = vmatpush2.msra.mxu0 0.0
    %317 = vmatprep.subr.mxu0 0.0
    %318 = vmatpush2.msra.mxu0 0.0
    %319 = vmatprep.subr.mxu0 0.0
    %320 = vmatpush2.msra.mxu0 0.0
    %321 = vmatprep.subr.mxu0 0.0
    %322 = vmatpush2.msra.mxu0 0.0
    %323 = vmatprep.subr.mxu0 0.0
    %324 = vmatpush2.msra.mxu0 0.0
    %325 = vmatprep.subr.mxu0 0.0
    %326 = vmatpush2.msra.mxu0 0.0
    %327 = vmatprep.subr.mxu0 0.0
    %328 = vmatpush2.msra.mxu0 0.0
    %329 = vmatprep.subr.mxu0 0.0
    %330 = vmatpush2.msra.mxu0 0.0
    %331 = vmatprep.subr.mxu0 0.0
    %332 = vmatpush2.msra.mxu0 0.0
    %333 = vmatprep.subr.mxu0 0.0
    %334 = vmatpush2.msra.mxu0 0.0
    %335 = vmatprep.subr.mxu0 0.0
    %336 = vmatpush2.msra.mxu0 0.0
    %337 = vmatprep.subr.mxu0 0.0
    %338 = vmatpush2.msra.mxu0 0.0
    %339 = vmatprep.mubr.f32.mxu0 0.0
    %340 = vmatmul.mubr.f32.gmra.mxu0 %v273
    %v341 = vpop.f32.mrf.mxu0
    %v342 = vadd.f32 0.0, %v341
    %v343 = vpop.f32.mrf.mxu0
    %344 = vdwg.mxu0
    %v345 = vadd.f32 %v270, %v342
    %v346 = vxor.u32 %v345, 2147483648
    %v347 = vmul.f32 %v346, 1.442695
    %v348 = vpow.pop %v347
    %v349 = vadd.f32 %v348, 1.0
    %v350 = vrcp.pop %v349
    %v351 = vmul.f32 1.0, %v350
    %v352 = vtanh.pop %v345
    %v353 = vmul.f32 %v351, 0.0
    %355 = vrot.lane.b32.xlu0 %v352, 64
    %v356 = vpop.permute.xlu0 %355
    %v358 = vmul.f32 %v351, %v356
    %360 = vrot.lane.b32.xlu0 %v358, 32
    %v361 = vpop.permute.xlu0 %360
    %v363 = vadd.f32 %v353, %v361
    %v364 = vtanh.pop %v363
    %366 = vrot.lane.b32.xlu0 %v364, 64
    %v367 = vpop.permute.xlu0 %366
    %v369 = vmul.f32 %v351, %v367
    %v370 = vsel %vm103, 1, 0
    %371 = vset.pattern.permute.xlu0 0
    %372 = vperm.xlu0 %371, %v370
    %v373 = vpop.permute.xlu0 %372
    %vm374 = vcmp.eq.s32.totalorder %v373, 1
    %v375 = vsel %vm374, %v369, 0.0
    %v376 = vsel %vm374, %v363, 0.0
    %s377 = scalar_lea.vmem [#allocation2], 8
    %v378 = vld [vmem:[%s377] sm:$0xff]
    %380 = vrot.lane.b32.xlu0 %v375, 32
    %v381 = vpop.permute.xlu0 %380
    %v382 = vsel %vm271, %v381, 0
    %384 = vmatprep.subr.mxu0 0.0
    %385 = vmatpush1.msra.mxu0 0.0
    %386 = vmatprep.subr.mxu0 0.0
    %387 = vmatpush1.msra.mxu0 0.0
    %388 = vmatprep.subr.mxu0 0.0
    %389 = vmatpush1.msra.mxu0 0.0
    %390 = vmatprep.subr.mxu0 0.0
    %391 = vmatpush1.msra.mxu0 0.0
    %392 = vmatprep.subr.mxu0 0.0
    %393 = vmatpush1.msra.mxu0 0.0
    %394 = vmatprep.subr.mxu0 0.0
    %395 = vmatpush1.msra.mxu0 0.0
    %396 = vmatprep.subr.mxu0 0.0
    %397 = vmatpush1.msra.mxu0 0.0
    %398 = vmatprep.subr.mxu0 0.0
    %399 = vmatpush1.msra.mxu0 0.0
    %400 = vmatprep.subr.mxu0 0.0
    %401 = vmatpush1.msra.mxu0 0.0
    %402 = vmatprep.subr.mxu0 0.0
    %403 = vmatpush1.msra.mxu0 0.0
    %404 = vmatprep.subr.mxu0 0.0
    %405 = vmatpush1.msra.mxu0 0.0
    %406 = vmatprep.subr.mxu0 0.0
    %407 = vmatpush1.msra.mxu0 0.0
    %408 = vmatprep.subr.mxu0 0.0
    %409 = vmatpush1.msra.mxu0 %v269
    %410 = vmatprep.subr.mxu0 0.0
    %411 = vmatpush1.msra.mxu0 %v268
    %412 = vmatprep.subr.mxu0 0.0
    %413 = vmatpush1.msra.mxu0 %v267
    %414 = vmatprep.subr.mxu0 0.0
    %415 = vmatpush1.msra.mxu0 %v266
    %416 = vmatprep.subr.mxu0 0.0
    %417 = vmatpush2.msra.mxu0 0.0
    %418 = vmatprep.subr.mxu0 0.0
    %419 = vmatpush2.msra.mxu0 0.0
    %420 = vmatprep.subr.mxu0 0.0
    %421 = vmatpush2.msra.mxu0 0.0
    %422 = vmatprep.subr.mxu0 0.0
    %423 = vmatpush2.msra.mxu0 0.0
    %424 = vmatprep.subr.mxu0 0.0
    %425 = vmatpush2.msra.mxu0 0.0
    %426 = vmatprep.subr.mxu0 0.0
    %427 = vmatpush2.msra.mxu0 0.0
    %428 = vmatprep.subr.mxu0 0.0
    %429 = vmatpush2.msra.mxu0 0.0
    %430 = vmatprep.subr.mxu0 0.0
    %431 = vmatpush2.msra.mxu0 0.0
    %432 = vmatprep.subr.mxu0 0.0
    %433 = vmatpush2.msra.mxu0 0.0
    %434 = vmatprep.subr.mxu0 0.0
    %435 = vmatpush2.msra.mxu0 0.0
    %436 = vmatprep.subr.mxu0 0.0
    %437 = vmatpush2.msra.mxu0 0.0
    %438 = vmatprep.subr.mxu0 0.0
    %439 = vmatpush2.msra.mxu0 0.0
    %440 = vmatprep.subr.mxu0 0.0
    %441 = vmatpush2.msra.mxu0 0.0
    %442 = vmatprep.subr.mxu0 0.0
    %443 = vmatpush2.msra.mxu0 0.0
    %444 = vmatprep.subr.mxu0 0.0
    %445 = vmatpush2.msra.mxu0 0.0
    %446 = vmatprep.subr.mxu0 0.0
    %447 = vmatpush2.msra.mxu0 0.0
    %448 = vmatprep.mubr.f32.mxu0 0.0
    %449 = vmatmul.mubr.f32.gmra.mxu0 %v382
    %v450 = vpop.f32.mrf.mxu0
    %v451 = vadd.f32 0.0, %v450
    %v452 = vpop.f32.mrf.mxu0
    %453 = vdwg.mxu0
    %v454 = vadd.f32 %v378, %v451
    %v455 = vxor.u32 %v454, 2147483648
    %v456 = vmul.f32 %v455, 1.442695
    %v457 = vpow.pop %v456
    %v458 = vadd.f32 %v457, 1.0
    %v459 = vrcp.pop %v458
    %v460 = vmul.f32 1.0, %v459
    %v461 = vtanh.pop %v454
    %v462 = vmul.f32 %v460, %v376
    %464 = vrot.lane.b32.xlu0 %v461, 64
    %v465 = vpop.permute.xlu0 %464
    %v467 = vmul.f32 %v460, %v465
    %469 = vrot.lane.b32.xlu0 %v467, 32
    %v470 = vpop.permute.xlu0 %469
    %v472 = vadd.f32 %v462, %v470
    %v473 = vtanh.pop %v472
    %475 = vrot.lane.b32.xlu0 %v473, 64
    %v476 = vpop.permute.xlu0 %475
    %v478 = vmul.f32 %v460, %v476
    %v479 = vsel %vm104, 1, 0
    %480 = vset.pattern.permute.xlu0 0
    %481 = vperm.xlu0 %480, %v479
    %v482 = vpop.permute.xlu0 %481
    %vm483 = vcmp.eq.s32.totalorder %v482, 1
    %v484 = vsel %vm483, %v478, %v375
    %v485 = vsel %vm483, %v472, %v376
    %s486 = scalar_lea.vmem [#allocation2], 16
    %v487 = vld [vmem:[%s486] sm:$0xff]
    %489 = vrot.lane.b32.xlu0 %v484, 32
    %v490 = vpop.permute.xlu0 %489
    %v491 = vsel %vm271, %v490, 0
    %493 = vmatprep.subr.mxu0 0.0
    %494 = vmatpush1.msra.mxu0 0.0
    %495 = vmatprep.subr.mxu0 0.0
    %496 = vmatpush1.msra.mxu0 0.0
    %497 = vmatprep.subr.mxu0 0.0
    %498 = vmatpush1.msra.mxu0 0.0
    %499 = vmatprep.subr.mxu0 0.0
    %500 = vmatpush1.msra.mxu0 0.0
    %501 = vmatprep.subr.mxu0 0.0
    %502 = vmatpush1.msra.mxu0 0.0
    %503 = vmatprep.subr.mxu0 0.0
    %504 = vmatpush1.msra.mxu0 0.0
    %505 = vmatprep.subr.mxu0 0.0
    %506 = vmatpush1.msra.mxu0 0.0
    %507 = vmatprep.subr.mxu0 0.0
    %508 = vmatpush1.msra.mxu0 0.0
    %509 = vmatprep.subr.mxu0 0.0
    %510 = vmatpush1.msra.mxu0 0.0
    %511 = vmatprep.subr.mxu0 0.0
    %512 = vmatpush1.msra.mxu0 0.0
    %513 = vmatprep.subr.mxu0 0.0
    %514 = vmatpush1.msra.mxu0 0.0
    %515 = vmatprep.subr.mxu0 0.0
    %516 = vmatpush1.msra.mxu0 0.0
    %517 = vmatprep.subr.mxu0 0.0
    %518 = vmatpush1.msra.mxu0 %v269
    %519 = vmatprep.subr.mxu0 0.0
    %520 = vmatpush1.msra.mxu0 %v268
    %521 = vmatprep.subr.mxu0 0.0
    %522 = vmatpush1.msra.mxu0 %v267
    %523 = vmatprep.subr.mxu0 0.0
    %524 = vmatpush1.msra.mxu0 %v266
    %525 = vmatprep.subr.mxu0 0.0
    %526 = vmatpush2.msra.mxu0 0.0
    %527 = vmatprep.subr.mxu0 0.0
    %528 = vmatpush2.msra.mxu0 0.0
    %529 = vmatprep.subr.mxu0 0.0
    %530 = vmatpush2.msra.mxu0 0.0
    %531 = vmatprep.subr.mxu0 0.0
    %532 = vmatpush2.msra.mxu0 0.0
    %533 = vmatprep.subr.mxu0 0.0
    %534 = vmatpush2.msra.mxu0 0.0
    %535 = vmatprep.subr.mxu0 0.0
    %536 = vmatpush2.msra.mxu0 0.0
    %537 = vmatprep.subr.mxu0 0.0
    %538 = vmatpush2.msra.mxu0 0.0
    %539 = vmatprep.subr.mxu0 0.0
    %540 = vmatpush2.msra.mxu0 0.0
    %541 = vmatprep.subr.mxu0 0.0
    %542 = vmatpush2.msra.mxu0 0.0
    %543 = vmatprep.subr.mxu0 0.0
    %544 = vmatpush2.msra.mxu0 0.0
    %545 = vmatprep.subr.mxu0 0.0
    %546 = vmatpush2.msra.mxu0 0.0
    %547 = vmatprep.subr.mxu0 0.0
    %548 = vmatpush2.msra.mxu0 0.0
    %549 = vmatprep.subr.mxu0 0.0
    %550 = vmatpush2.msra.mxu0 0.0
    %551 = vmatprep.subr.mxu0 0.0
    %552 = vmatpush2.msra.mxu0 0.0
    %553 = vmatprep.subr.mxu0 0.0
    %554 = vmatpush2.msra.mxu0 0.0
    %555 = vmatprep.subr.mxu0 0.0
    %556 = vmatpush2.msra.mxu0 0.0
    %557 = vmatprep.mubr.f32.mxu0 0.0
    %558 = vmatmul.mubr.f32.gmra.mxu0 %v491
    %v559 = vpop.f32.mrf.mxu0
    %v560 = vadd.f32 0.0, %v559
    %v561 = vpop.f32.mrf.mxu0
    %562 = vdwg.mxu0
    %v563 = vadd.f32 %v487, %v560
    %v564 = vxor.u32 %v563, 2147483648
    %v565 = vmul.f32 %v564, 1.442695
    %v566 = vpow.pop %v565
    %v567 = vadd.f32 %v566, 1.0
    %v568 = vrcp.pop %v567
    %v569 = vmul.f32 1.0, %v568
    %v570 = vtanh.pop %v563
    %v571 = vmul.f32 %v569, %v485
    %573 = vrot.lane.b32.xlu0 %v570, 64
    %v574 = vpop.permute.xlu0 %573
    %v576 = vmul.f32 %v569, %v574
    %578 = vrot.lane.b32.xlu0 %v576, 32
    %v579 = vpop.permute.xlu0 %578
    %v581 = vadd.f32 %v571, %v579
    %v582 = vtanh.pop %v581
    %584 = vrot.lane.b32.xlu0 %v582, 64
    %v585 = vpop.permute.xlu0 %584
    %v587 = vmul.f32 %v569, %v585
    %v588 = vsel %vm105, 1, 0
    %589 = vset.pattern.permute.xlu0 0
    %590 = vperm.xlu0 %589, %v588
    %v591 = vpop.permute.xlu0 %590
    %vm592 = vcmp.eq.s32.totalorder %v591, 1
    %v593 = vsel %vm592, %v587, %v484
    %v594 = vsel %vm592, %v581, %v485
    %s595 = scalar_lea.vmem [#allocation2], 24
    %v596 = vld [vmem:[%s595] sm:$0xff]
    %598 = vrot.lane.b32.xlu0 %v593, 32
    %v599 = vpop.permute.xlu0 %598
    %v600 = vsel %vm271, %v599, 0
    %602 = vmatprep.subr.mxu0 0.0
    %603 = vmatpush1.msra.mxu0 0.0
    %604 = vmatprep.subr.mxu0 0.0
    %605 = vmatpush1.msra.mxu0 0.0
    %606 = vmatprep.subr.mxu0 0.0
    %607 = vmatpush1.msra.mxu0 0.0
    %608 = vmatprep.subr.mxu0 0.0
    %609 = vmatpush1.msra.mxu0 0.0
    %610 = vmatprep.subr.mxu0 0.0
    %611 = vmatpush1.msra.mxu0 0.0
    %612 = vmatprep.subr.mxu0 0.0
    %613 = vmatpush1.msra.mxu0 0.0
    %614 = vmatprep.subr.mxu0 0.0
    %615 = vmatpush1.msra.mxu0 0.0
    %616 = vmatprep.subr.mxu0 0.0
    %617 = vmatpush1.msra.mxu0 0.0
    %618 = vmatprep.subr.mxu0 0.0
    %619 = vmatpush1.msra.mxu0 0.0
    %620 = vmatprep.subr.mxu0 0.0
    %621 = vmatpush1.msra.mxu0 0.0
    %622 = vmatprep.subr.mxu0 0.0
    %623 = vmatpush1.msra.mxu0 0.0
    %624 = vmatprep.subr.mxu0 0.0
    %625 = vmatpush1.msra.mxu0 0.0
    %626 = vmatprep.subr.mxu0 0.0
    %627 = vmatpush1.msra.mxu0 %v269
    %628 = vmatprep.subr.mxu0 0.0
    %629 = vmatpush1.msra.mxu0 %v268
    %630 = vmatprep.subr.mxu0 0.0
    %631 = vmatpush1.msra.mxu0 %v267
    %632 = vmatprep.subr.mxu0 0.0
    %633 = vmatpush1.msra.mxu0 %v266
    %634 = vmatprep.subr.mxu0 0.0
    %635 = vmatpush2.msra.mxu0 0.0
    %636 = vmatprep.subr.mxu0 0.0
    %637 = vmatpush2.msra.mxu0 0.0
    %638 = vmatprep.subr.mxu0 0.0
    %639 = vmatpush2.msra.mxu0 0.0
    %640 = vmatprep.subr.mxu0 0.0
    %641 = vmatpush2.msra.mxu0 0.0
    %642 = vmatprep.subr.mxu0 0.0
    %643 = vmatpush2.msra.mxu0 0.0
    %644 = vmatprep.subr.mxu0 0.0
    %645 = vmatpush2.msra.mxu0 0.0
    %646 = vmatprep.subr.mxu0 0.0
    %647 = vmatpush2.msra.mxu0 0.0
    %648 = vmatprep.subr.mxu0 0.0
    %649 = vmatpush2.msra.mxu0 0.0
    %650 = vmatprep.subr.mxu0 0.0
    %651 = vmatpush2.msra.mxu0 0.0
    %652 = vmatprep.subr.mxu0 0.0
    %653 = vmatpush2.msra.mxu0 0.0
    %654 = vmatprep.subr.mxu0 0.0
    %655 = vmatpush2.msra.mxu0 0.0
    %656 = vmatprep.subr.mxu0 0.0
    %657 = vmatpush2.msra.mxu0 0.0
    %658 = vmatprep.subr.mxu0 0.0
    %659 = vmatpush2.msra.mxu0 0.0
    %660 = vmatprep.subr.mxu0 0.0
    %661 = vmatpush2.msra.mxu0 0.0
    %662 = vmatprep.subr.mxu0 0.0
    %663 = vmatpush2.msra.mxu0 0.0
    %664 = vmatprep.subr.mxu0 0.0
    %665 = vmatpush2.msra.mxu0 0.0
    %666 = vmatprep.mubr.f32.mxu0 0.0
    %667 = vmatmul.mubr.f32.gmra.mxu0 %v600
    %v668 = vpop.f32.mrf.mxu0
    %v669 = vadd.f32 0.0, %v668
    %v670 = vpop.f32.mrf.mxu0
    %671 = vdwg.mxu0
    %v672 = vadd.f32 %v596, %v669
    %v673 = vxor.u32 %v672, 2147483648
    %v674 = vmul.f32 %v673, 1.442695
    %v675 = vpow.pop %v674
    %v676 = vadd.f32 %v675, 1.0
    %v677 = vrcp.pop %v676
    %v678 = vmul.f32 1.0, %v677
    %v679 = vtanh.pop %v672
    %v680 = vmul.f32 %v678, %v594
    %682 = vrot.lane.b32.xlu0 %v679, 64
    %v683 = vpop.permute.xlu0 %682
    %v685 = vmul.f32 %v678, %v683
    %687 = vrot.lane.b32.xlu0 %v685, 32
    %v688 = vpop.permute.xlu0 %687
    %v690 = vadd.f32 %v680, %v688
    %v691 = vtanh.pop %v690
    %693 = vrot.lane.b32.xlu0 %v691, 64
    %v694 = vpop.permute.xlu0 %693
    %v696 = vmul.f32 %v678, %v694
    %v697 = vsel %vm106, 1, 0
    %698 = vset.pattern.permute.xlu0 0
    %699 = vperm.xlu0 %698, %v697
    %v700 = vpop.permute.xlu0 %699
    %vm701 = vcmp.eq.s32.totalorder %v700, 1
    %v702 = vsel %vm701, %v696, %v593
    %v703 = vsel %vm701, %v690, %v594
    %s704 = scalar_lea.vmem [#allocation2], 32
    %v705 = vld [vmem:[%s704] sm:$0xff]
    %707 = vrot.lane.b32.xlu0 %v702, 32
    %v708 = vpop.permute.xlu0 %707
    %v709 = vsel %vm271, %v708, 0
    %711 = vmatprep.subr.mxu0 0.0
    %712 = vmatpush1.msra.mxu0 0.0
    %713 = vmatprep.subr.mxu0 0.0
    %714 = vmatpush1.msra.mxu0 0.0
    %715 = vmatprep.subr.mxu0 0.0
    %716 = vmatpush1.msra.mxu0 0.0
    %717 = vmatprep.subr.mxu0 0.0
    %718 = vmatpush1.msra.mxu0 0.0
    %719 = vmatprep.subr.mxu0 0.0
    %720 = vmatpush1.msra.mxu0 0.0
    %721 = vmatprep.subr.mxu0 0.0
    %722 = vmatpush1.msra.mxu0 0.0
    %723 = vmatprep.subr.mxu0 0.0
    %724 = vmatpush1.msra.mxu0 0.0
    %725 = vmatprep.subr.mxu0 0.0
    %726 = vmatpush1.msra.mxu0 0.0
    %727 = vmatprep.subr.mxu0 0.0
    %728 = vmatpush1.msra.mxu0 0.0
    %729 = vmatprep.subr.mxu0 0.0
    %730 = vmatpush1.msra.mxu0 0.0
    %731 = vmatprep.subr.mxu0 0.0
    %732 = vmatpush1.msra.mxu0 0.0
    %733 = vmatprep.subr.mxu0 0.0
    %734 = vmatpush1.msra.mxu0 0.0
    %735 = vmatprep.subr.mxu0 0.0
    %736 = vmatpush1.msra.mxu0 %v269
    %737 = vmatprep.subr.mxu0 0.0
    %738 = vmatpush1.msra.mxu0 %v268
    %739 = vmatprep.subr.mxu0 0.0
    %740 = vmatpush1.msra.mxu0 %v267
    %741 = vmatprep.subr.mxu0 0.0
    %742 = vmatpush1.msra.mxu0 %v266
    %743 = vmatprep.subr.mxu0 0.0
    %744 = vmatpush2.msra.mxu0 0.0
    %745 = vmatprep.subr.mxu0 0.0
    %746 = vmatpush2.msra.mxu0 0.0
    %747 = vmatprep.subr.mxu0 0.0
    %748 = vmatpush2.msra.mxu0 0.0
    %749 = vmatprep.subr.mxu0 0.0
    %750 = vmatpush2.msra.mxu0 0.0
    %751 = vmatprep.subr.mxu0 0.0
    %752 = vmatpush2.msra.mxu0 0.0
    %753 = vmatprep.subr.mxu0 0.0
    %754 = vmatpush2.msra.mxu0 0.0
    %755 = vmatprep.subr.mxu0 0.0
    %756 = vmatpush2.msra.mxu0 0.0
    %757 = vmatprep.subr.mxu0 0.0
    %758 = vmatpush2.msra.mxu0 0.0
    %759 = vmatprep.subr.mxu0 0.0
    %760 = vmatpush2.msra.mxu0 0.0
    %761 = vmatprep.subr.mxu0 0.0
    %762 = vmatpush2.msra.mxu0 0.0
    %763 = vmatprep.subr.mxu0 0.0
    %764 = vmatpush2.msra.mxu0 0.0
    %765 = vmatprep.subr.mxu0 0.0
    %766 = vmatpush2.msra.mxu0 0.0
    %767 = vmatprep.subr.mxu0 0.0
    %768 = vmatpush2.msra.mxu0 0.0
    %769 = vmatprep.subr.mxu0 0.0
    %770 = vmatpush2.msra.mxu0 0.0
    %771 = vmatprep.subr.mxu0 0.0
    %772 = vmatpush2.msra.mxu0 0.0
    %773 = vmatprep.subr.mxu0 0.0
    %774 = vmatpush2.msra.mxu0 0.0
    %775 = vmatprep.mubr.f32.mxu0 0.0
    %776 = vmatmul.mubr.f32.gmra.mxu0 %v709
    %v777 = vpop.f32.mrf.mxu0
    %v778 = vadd.f32 0.0, %v777
    %v779 = vpop.f32.mrf.mxu0
    %780 = vdwg.mxu0
    %v781 = vadd.f32 %v705, %v778
    %v782 = vxor.u32 %v781, 2147483648
    %v783 = vmul.f32 %v782, 1.442695
    %v784 = vpow.pop %v783
    %v785 = vadd.f32 %v784, 1.0
    %v786 = vrcp.pop %v785
    %v787 = vmul.f32 1.0, %v786
    %v788 = vtanh.pop %v781
    %v789 = vmul.f32 %v787, %v703
    %791 = vrot.lane.b32.xlu0 %v788, 64
    %v792 = vpop.permute.xlu0 %791
    %v794 = vmul.f32 %v787, %v792
    %796 = vrot.lane.b32.xlu0 %v794, 32
    %v797 = vpop.permute.xlu0 %796
    %v799 = vadd.f32 %v789, %v797
    %v800 = vtanh.pop %v799
    %802 = vrot.lane.b32.xlu0 %v800, 64
    %v803 = vpop.permute.xlu0 %802
    %v805 = vmul.f32 %v787, %v803
    %v806 = vsel %vm107, 1, 0
    %807 = vset.pattern.permute.xlu0 0
    %808 = vperm.xlu0 %807, %v806
    %v809 = vpop.permute.xlu0 %808
    %vm810 = vcmp.eq.s32.totalorder %v809, 1
    %v811 = vsel %vm810, %v805, %v702
    %v812 = vsel %vm810, %v799, %v703
    %s813 = scalar_lea.vmem [#allocation2], 40
    %v814 = vld [vmem:[%s813] sm:$0xff]
    %816 = vrot.lane.b32.xlu0 %v811, 32
    %v817 = vpop.permute.xlu0 %816
    %v818 = vsel %vm271, %v817, 0
    %820 = vmatprep.subr.mxu0 0.0
    %821 = vmatpush1.msra.mxu0 0.0
    %822 = vmatprep.subr.mxu0 0.0
    %823 = vmatpush1.msra.mxu0 0.0
    %824 = vmatprep.subr.mxu0 0.0
    %825 = vmatpush1.msra.mxu0 0.0
    %826 = vmatprep.subr.mxu0 0.0
    %827 = vmatpush1.msra.mxu0 0.0
    %828 = vmatprep.subr.mxu0 0.0
    %829 = vmatpush1.msra.mxu0 0.0
    %830 = vmatprep.subr.mxu0 0.0
    %831 = vmatpush1.msra.mxu0 0.0
    %832 = vmatprep.subr.mxu0 0.0
    %833 = vmatpush1.msra.mxu0 0.0
    %834 = vmatprep.subr.mxu0 0.0
    %835 = vmatpush1.msra.mxu0 0.0
    %836 = vmatprep.subr.mxu0 0.0
    %837 = vmatpush1.msra.mxu0 0.0
    %838 = vmatprep.subr.mxu0 0.0
    %839 = vmatpush1.msra.mxu0 0.0
    %840 = vmatprep.subr.mxu0 0.0
    %841 = vmatpush1.msra.mxu0 0.0
    %842 = vmatprep.subr.mxu0 0.0
    %843 = vmatpush1.msra.mxu0 0.0
    %844 = vmatprep.subr.mxu0 0.0
    %845 = vmatpush1.msra.mxu0 %v269
    %846 = vmatprep.subr.mxu0 0.0
    %847 = vmatpush1.msra.mxu0 %v268
    %848 = vmatprep.subr.mxu0 0.0
    %849 = vmatpush1.msra.mxu0 %v267
    %850 = vmatprep.subr.mxu0 0.0
    %851 = vmatpush1.msra.mxu0 %v266
    %852 = vmatprep.subr.mxu0 0.0
    %853 = vmatpush2.msra.mxu0 0.0
    %854 = vmatprep.subr.mxu0 0.0
    %855 = vmatpush2.msra.mxu0 0.0
    %856 = vmatprep.subr.mxu0 0.0
    %857 = vmatpush2.msra.mxu0 0.0
    %858 = vmatprep.subr.mxu0 0.0
    %859 = vmatpush2.msra.mxu0 0.0
    %860 = vmatprep.subr.mxu0 0.0
    %861 = vmatpush2.msra.mxu0 0.0
    %862 = vmatprep.subr.mxu0 0.0
    %863 = vmatpush2.msra.mxu0 0.0
    %864 = vmatprep.subr.mxu0 0.0
    %865 = vmatpush2.msra.mxu0 0.0
    %866 = vmatprep.subr.mxu0 0.0
    %867 = vmatpush2.msra.mxu0 0.0
    %868 = vmatprep.subr.mxu0 0.0
    %869 = vmatpush2.msra.mxu0 0.0
    %870 = vmatprep.subr.mxu0 0.0
    %871 = vmatpush2.msra.mxu0 0.0
    %872 = vmatprep.subr.mxu0 0.0
    %873 = vmatpush2.msra.mxu0 0.0
    %874 = vmatprep.subr.mxu0 0.0
    %875 = vmatpush2.msra.mxu0 0.0
    %876 = vmatprep.subr.mxu0 0.0
    %877 = vmatpush2.msra.mxu0 0.0
    %878 = vmatprep.subr.mxu0 0.0
    %879 = vmatpush2.msra.mxu0 0.0
    %880 = vmatprep.subr.mxu0 0.0
    %881 = vmatpush2.msra.mxu0 0.0
    %882 = vmatprep.subr.mxu0 0.0
    %883 = vmatpush2.msra.mxu0 0.0
    %884 = vmatprep.mubr.f32.mxu0 0.0
    %885 = vmatmul.mubr.f32.gmra.mxu0 %v818
    %v886 = vpop.f32.mrf.mxu0
    %v887 = vadd.f32 0.0, %v886
    %v888 = vpop.f32.mrf.mxu0
    %889 = vdwg.mxu0
    %v890 = vadd.f32 %v814, %v887
    %v891 = vxor.u32 %v890, 2147483648
    %v892 = vmul.f32 %v891, 1.442695
    %v893 = vpow.pop %v892
    %v894 = vadd.f32 %v893, 1.0
    %v895 = vrcp.pop %v894
    %v896 = vmul.f32 1.0, %v895
    %v897 = vtanh.pop %v890
    %v898 = vmul.f32 %v896, %v812
    %900 = vrot.lane.b32.xlu0 %v897, 64
    %v901 = vpop.permute.xlu0 %900
    %v903 = vmul.f32 %v896, %v901
    %905 = vrot.lane.b32.xlu0 %v903, 32
    %v906 = vpop.permute.xlu0 %905
    %v908 = vadd.f32 %v898, %v906
    %v909 = vtanh.pop %v908
    %911 = vrot.lane.b32.xlu0 %v909, 64
    %v912 = vpop.permute.xlu0 %911
    %v914 = vmul.f32 %v896, %v912
    %v915 = vsel %vm108, 1, 0
    %916 = vset.pattern.permute.xlu0 0
    %917 = vperm.xlu0 %916, %v915
    %v918 = vpop.permute.xlu0 %917
    %vm919 = vcmp.eq.s32.totalorder %v918, 1
    %v920 = vsel %vm919, %v914, %v811
    %v921 = vsel %vm919, %v908, %v812
    %s922 = scalar_lea.vmem [#allocation2], 48
    %v923 = vld [vmem:[%s922] sm:$0xff]
    %925 = vrot.lane.b32.xlu0 %v920, 32
    %v926 = vpop.permute.xlu0 %925
    %v927 = vsel %vm271, %v926, 0
    %929 = vmatprep.subr.mxu0 0.0
    %930 = vmatpush1.msra.mxu0 0.0
    %931 = vmatprep.subr.mxu0 0.0
    %932 = vmatpush1.msra.mxu0 0.0
    %933 = vmatprep.subr.mxu0 0.0
    %934 = vmatpush1.msra.mxu0 0.0
    %935 = vmatprep.subr.mxu0 0.0
    %936 = vmatpush1.msra.mxu0 0.0
    %937 = vmatprep.subr.mxu0 0.0
    %938 = vmatpush1.msra.mxu0 0.0
    %939 = vmatprep.subr.mxu0 0.0
    %940 = vmatpush1.msra.mxu0 0.0
    %941 = vmatprep.subr.mxu0 0.0
    %942 = vmatpush1.msra.mxu0 0.0
    %943 = vmatprep.subr.mxu0 0.0
    %944 = vmatpush1.msra.mxu0 0.0
    %945 = vmatprep.subr.mxu0 0.0
    %946 = vmatpush1.msra.mxu0 0.0
    %947 = vmatprep.subr.mxu0 0.0
    %948 = vmatpush1.msra.mxu0 0.0
    %949 = vmatprep.subr.mxu0 0.0
    %950 = vmatpush1.msra.mxu0 0.0
    %951 = vmatprep.subr.mxu0 0.0
    %952 = vmatpush1.msra.mxu0 0.0
    %953 = vmatprep.subr.mxu0 0.0
    %954 = vmatpush1.msra.mxu0 %v269
    %955 = vmatprep.subr.mxu0 0.0
    %956 = vmatpush1.msra.mxu0 %v268
    %957 = vmatprep.subr.mxu0 0.0
    %958 = vmatpush1.msra.mxu0 %v267
    %959 = vmatprep.subr.mxu0 0.0
    %960 = vmatpush1.msra.mxu0 %v266
    %961 = vmatprep.subr.mxu0 0.0
    %962 = vmatpush2.msra.mxu0 0.0
    %963 = vmatprep.subr.mxu0 0.0
    %964 = vmatpush2.msra.mxu0 0.0
    %965 = vmatprep.subr.mxu0 0.0
    %966 = vmatpush2.msra.mxu0 0.0
    %967 = vmatprep.subr.mxu0 0.0
    %968 = vmatpush2.msra.mxu0 0.0
    %969 = vmatprep.subr.mxu0 0.0
    %970 = vmatpush2.msra.mxu0 0.0
    %971 = vmatprep.subr.mxu0 0.0
    %972 = vmatpush2.msra.mxu0 0.0
    %973 = vmatprep.subr.mxu0 0.0
    %974 = vmatpush2.msra.mxu0 0.0
    %975 = vmatprep.subr.mxu0 0.0
    %976 = vmatpush2.msra.mxu0 0.0
    %977 = vmatprep.subr.mxu0 0.0
    %978 = vmatpush2.msra.mxu0 0.0
    %979 = vmatprep.subr.mxu0 0.0
    %980 = vmatpush2.msra.mxu0 0.0
    %981 = vmatprep.subr.mxu0 0.0
    %982 = vmatpush2.msra.mxu0 0.0
    %983 = vmatprep.subr.mxu0 0.0
    %984 = vmatpush2.msra.mxu0 0.0
    %985 = vmatprep.subr.mxu0 0.0
    %986 = vmatpush2.msra.mxu0 0.0
    %987 = vmatprep.subr.mxu0 0.0
    %988 = vmatpush2.msra.mxu0 0.0
    %989 = vmatprep.subr.mxu0 0.0
    %990 = vmatpush2.msra.mxu0 0.0
    %991 = vmatprep.subr.mxu0 0.0
    %992 = vmatpush2.msra.mxu0 0.0
    %993 = vmatprep.mubr.f32.mxu0 0.0
    %994 = vmatmul.mubr.f32.gmra.mxu0 %v927
    %v995 = vpop.f32.mrf.mxu0
    %v996 = vadd.f32 0.0, %v995
    %v997 = vpop.f32.mrf.mxu0
    %998 = vdwg.mxu0
    %v999 = vadd.f32 %v923, %v996
    %v1000 = vxor.u32 %v999, 2147483648
    %v1001 = vmul.f32 %v1000, 1.442695
    %v1002 = vpow.pop %v1001
    %v1003 = vadd.f32 %v1002, 1.0
    %v1004 = vrcp.pop %v1003
    %v1005 = vmul.f32 1.0, %v1004
    %v1006 = vtanh.pop %v999
    %v1007 = vmul.f32 %v1005, %v921
    %1009 = vrot.lane.b32.xlu0 %v1006, 64
    %v1010 = vpop.permute.xlu0 %1009
    %v1012 = vmul.f32 %v1005, %v1010
    %1014 = vrot.lane.b32.xlu0 %v1012, 32
    %v1015 = vpop.permute.xlu0 %1014
    %v1017 = vadd.f32 %v1007, %v1015
    %v1018 = vtanh.pop %v1017
    %1020 = vrot.lane.b32.xlu0 %v1018, 64
    %v1021 = vpop.permute.xlu0 %1020
    %v1023 = vmul.f32 %v1005, %v1021
    %v1024 = vsel %vm109, 1, 0
    %1025 = vset.pattern.permute.xlu0 0
    %1026 = vperm.xlu0 %1025, %v1024
    %v1027 = vpop.permute.xlu0 %1026
    %vm1028 = vcmp.eq.s32.totalorder %v1027, 1
    %v1029 = vsel %vm1028, %v1023, %v920
    %v1030 = vsel %vm1028, %v1017, %v921
    %s1031 = scalar_lea.vmem [#allocation2], 56
    %v1032 = vld [vmem:[%s1031] sm:$0xff]
    %1034 = vrot.lane.b32.xlu0 %v1029, 32
    %v1035 = vpop.permute.xlu0 %1034
    %v1036 = vsel %vm271, %v1035, 0
    %1038 = vmatprep.subr.mxu0 0.0
    %1039 = vmatpush1.msra.mxu0 0.0
    %1040 = vmatprep.subr.mxu0 0.0
    %1041 = vmatpush1.msra.mxu0 0.0
    %1042 = vmatprep.subr.mxu0 0.0
    %1043 = vmatpush1.msra.mxu0 0.0
    %1044 = vmatprep.subr.mxu0 0.0
    %1045 = vmatpush1.msra.mxu0 0.0
    %1046 = vmatprep.subr.mxu0 0.0
    %1047 = vmatpush1.msra.mxu0 0.0
    %1048 = vmatprep.subr.mxu0 0.0
    %1049 = vmatpush1.msra.mxu0 0.0
    %1050 = vmatprep.subr.mxu0 0.0
    %1051 = vmatpush1.msra.mxu0 0.0
    %1052 = vmatprep.subr.mxu0 0.0
    %1053 = vmatpush1.msra.mxu0 0.0
    %1054 = vmatprep.subr.mxu0 0.0
    %1055 = vmatpush1.msra.mxu0 0.0
    %1056 = vmatprep.subr.mxu0 0.0
    %1057 = vmatpush1.msra.mxu0 0.0
    %1058 = vmatprep.subr.mxu0 0.0
    %1059 = vmatpush1.msra.mxu0 0.0
    %1060 = vmatprep.subr.mxu0 0.0
    %1061 = vmatpush1.msra.mxu0 0.0
    %1062 = vmatprep.subr.mxu0 0.0
    %1063 = vmatpush1.msra.mxu0 %v269
    %1064 = vmatprep.subr.mxu0 0.0
    %1065 = vmatpush1.msra.mxu0 %v268
    %1066 = vmatprep.subr.mxu0 0.0
    %1067 = vmatpush1.msra.mxu0 %v267
    %1068 = vmatprep.subr.mxu0 0.0
    %1069 = vmatpush1.msra.mxu0 %v266
    %1070 = vmatprep.subr.mxu0 0.0
    %1071 = vmatpush2.msra.mxu0 0.0
    %1072 = vmatprep.subr.mxu0 0.0
    %1073 = vmatpush2.msra.mxu0 0.0
    %1074 = vmatprep.subr.mxu0 0.0
    %1075 = vmatpush2.msra.mxu0 0.0
    %1076 = vmatprep.subr.mxu0 0.0
    %1077 = vmatpush2.msra.mxu0 0.0
    %1078 = vmatprep.subr.mxu0 0.0
    %1079 = vmatpush2.msra.mxu0 0.0
    %1080 = vmatprep.subr.mxu0 0.0
    %1081 = vmatpush2.msra.mxu0 0.0
    %1082 = vmatprep.subr.mxu0 0.0
    %1083 = vmatpush2.msra.mxu0 0.0
    %1084 = vmatprep.subr.mxu0 0.0
    %1085 = vmatpush2.msra.mxu0 0.0
    %1086 = vmatprep.subr.mxu0 0.0
    %1087 = vmatpush2.msra.mxu0 0.0
    %1088 = vmatprep.subr.mxu0 0.0
    %1089 = vmatpush2.msra.mxu0 0.0
    %1090 = vmatprep.subr.mxu0 0.0
    %1091 = vmatpush2.msra.mxu0 0.0
    %1092 = vmatprep.subr.mxu0 0.0
    %1093 = vmatpush2.msra.mxu0 0.0
    %1094 = vmatprep.subr.mxu0 0.0
    %1095 = vmatpush2.msra.mxu0 0.0
    %1096 = vmatprep.subr.mxu0 0.0
    %1097 = vmatpush2.msra.mxu0 0.0
    %1098 = vmatprep.subr.mxu0 0.0
    %1099 = vmatpush2.msra.mxu0 0.0
    %1100 = vmatprep.subr.mxu0 0.0
    %1101 = vmatpush2.msra.mxu0 0.0
    %1102 = vmatprep.mubr.f32.mxu0 0.0
    %1103 = vmatmul.mubr.f32.gmra.mxu0 %v1036
    %v1104 = vpop.f32.mrf.mxu0
    %v1105 = vadd.f32 0.0, %v1104
    %v1106 = vpop.f32.mrf.mxu0
    %1107 = vdwg.mxu0
    %v1108 = vadd.f32 %v1032, %v1105
    %v1109 = vxor.u32 %v1108, 2147483648
    %v1110 = vmul.f32 %v1109, 1.442695
    %v1111 = vpow.pop %v1110
    %v1112 = vadd.f32 %v1111, 1.0
    %v1113 = vrcp.pop %v1112
    %v1114 = vmul.f32 1.0, %v1113
    %v1115 = vtanh.pop %v1108
    %v1116 = vmul.f32 %v1114, %v1030
    %1118 = vrot.lane.b32.xlu0 %v1115, 64
    %v1119 = vpop.permute.xlu0 %1118
    %v1121 = vmul.f32 %v1114, %v1119
    %1123 = vrot.lane.b32.xlu0 %v1121, 32
    %v1124 = vpop.permute.xlu0 %1123
    %v1126 = vadd.f32 %v1116, %v1124
    %v1127 = vtanh.pop %v1126
    %1129 = vrot.lane.b32.xlu0 %v1127, 64
    %v1130 = vpop.permute.xlu0 %1129
    %v1132 = vmul.f32 %v1114, %v1130
    %v1133 = vsel %vm110, 1, 0
    %1134 = vset.pattern.permute.xlu0 0
    %1135 = vperm.xlu0 %1134, %v1133
    %v1136 = vpop.permute.xlu0 %1135
    %vm1137 = vcmp.eq.s32.totalorder %v1136, 1
    %v1138 = vsel %vm1137, %v1132, %v1029
    %v1139 = vsel %vm1137, %v1126, %v1030
    %v1140 = vsel %vm483, %v478, 0.0
    %v1141 = vsel %vm592, %v587, 0.0
    %v1142 = vsel %vm701, %v696, 0.0
    %v1143 = vsel %vm810, %v805, 0.0
    %v1144 = vsel %vm919, %v914, 0.0
    %v1145 = vsel %vm1028, %v1023, 0.0
    %v1146 = vsel %vm1137, %v1132, 0.0
    %1148 = vrot.lane.b32.xlu0 %v1138, 32
    %v1149 = vpop.permute.xlu0 %1148
    %1151 = vst.msk [vmem:[#allocation13] sm:$0xff] %vm271, %v1149
    %1153 = vrot.lane.b32.xlu0 %v1139, 96
    %v1154 = vpop.permute.xlu0 %1153
    %1156 = vst.msk [vmem:[#allocation15] sm:$0xff] %vm271, %v1154
    %v1157 = vld [vmem:[#allocation9] sm:$0xff]
    %v1158 = vld [vmem:[#allocation9 + $0x8] sm:$0xff]
    %v1159 = vld [vmem:[#allocation9 + $0x10] sm:$0xff]
    %v1160 = vld [vmem:[#allocation9 + $0x18] sm:$0xff]
    %v1161 = vld [vmem:[%s7] sm:$0x1]
    %v1163 = vlaneseq
    %v1164 = vshrl.u32 %v1163, 7
    %v1165 = vsub.s32 0, %v1164
    %v1166 = vrot.slane %v1161, %v1165
    %1175 = vrot.lane.b32.xlu0 %v1140, 32
    %v1176 = vpop.permute.xlu0 %1175
    %1177 = vrot.lane.b32.xlu0 %v1141, 32
    %v1178 = vpop.permute.xlu0 %1177
    %1179 = vrot.lane.b32.xlu0 %v1142, 32
    %v1180 = vpop.permute.xlu0 %1179
    %1181 = vrot.lane.b32.xlu0 %v1143, 32
    %v1182 = vpop.permute.xlu0 %1181
    %1183 = vrot.lane.b32.xlu0 %v1144, 32
    %v1184 = vpop.permute.xlu0 %1183
    %1185 = vrot.lane.b32.xlu0 %v1145, 32
    %v1186 = vpop.permute.xlu0 %1185
    %1187 = vrot.lane.b32.xlu0 %v1146, 32
    %v1188 = vpop.permute.xlu0 %1187
    %v1189 = vsel %vm271, %v1176, 0
    %v1191 = vsel %vm271, %v1178, 0
    %v1193 = vsel %vm271, %v1180, 0
    %v1195 = vsel %vm271, %v1182, 0
    %v1197 = vsel %vm271, %v1184, 0
    %v1199 = vsel %vm271, %v1186, 0
    %v1201 = vsel %vm271, %v1188, 0
    %1203 = vmatprep.subr.mxu0 0.0
    %1204 = vmatpush1.msra.mxu0 0.0
    %1205 = vmatprep.subr.mxu0 0.0
    %1206 = vmatpush1.msra.mxu0 0.0
    %1207 = vmatprep.subr.mxu0 0.0
    %1208 = vmatpush1.msra.mxu0 0.0
    %1209 = vmatprep.subr.mxu0 0.0
    %1210 = vmatpush1.msra.mxu0 0.0
    %1211 = vmatprep.subr.mxu0 0.0
    %1212 = vmatpush1.msra.mxu0 0.0
    %1213 = vmatprep.subr.mxu0 0.0
    %1214 = vmatpush1.msra.mxu0 0.0
    %1215 = vmatprep.subr.mxu0 0.0
    %1216 = vmatpush1.msra.mxu0 0.0
    %1217 = vmatprep.subr.mxu0 0.0
    %1218 = vmatpush1.msra.mxu0 0.0
    %1219 = vmatprep.subr.mxu0 0.0
    %1220 = vmatpush1.msra.mxu0 0.0
    %1221 = vmatprep.subr.mxu0 0.0
    %1222 = vmatpush1.msra.mxu0 0.0
    %1223 = vmatprep.subr.mxu0 0.0
    %1224 = vmatpush1.msra.mxu0 0.0
    %1225 = vmatprep.subr.mxu0 0.0
    %1226 = vmatpush1.msra.mxu0 0.0
    %1227 = vmatprep.subr.mxu0 0.0
    %1228 = vmatpush1.msra.mxu0 %v1160
    %1229 = vmatprep.subr.mxu0 0.0
    %1230 = vmatpush1.msra.mxu0 %v1159
    %1231 = vmatprep.subr.mxu0 0.0
    %1232 = vmatpush1.msra.mxu0 %v1158
    %1233 = vmatprep.subr.mxu0 0.0
    %1234 = vmatpush1.msra.mxu0 %v1157
    %1235 = vmatprep.subr.mxu0 0.0
    %1236 = vmatpush2.msra.mxu0 0.0
    %1237 = vmatprep.subr.mxu0 0.0
    %1238 = vmatpush2.msra.mxu0 0.0
    %1239 = vmatprep.subr.mxu0 0.0
    %1240 = vmatpush2.msra.mxu0 0.0
    %1241 = vmatprep.subr.mxu0 0.0
    %1242 = vmatpush2.msra.mxu0 0.0
    %1243 = vmatprep.subr.mxu0 0.0
    %1244 = vmatpush2.msra.mxu0 0.0
    %1245 = vmatprep.subr.mxu0 0.0
    %1246 = vmatpush2.msra.mxu0 0.0
    %1247 = vmatprep.subr.mxu0 0.0
    %1248 = vmatpush2.msra.mxu0 0.0
    %1249 = vmatprep.subr.mxu0 0.0
    %1250 = vmatpush2.msra.mxu0 0.0
    %1251 = vmatprep.subr.mxu0 0.0
    %1252 = vmatpush2.msra.mxu0 0.0
    %1253 = vmatprep.subr.mxu0 0.0
    %1254 = vmatpush2.msra.mxu0 0.0
    %1255 = vmatprep.subr.mxu0 0.0
    %1256 = vmatpush2.msra.mxu0 0.0
    %1257 = vmatprep.subr.mxu0 0.0
    %1258 = vmatpush2.msra.mxu0 0.0
    %1259 = vmatprep.subr.mxu0 0.0
    %1260 = vmatpush2.msra.mxu0 0.0
    %1261 = vmatprep.subr.mxu0 0.0
    %1262 = vmatpush2.msra.mxu0 0.0
    %1263 = vmatprep.subr.mxu0 0.0
    %1264 = vmatpush2.msra.mxu0 0.0
    %1265 = vmatprep.subr.mxu0 0.0
    %1266 = vmatpush2.msra.mxu0 0.0
    %1267 = vmatprep.mubr.f32.mxu0 0.0
    %1268 = vmatmul.mubr.f32.gmra.mxu0 %v382
    %v1269 = vpop.f32.mrf.mxu0
    %v1270 = vadd.f32 %v1166, %v1269
    %v1271 = vpop.f32.mrf.mxu0
    %1272 = vmatprep.mubr.f32.mxu0 0.0
    %1273 = vmatmul.mubr.f32.gmra.mxu0 %v1189
    %v1274 = vpop.f32.mrf.mxu0
    %v1275 = vadd.f32 %v1166, %v1274
    %v1276 = vpop.f32.mrf.mxu0
    %1277 = vmatprep.mubr.f32.mxu0 0.0
    %1278 = vmatmul.mubr.f32.gmra.mxu0 %v1191
    %v1279 = vpop.f32.mrf.mxu0
    %v1280 = vadd.f32 %v1166, %v1279
    %v1281 = vpop.f32.mrf.mxu0
    %1282 = vmatprep.mubr.f32.mxu0 0.0
    %1283 = vmatmul.mubr.f32.gmra.mxu0 %v1193
    %v1284 = vpop.f32.mrf.mxu0
    %v1285 = vadd.f32 %v1166, %v1284
    %v1286 = vpop.f32.mrf.mxu0
    %1287 = vmatprep.mubr.f32.mxu0 0.0
    %1288 = vmatmul.mubr.f32.gmra.mxu0 %v1195
    %v1289 = vpop.f32.mrf.mxu0
    %v1290 = vadd.f32 %v1166, %v1289
    %v1291 = vpop.f32.mrf.mxu0
    %1292 = vmatprep.mubr.f32.mxu0 0.0
    %1293 = vmatmul.mubr.f32.gmra.mxu0 %v1197
    %v1294 = vpop.f32.mrf.mxu0
    %v1295 = vadd.f32 %v1166, %v1294
    %v1296 = vpop.f32.mrf.mxu0
    %1297 = vmatprep.mubr.f32.mxu0 0.0
    %1298 = vmatmul.mubr.f32.gmra.mxu0 %v1199
    %v1299 = vpop.f32.mrf.mxu0
    %v1300 = vadd.f32 %v1166, %v1299
    %v1301 = vpop.f32.mrf.mxu0
    %1302 = vmatprep.mubr.f32.mxu0 0.0
    %1303 = vmatmul.mubr.f32.gmra.mxu0 %v1201
    %v1304 = vpop.f32.mrf.mxu0
    %v1305 = vadd.f32 %v1166, %v1304
    %v1306 = vpop.f32.mrf.mxu0
    %1307 = vdwg.mxu0
    %1308 = vst [vmem:[#allocation2] sm:$0xff] %v1270
    %1309 = vst [vmem:[#allocation2 + $0x8] sm:$0xff] %v1275
    %1310 = vst [vmem:[#allocation2 + $0x10] sm:$0xff] %v1280
    %1311 = vst [vmem:[#allocation2 + $0x18] sm:$0xff] %v1285
    %1312 = vst [vmem:[#allocation2 + $0x20] sm:$0xff] %v1290
    %1313 = vst [vmem:[#allocation2 + $0x28] sm:$0xff] %v1295
    %1314 = vst [vmem:[#allocation2 + $0x30] sm:$0xff] %v1300
    %1315 = vst [vmem:[#allocation2 + $0x38] sm:$0xff] %v1305
    %v1316 = vld [vmem:[#allocation11] sm:$0xff]
    %v1317 = vld [vmem:[#allocation11 + $0x8] sm:$0xff]
    %v1318 = vld [vmem:[#allocation11 + $0x10] sm:$0xff]
    %v1319 = vld [vmem:[#allocation11 + $0x18] sm:$0xff]
    %v1320 = vld [vmem:[#allocation2] sm:$0xff]
    %1321 = vmatprep.subr.mxu0 0.0
    %1322 = vmatpush1.msra.mxu0 0.0
    %1323 = vmatprep.subr.mxu0 0.0
    %1324 = vmatpush1.msra.mxu0 0.0
    %1325 = vmatprep.subr.mxu0 0.0
    %1326 = vmatpush1.msra.mxu0 0.0
    %1327 = vmatprep.subr.mxu0 0.0
    %1328 = vmatpush1.msra.mxu0 0.0
    %1329 = vmatprep.subr.mxu0 0.0
    %1330 = vmatpush1.msra.mxu0 0.0
    %1331 = vmatprep.subr.mxu0 0.0
    %1332 = vmatpush1.msra.mxu0 0.0
    %1333 = vmatprep.subr.mxu0 0.0
    %1334 = vmatpush1.msra.mxu0 0.0
    %1335 = vmatprep.subr.mxu0 0.0
    %1336 = vmatpush1.msra.mxu0 0.0
    %1337 = vmatprep.subr.mxu0 0.0
    %1338 = vmatpush1.msra.mxu0 0.0
    %1339 = vmatprep.subr.mxu0 0.0
    %1340 = vmatpush1.msra.mxu0 0.0
    %1341 = vmatprep.subr.mxu0 0.0
    %1342 = vmatpush1.msra.mxu0 0.0
    %1343 = vmatprep.subr.mxu0 0.0
    %1344 = vmatpush1.msra.mxu0 0.0
    %1345 = vmatprep.subr.mxu0 0.0
    %1346 = vmatpush1.msra.mxu0 %v1319
    %1347 = vmatprep.subr.mxu0 0.0
    %1348 = vmatpush1.msra.mxu0 %v1318
    %1349 = vmatprep.subr.mxu0 0.0
    %1350 = vmatpush1.msra.mxu0 %v1317
    %1351 = vmatprep.subr.mxu0 0.0
    %1352 = vmatpush1.msra.mxu0 %v1316
    %1353 = vmatprep.subr.mxu0 0.0
    %1354 = vmatpush2.msra.mxu0 0.0
    %1355 = vmatprep.subr.mxu0 0.0
    %1356 = vmatpush2.msra.mxu0 0.0
    %1357 = vmatprep.subr.mxu0 0.0
    %1358 = vmatpush2.msra.mxu0 0.0
    %1359 = vmatprep.subr.mxu0 0.0
    %1360 = vmatpush2.msra.mxu0 0.0
    %1361 = vmatprep.subr.mxu0 0.0
    %1362 = vmatpush2.msra.mxu0 0.0
    %1363 = vmatprep.subr.mxu0 0.0
    %1364 = vmatpush2.msra.mxu0 0.0
    %1365 = vmatprep.subr.mxu0 0.0
    %1366 = vmatpush2.msra.mxu0 0.0
    %1367 = vmatprep.subr.mxu0 0.0
    %1368 = vmatpush2.msra.mxu0 0.0
    %1369 = vmatprep.subr.mxu0 0.0
    %1370 = vmatpush2.msra.mxu0 0.0
    %1371 = vmatprep.subr.mxu0 0.0
    %1372 = vmatpush2.msra.mxu0 0.0
    %1373 = vmatprep.subr.mxu0 0.0
    %1374 = vmatpush2.msra.mxu0 0.0
    %1375 = vmatprep.subr.mxu0 0.0
    %1376 = vmatpush2.msra.mxu0 0.0
    %1377 = vmatprep.subr.mxu0 0.0
    %1378 = vmatpush2.msra.mxu0 0.0
    %1379 = vmatprep.subr.mxu0 0.0
    %1380 = vmatpush2.msra.mxu0 0.0
    %1381 = vmatprep.subr.mxu0 0.0
    %1382 = vmatpush2.msra.mxu0 0.0
    %1383 = vmatprep.subr.mxu0 0.0
    %1384 = vmatpush2.msra.mxu0 0.0
    %1385 = vmatprep.mubr.f32.mxu0 0.0
    %1386 = vmatmul.mubr.f32.gmra.mxu0 %v273
    %v1387 = vpop.f32.mrf.mxu0
    %v1388 = vadd.f32 0.0, %v1387
    %v1389 = vpop.f32.mrf.mxu0
    %1390 = vdwg.mxu0
    %v1391 = vadd.f32 %v1320, %v1388
    %v1392 = vxor.u32 %v1391, 2147483648
    %v1393 = vmul.f32 %v1392, 1.442695
    %v1394 = vpow.pop %v1393
    %v1395 = vadd.f32 %v1394, 1.0
    %v1396 = vrcp.pop %v1395
    %v1397 = vmul.f32 1.0, %v1396
    %v1398 = vtanh.pop %v1391
    %v1399 = vmul.f32 %v1397, 0.0
    %1401 = vrot.lane.b32.xlu0 %v1398, 64
    %v1402 = vpop.permute.xlu0 %1401
    %v1404 = vmul.f32 %v1397, %v1402
    %1406 = vrot.lane.b32.xlu0 %v1404, 32
    %v1407 = vpop.permute.xlu0 %1406
    %v1409 = vadd.f32 %v1399, %v1407
    %v1410 = vtanh.pop %v1409
    %1412 = vrot.lane.b32.xlu0 %v1410, 64
    %v1413 = vpop.permute.xlu0 %1412
    %v1415 = vmul.f32 %v1397, %v1413
    %v1416 = vsel %vm374, %v1415, 0.0
    %v1417 = vsel %vm374, %v1409, 0.0
    %v1418 = vld [vmem:[%s377] sm:$0xff]
    %1420 = vrot.lane.b32.xlu0 %v1416, 32
    %v1421 = vpop.permute.xlu0 %1420
    %v1422 = vsel %vm271, %v1421, 0
    %1424 = vmatprep.subr.mxu0 0.0
    %1425 = vmatpush1.msra.mxu0 0.0
    %1426 = vmatprep.subr.mxu0 0.0
    %1427 = vmatpush1.msra.mxu0 0.0
    %1428 = vmatprep.subr.mxu0 0.0
    %1429 = vmatpush1.msra.mxu0 0.0
    %1430 = vmatprep.subr.mxu0 0.0
    %1431 = vmatpush1.msra.mxu0 0.0
    %1432 = vmatprep.subr.mxu0 0.0
    %1433 = vmatpush1.msra.mxu0 0.0
    %1434 = vmatprep.subr.mxu0 0.0
    %1435 = vmatpush1.msra.mxu0 0.0
    %1436 = vmatprep.subr.mxu0 0.0
    %1437 = vmatpush1.msra.mxu0 0.0
    %1438 = vmatprep.subr.mxu0 0.0
    %1439 = vmatpush1.msra.mxu0 0.0
    %1440 = vmatprep.subr.mxu0 0.0
    %1441 = vmatpush1.msra.mxu0 0.0
    %1442 = vmatprep.subr.mxu0 0.0
    %1443 = vmatpush1.msra.mxu0 0.0
    %1444 = vmatprep.subr.mxu0 0.0
    %1445 = vmatpush1.msra.mxu0 0.0
    %1446 = vmatprep.subr.mxu0 0.0
    %1447 = vmatpush1.msra.mxu0 0.0
    %1448 = vmatprep.subr.mxu0 0.0
    %1449 = vmatpush1.msra.mxu0 %v1319
    %1450 = vmatprep.subr.mxu0 0.0
    %1451 = vmatpush1.msra.mxu0 %v1318
    %1452 = vmatprep.subr.mxu0 0.0
    %1453 = vmatpush1.msra.mxu0 %v1317
    %1454 = vmatprep.subr.mxu0 0.0
    %1455 = vmatpush1.msra.mxu0 %v1316
    %1456 = vmatprep.subr.mxu0 0.0
    %1457 = vmatpush2.msra.mxu0 0.0
    %1458 = vmatprep.subr.mxu0 0.0
    %1459 = vmatpush2.msra.mxu0 0.0
    %1460 = vmatprep.subr.mxu0 0.0
    %1461 = vmatpush2.msra.mxu0 0.0
    %1462 = vmatprep.subr.mxu0 0.0
    %1463 = vmatpush2.msra.mxu0 0.0
    %1464 = vmatprep.subr.mxu0 0.0
    %1465 = vmatpush2.msra.mxu0 0.0
    %1466 = vmatprep.subr.mxu0 0.0
    %1467 = vmatpush2.msra.mxu0 0.0
    %1468 = vmatprep.subr.mxu0 0.0
    %1469 = vmatpush2.msra.mxu0 0.0
    %1470 = vmatprep.subr.mxu0 0.0
    %1471 = vmatpush2.msra.mxu0 0.0
    %1472 = vmatprep.subr.mxu0 0.0
    %1473 = vmatpush2.msra.mxu0 0.0
    %1474 = vmatprep.subr.mxu0 0.0
    %1475 = vmatpush2.msra.mxu0 0.0
    %1476 = vmatprep.subr.mxu0 0.0
    %1477 = vmatpush2.msra.mxu0 0.0
    %1478 = vmatprep.subr.mxu0 0.0
    %1479 = vmatpush2.msra.mxu0 0.0
    %1480 = vmatprep.subr.mxu0 0.0
    %1481 = vmatpush2.msra.mxu0 0.0
    %1482 = vmatprep.subr.mxu0 0.0
    %1483 = vmatpush2.msra.mxu0 0.0
    %1484 = vmatprep.subr.mxu0 0.0
    %1485 = vmatpush2.msra.mxu0 0.0
    %1486 = vmatprep.subr.mxu0 0.0
    %1487 = vmatpush2.msra.mxu0 0.0
    %1488 = vmatprep.mubr.f32.mxu0 0.0
    %1489 = vmatmul.mubr.f32.gmra.mxu0 %v1422
    %v1490 = vpop.f32.mrf.mxu0
    %v1491 = vadd.f32 0.0, %v1490
    %v1492 = vpop.f32.mrf.mxu0
    %1493 = vdwg.mxu0
    %v1494 = vadd.f32 %v1418, %v1491
    %v1495 = vxor.u32 %v1494, 2147483648
    %v1496 = vmul.f32 %v1495, 1.442695
    %v1497 = vpow.pop %v1496
    %v1498 = vadd.f32 %v1497, 1.0
    %v1499 = vrcp.pop %v1498
    %v1500 = vmul.f32 1.0, %v1499
    %v1501 = vtanh.pop %v1494
    %v1502 = vmul.f32 %v1500, %v1417
    %1504 = vrot.lane.b32.xlu0 %v1501, 64
    %v1505 = vpop.permute.xlu0 %1504
    %v1507 = vmul.f32 %v1500, %v1505
    %1509 = vrot.lane.b32.xlu0 %v1507, 32
    %v1510 = vpop.permute.xlu0 %1509
    %v1512 = vadd.f32 %v1502, %v1510
    %v1513 = vtanh.pop %v1512
    %1515 = vrot.lane.b32.xlu0 %v1513, 64
    %v1516 = vpop.permute.xlu0 %1515
    %v1518 = vmul.f32 %v1500, %v1516
    %v1519 = vsel %vm483, %v1518, %v1416
    %v1520 = vsel %vm483, %v1512, %v1417
    %v1521 = vld [vmem:[%s486] sm:$0xff]
    %1523 = vrot.lane.b32.xlu0 %v1519, 32
    %v1524 = vpop.permute.xlu0 %1523
    %v1525 = vsel %vm271, %v1524, 0
    %1527 = vmatprep.subr.mxu0 0.0
    %1528 = vmatpush1.msra.mxu0 0.0
    %1529 = vmatprep.subr.mxu0 0.0
    %1530 = vmatpush1.msra.mxu0 0.0
    %1531 = vmatprep.subr.mxu0 0.0
    %1532 = vmatpush1.msra.mxu0 0.0
    %1533 = vmatprep.subr.mxu0 0.0
    %1534 = vmatpush1.msra.mxu0 0.0
    %1535 = vmatprep.subr.mxu0 0.0
    %1536 = vmatpush1.msra.mxu0 0.0
    %1537 = vmatprep.subr.mxu0 0.0
    %1538 = vmatpush1.msra.mxu0 0.0
    %1539 = vmatprep.subr.mxu0 0.0
    %1540 = vmatpush1.msra.mxu0 0.0
    %1541 = vmatprep.subr.mxu0 0.0
    %1542 = vmatpush1.msra.mxu0 0.0
    %1543 = vmatprep.subr.mxu0 0.0
    %1544 = vmatpush1.msra.mxu0 0.0
    %1545 = vmatprep.subr.mxu0 0.0
    %1546 = vmatpush1.msra.mxu0 0.0
    %1547 = vmatprep.subr.mxu0 0.0
    %1548 = vmatpush1.msra.mxu0 0.0
    %1549 = vmatprep.subr.mxu0 0.0
    %1550 = vmatpush1.msra.mxu0 0.0
    %1551 = vmatprep.subr.mxu0 0.0
    %1552 = vmatpush1.msra.mxu0 %v1319
    %1553 = vmatprep.subr.mxu0 0.0
    %1554 = vmatpush1.msra.mxu0 %v1318
    %1555 = vmatprep.subr.mxu0 0.0
    %1556 = vmatpush1.msra.mxu0 %v1317
    %1557 = vmatprep.subr.mxu0 0.0
    %1558 = vmatpush1.msra.mxu0 %v1316
    %1559 = vmatprep.subr.mxu0 0.0
    %1560 = vmatpush2.msra.mxu0 0.0
    %1561 = vmatprep.subr.mxu0 0.0
    %1562 = vmatpush2.msra.mxu0 0.0
    %1563 = vmatprep.subr.mxu0 0.0
    %1564 = vmatpush2.msra.mxu0 0.0
    %1565 = vmatprep.subr.mxu0 0.0
    %1566 = vmatpush2.msra.mxu0 0.0
    %1567 = vmatprep.subr.mxu0 0.0
    %1568 = vmatpush2.msra.mxu0 0.0
    %1569 = vmatprep.subr.mxu0 0.0
    %1570 = vmatpush2.msra.mxu0 0.0
    %1571 = vmatprep.subr.mxu0 0.0
    %1572 = vmatpush2.msra.mxu0 0.0
    %1573 = vmatprep.subr.mxu0 0.0
    %1574 = vmatpush2.msra.mxu0 0.0
    %1575 = vmatprep.subr.mxu0 0.0
    %1576 = vmatpush2.msra.mxu0 0.0
    %1577 = vmatprep.subr.mxu0 0.0
    %1578 = vmatpush2.msra.mxu0 0.0
    %1579 = vmatprep.subr.mxu0 0.0
    %1580 = vmatpush2.msra.mxu0 0.0
    %1581 = vmatprep.subr.mxu0 0.0
    %1582 = vmatpush2.msra.mxu0 0.0
    %1583 = vmatprep.subr.mxu0 0.0
    %1584 = vmatpush2.msra.mxu0 0.0
    %1585 = vmatprep.subr.mxu0 0.0
    %1586 = vmatpush2.msra.mxu0 0.0
    %1587 = vmatprep.subr.mxu0 0.0
    %1588 = vmatpush2.msra.mxu0 0.0
    %1589 = vmatprep.subr.mxu0 0.0
    %1590 = vmatpush2.msra.mxu0 0.0
    %1591 = vmatprep.mubr.f32.mxu0 0.0
    %1592 = vmatmul.mubr.f32.gmra.mxu0 %v1525
    %v1593 = vpop.f32.mrf.mxu0
    %v1594 = vadd.f32 0.0, %v1593
    %v1595 = vpop.f32.mrf.mxu0
    %1596 = vdwg.mxu0
    %v1597 = vadd.f32 %v1521, %v1594
    %v1598 = vxor.u32 %v1597, 2147483648
    %v1599 = vmul.f32 %v1598, 1.442695
    %v1600 = vpow.pop %v1599
    %v1601 = vadd.f32 %v1600, 1.0
    %v1602 = vrcp.pop %v1601
    %v1603 = vmul.f32 1.0, %v1602
    %v1604 = vtanh.pop %v1597
    %v1605 = vmul.f32 %v1603, %v1520
    %1607 = vrot.lane.b32.xlu0 %v1604, 64
    %v1608 = vpop.permute.xlu0 %1607
    %v1610 = vmul.f32 %v1603, %v1608
    %1612 = vrot.lane.b32.xlu0 %v1610, 32
    %v1613 = vpop.permute.xlu0 %1612
    %v1615 = vadd.f32 %v1605, %v1613
    %v1616 = vtanh.pop %v1615
    %1618 = vrot.lane.b32.xlu0 %v1616, 64
    %v1619 = vpop.permute.xlu0 %1618
    %v1621 = vmul.f32 %v1603, %v1619
    %v1622 = vsel %vm592, %v1621, %v1519
    %v1623 = vsel %vm592, %v1615, %v1520
    %v1624 = vld [vmem:[%s595] sm:$0xff]
    %1626 = vrot.lane.b32.xlu0 %v1622, 32
    %v1627 = vpop.permute.xlu0 %1626
    %v1628 = vsel %vm271, %v1627, 0
    %1630 = vmatprep.subr.mxu0 0.0
    %1631 = vmatpush1.msra.mxu0 0.0
    %1632 = vmatprep.subr.mxu0 0.0
    %1633 = vmatpush1.msra.mxu0 0.0
    %1634 = vmatprep.subr.mxu0 0.0
    %1635 = vmatpush1.msra.mxu0 0.0
    %1636 = vmatprep.subr.mxu0 0.0
    %1637 = vmatpush1.msra.mxu0 0.0
    %1638 = vmatprep.subr.mxu0 0.0
    %1639 = vmatpush1.msra.mxu0 0.0
    %1640 = vmatprep.subr.mxu0 0.0
    %1641 = vmatpush1.msra.mxu0 0.0
    %1642 = vmatprep.subr.mxu0 0.0
    %1643 = vmatpush1.msra.mxu0 0.0
    %1644 = vmatprep.subr.mxu0 0.0
    %1645 = vmatpush1.msra.mxu0 0.0
    %1646 = vmatprep.subr.mxu0 0.0
    %1647 = vmatpush1.msra.mxu0 0.0
    %1648 = vmatprep.subr.mxu0 0.0
    %1649 = vmatpush1.msra.mxu0 0.0
    %1650 = vmatprep.subr.mxu0 0.0
    %1651 = vmatpush1.msra.mxu0 0.0
    %1652 = vmatprep.subr.mxu0 0.0
    %1653 = vmatpush1.msra.mxu0 0.0
    %1654 = vmatprep.subr.mxu0 0.0
    %1655 = vmatpush1.msra.mxu0 %v1319
    %1656 = vmatprep.subr.mxu0 0.0
    %1657 = vmatpush1.msra.mxu0 %v1318
    %1658 = vmatprep.subr.mxu0 0.0
    %1659 = vmatpush1.msra.mxu0 %v1317
    %1660 = vmatprep.subr.mxu0 0.0
    %1661 = vmatpush1.msra.mxu0 %v1316
    %1662 = vmatprep.subr.mxu0 0.0
    %1663 = vmatpush2.msra.mxu0 0.0
    %1664 = vmatprep.subr.mxu0 0.0
    %1665 = vmatpush2.msra.mxu0 0.0
    %1666 = vmatprep.subr.mxu0 0.0
    %1667 = vmatpush2.msra.mxu0 0.0
    %1668 = vmatprep.subr.mxu0 0.0
    %1669 = vmatpush2.msra.mxu0 0.0
    %1670 = vmatprep.subr.mxu0 0.0
    %1671 = vmatpush2.msra.mxu0 0.0
    %1672 = vmatprep.subr.mxu0 0.0
    %1673 = vmatpush2.msra.mxu0 0.0
    %1674 = vmatprep.subr.mxu0 0.0
    %1675 = vmatpush2.msra.mxu0 0.0
    %1676 = vmatprep.subr.mxu0 0.0
    %1677 = vmatpush2.msra.mxu0 0.0
    %1678 = vmatprep.subr.mxu0 0.0
    %1679 = vmatpush2.msra.mxu0 0.0
    %1680 = vmatprep.subr.mxu0 0.0
    %1681 = vmatpush2.msra.mxu0 0.0
    %1682 = vmatprep.subr.mxu0 0.0
    %1683 = vmatpush2.msra.mxu0 0.0
    %1684 = vmatprep.subr.mxu0 0.0
    %1685 = vmatpush2.msra.mxu0 0.0
    %1686 = vmatprep.subr.mxu0 0.0
    %1687 = vmatpush2.msra.mxu0 0.0
    %1688 = vmatprep.subr.mxu0 0.0
    %1689 = vmatpush2.msra.mxu0 0.0
    %1690 = vmatprep.subr.mxu0 0.0
    %1691 = vmatpush2.msra.mxu0 0.0
    %1692 = vmatprep.subr.mxu0 0.0
    %1693 = vmatpush2.msra.mxu0 0.0
    %1694 = vmatprep.mubr.f32.mxu0 0.0
    %1695 = vmatmul.mubr.f32.gmra.mxu0 %v1628
    %v1696 = vpop.f32.mrf.mxu0
    %v1697 = vadd.f32 0.0, %v1696
    %v1698 = vpop.f32.mrf.mxu0
    %1699 = vdwg.mxu0
    %v1700 = vadd.f32 %v1624, %v1697
    %v1701 = vxor.u32 %v1700, 2147483648
    %v1702 = vmul.f32 %v1701, 1.442695
    %v1703 = vpow.pop %v1702
    %v1704 = vadd.f32 %v1703, 1.0
    %v1705 = vrcp.pop %v1704
    %v1706 = vmul.f32 1.0, %v1705
    %v1707 = vtanh.pop %v1700
    %v1708 = vmul.f32 %v1706, %v1623
    %1710 = vrot.lane.b32.xlu0 %v1707, 64
    %v1711 = vpop.permute.xlu0 %1710
    %v1713 = vmul.f32 %v1706, %v1711
    %1715 = vrot.lane.b32.xlu0 %v1713, 32
    %v1716 = vpop.permute.xlu0 %1715
    %v1718 = vadd.f32 %v1708, %v1716
    %v1719 = vtanh.pop %v1718
    %1721 = vrot.lane.b32.xlu0 %v1719, 64
    %v1722 = vpop.permute.xlu0 %1721
    %v1724 = vmul.f32 %v1706, %v1722
    %v1725 = vsel %vm701, %v1724, %v1622
    %v1726 = vsel %vm701, %v1718, %v1623
    %v1727 = vld [vmem:[%s704] sm:$0xff]
    %1729 = vrot.lane.b32.xlu0 %v1725, 32
    %v1730 = vpop.permute.xlu0 %1729
    %v1731 = vsel %vm271, %v1730, 0
    %1733 = vmatprep.subr.mxu0 0.0
    %1734 = vmatpush1.msra.mxu0 0.0
    %1735 = vmatprep.subr.mxu0 0.0
    %1736 = vmatpush1.msra.mxu0 0.0
    %1737 = vmatprep.subr.mxu0 0.0
    %1738 = vmatpush1.msra.mxu0 0.0
    %1739 = vmatprep.subr.mxu0 0.0
    %1740 = vmatpush1.msra.mxu0 0.0
    %1741 = vmatprep.subr.mxu0 0.0
    %1742 = vmatpush1.msra.mxu0 0.0
    %1743 = vmatprep.subr.mxu0 0.0
    %1744 = vmatpush1.msra.mxu0 0.0
    %1745 = vmatprep.subr.mxu0 0.0
    %1746 = vmatpush1.msra.mxu0 0.0
    %1747 = vmatprep.subr.mxu0 0.0
    %1748 = vmatpush1.msra.mxu0 0.0
    %1749 = vmatprep.subr.mxu0 0.0
    %1750 = vmatpush1.msra.mxu0 0.0
    %1751 = vmatprep.subr.mxu0 0.0
    %1752 = vmatpush1.msra.mxu0 0.0
    %1753 = vmatprep.subr.mxu0 0.0
    %1754 = vmatpush1.msra.mxu0 0.0
    %1755 = vmatprep.subr.mxu0 0.0
    %1756 = vmatpush1.msra.mxu0 0.0
    %1757 = vmatprep.subr.mxu0 0.0
    %1758 = vmatpush1.msra.mxu0 %v1319
    %1759 = vmatprep.subr.mxu0 0.0
    %1760 = vmatpush1.msra.mxu0 %v1318
    %1761 = vmatprep.subr.mxu0 0.0
    %1762 = vmatpush1.msra.mxu0 %v1317
    %1763 = vmatprep.subr.mxu0 0.0
    %1764 = vmatpush1.msra.mxu0 %v1316
    %1765 = vmatprep.subr.mxu0 0.0
    %1766 = vmatpush2.msra.mxu0 0.0
    %1767 = vmatprep.subr.mxu0 0.0
    %1768 = vmatpush2.msra.mxu0 0.0
    %1769 = vmatprep.subr.mxu0 0.0
    %1770 = vmatpush2.msra.mxu0 0.0
    %1771 = vmatprep.subr.mxu0 0.0
    %1772 = vmatpush2.msra.mxu0 0.0
    %1773 = vmatprep.subr.mxu0 0.0
    %1774 = vmatpush2.msra.mxu0 0.0
    %1775 = vmatprep.subr.mxu0 0.0
    %1776 = vmatpush2.msra.mxu0 0.0
    %1777 = vmatprep.subr.mxu0 0.0
    %1778 = vmatpush2.msra.mxu0 0.0
    %1779 = vmatprep.subr.mxu0 0.0
    %1780 = vmatpush2.msra.mxu0 0.0
    %1781 = vmatprep.subr.mxu0 0.0
    %1782 = vmatpush2.msra.mxu0 0.0
    %1783 = vmatprep.subr.mxu0 0.0
    %1784 = vmatpush2.msra.mxu0 0.0
    %1785 = vmatprep.subr.mxu0 0.0
    %1786 = vmatpush2.msra.mxu0 0.0
    %1787 = vmatprep.subr.mxu0 0.0
    %1788 = vmatpush2.msra.mxu0 0.0
    %1789 = vmatprep.subr.mxu0 0.0
    %1790 = vmatpush2.msra.mxu0 0.0
    %1791 = vmatprep.subr.mxu0 0.0
    %1792 = vmatpush2.msra.mxu0 0.0
    %1793 = vmatprep.subr.mxu0 0.0
    %1794 = vmatpush2.msra.mxu0 0.0
    %1795 = vmatprep.subr.mxu0 0.0
    %1796 = vmatpush2.msra.mxu0 0.0
    %1797 = vmatprep.mubr.f32.mxu0 0.0
    %1798 = vmatmul.mubr.f32.gmra.mxu0 %v1731
    %v1799 = vpop.f32.mrf.mxu0
    %v1800 = vadd.f32 0.0, %v1799
    %v1801 = vpop.f32.mrf.mxu0
    %1802 = vdwg.mxu0
    %v1803 = vadd.f32 %v1727, %v1800
    %v1804 = vxor.u32 %v1803, 2147483648
    %v1805 = vmul.f32 %v1804, 1.442695
    %v1806 = vpow.pop %v1805
    %v1807 = vadd.f32 %v1806, 1.0
    %v1808 = vrcp.pop %v1807
    %v1809 = vmul.f32 1.0, %v1808
    %v1810 = vtanh.pop %v1803
    %v1811 = vmul.f32 %v1809, %v1726
    %1813 = vrot.lane.b32.xlu0 %v1810, 64
    %v1814 = vpop.permute.xlu0 %1813
    %v1816 = vmul.f32 %v1809, %v1814
    %1818 = vrot.lane.b32.xlu0 %v1816, 32
    %v1819 = vpop.permute.xlu0 %1818
    %v1821 = vadd.f32 %v1811, %v1819
    %v1822 = vtanh.pop %v1821
    %1824 = vrot.lane.b32.xlu0 %v1822, 64
    %v1825 = vpop.permute.xlu0 %1824
    %v1827 = vmul.f32 %v1809, %v1825
    %v1828 = vsel %vm810, %v1827, %v1725
    %v1829 = vsel %vm810, %v1821, %v1726
    %v1830 = vld [vmem:[%s813] sm:$0xff]
    %1832 = vrot.lane.b32.xlu0 %v1828, 32
    %v1833 = vpop.permute.xlu0 %1832
    %v1834 = vsel %vm271, %v1833, 0
    %1836 = vmatprep.subr.mxu0 0.0
    %1837 = vmatpush1.msra.mxu0 0.0
    %1838 = vmatprep.subr.mxu0 0.0
    %1839 = vmatpush1.msra.mxu0 0.0
    %1840 = vmatprep.subr.mxu0 0.0
    %1841 = vmatpush1.msra.mxu0 0.0
    %1842 = vmatprep.subr.mxu0 0.0
    %1843 = vmatpush1.msra.mxu0 0.0
    %1844 = vmatprep.subr.mxu0 0.0
    %1845 = vmatpush1.msra.mxu0 0.0
    %1846 = vmatprep.subr.mxu0 0.0
    %1847 = vmatpush1.msra.mxu0 0.0
    %1848 = vmatprep.subr.mxu0 0.0
    %1849 = vmatpush1.msra.mxu0 0.0
    %1850 = vmatprep.subr.mxu0 0.0
    %1851 = vmatpush1.msra.mxu0 0.0
    %1852 = vmatprep.subr.mxu0 0.0
    %1853 = vmatpush1.msra.mxu0 0.0
    %1854 = vmatprep.subr.mxu0 0.0
    %1855 = vmatpush1.msra.mxu0 0.0
    %1856 = vmatprep.subr.mxu0 0.0
    %1857 = vmatpush1.msra.mxu0 0.0
    %1858 = vmatprep.subr.mxu0 0.0
    %1859 = vmatpush1.msra.mxu0 0.0
    %1860 = vmatprep.subr.mxu0 0.0
    %1861 = vmatpush1.msra.mxu0 %v1319
    %1862 = vmatprep.subr.mxu0 0.0
    %1863 = vmatpush1.msra.mxu0 %v1318
    %1864 = vmatprep.subr.mxu0 0.0
    %1865 = vmatpush1.msra.mxu0 %v1317
    %1866 = vmatprep.subr.mxu0 0.0
    %1867 = vmatpush1.msra.mxu0 %v1316
    %1868 = vmatprep.subr.mxu0 0.0
    %1869 = vmatpush2.msra.mxu0 0.0
    %1870 = vmatprep.subr.mxu0 0.0
    %1871 = vmatpush2.msra.mxu0 0.0
    %1872 = vmatprep.subr.mxu0 0.0
    %1873 = vmatpush2.msra.mxu0 0.0
    %1874 = vmatprep.subr.mxu0 0.0
    %1875 = vmatpush2.msra.mxu0 0.0
    %1876 = vmatprep.subr.mxu0 0.0
    %1877 = vmatpush2.msra.mxu0 0.0
    %1878 = vmatprep.subr.mxu0 0.0
    %1879 = vmatpush2.msra.mxu0 0.0
    %1880 = vmatprep.subr.mxu0 0.0
    %1881 = vmatpush2.msra.mxu0 0.0
    %1882 = vmatprep.subr.mxu0 0.0
    %1883 = vmatpush2.msra.mxu0 0.0
    %1884 = vmatprep.subr.mxu0 0.0
    %1885 = vmatpush2.msra.mxu0 0.0
    %1886 = vmatprep.subr.mxu0 0.0
    %1887 = vmatpush2.msra.mxu0 0.0
    %1888 = vmatprep.subr.mxu0 0.0
    %1889 = vmatpush2.msra.mxu0 0.0
    %1890 = vmatprep.subr.mxu0 0.0
    %1891 = vmatpush2.msra.mxu0 0.0
    %1892 = vmatprep.subr.mxu0 0.0
    %1893 = vmatpush2.msra.mxu0 0.0
    %1894 = vmatprep.subr.mxu0 0.0
    %1895 = vmatpush2.msra.mxu0 0.0
    %1896 = vmatprep.subr.mxu0 0.0
    %1897 = vmatpush2.msra.mxu0 0.0
    %1898 = vmatprep.subr.mxu0 0.0
    %1899 = vmatpush2.msra.mxu0 0.0
    %1900 = vmatprep.mubr.f32.mxu0 0.0
    %1901 = vmatmul.mubr.f32.gmra.mxu0 %v1834
    %v1902 = vpop.f32.mrf.mxu0
    %v1903 = vadd.f32 0.0, %v1902
    %v1904 = vpop.f32.mrf.mxu0
    %1905 = vdwg.mxu0
    %v1906 = vadd.f32 %v1830, %v1903
    %v1907 = vxor.u32 %v1906, 2147483648
    %v1908 = vmul.f32 %v1907, 1.442695
    %v1909 = vpow.pop %v1908
    %v1910 = vadd.f32 %v1909, 1.0
    %v1911 = vrcp.pop %v1910
    %v1912 = vmul.f32 1.0, %v1911
    %v1913 = vtanh.pop %v1906
    %v1914 = vmul.f32 %v1912, %v1829
    %1916 = vrot.lane.b32.xlu0 %v1913, 64
    %v1917 = vpop.permute.xlu0 %1916
    %v1919 = vmul.f32 %v1912, %v1917
    %1921 = vrot.lane.b32.xlu0 %v1919, 32
    %v1922 = vpop.permute.xlu0 %1921
    %v1924 = vadd.f32 %v1914, %v1922
    %v1925 = vtanh.pop %v1924
    %1927 = vrot.lane.b32.xlu0 %v1925, 64
    %v1928 = vpop.permute.xlu0 %1927
    %v1930 = vmul.f32 %v1912, %v1928
    %v1931 = vsel %vm919, %v1930, %v1828
    %v1932 = vsel %vm919, %v1924, %v1829
    %v1933 = vld [vmem:[%s922] sm:$0xff]
    %1935 = vrot.lane.b32.xlu0 %v1931, 32
    %v1936 = vpop.permute.xlu0 %1935
    %v1937 = vsel %vm271, %v1936, 0
    %1939 = vmatprep.subr.mxu0 0.0
    %1940 = vmatpush1.msra.mxu0 0.0
    %1941 = vmatprep.subr.mxu0 0.0
    %1942 = vmatpush1.msra.mxu0 0.0
    %1943 = vmatprep.subr.mxu0 0.0
    %1944 = vmatpush1.msra.mxu0 0.0
    %1945 = vmatprep.subr.mxu0 0.0
    %1946 = vmatpush1.msra.mxu0 0.0
    %1947 = vmatprep.subr.mxu0 0.0
    %1948 = vmatpush1.msra.mxu0 0.0
    %1949 = vmatprep.subr.mxu0 0.0
    %1950 = vmatpush1.msra.mxu0 0.0
    %1951 = vmatprep.subr.mxu0 0.0
    %1952 = vmatpush1.msra.mxu0 0.0
    %1953 = vmatprep.subr.mxu0 0.0
    %1954 = vmatpush1.msra.mxu0 0.0
    %1955 = vmatprep.subr.mxu0 0.0
    %1956 = vmatpush1.msra.mxu0 0.0
    %1957 = vmatprep.subr.mxu0 0.0
    %1958 = vmatpush1.msra.mxu0 0.0
    %1959 = vmatprep.subr.mxu0 0.0
    %1960 = vmatpush1.msra.mxu0 0.0
    %1961 = vmatprep.subr.mxu0 0.0
    %1962 = vmatpush1.msra.mxu0 0.0
    %1963 = vmatprep.subr.mxu0 0.0
    %1964 = vmatpush1.msra.mxu0 %v1319
    %1965 = vmatprep.subr.mxu0 0.0
    %1966 = vmatpush1.msra.mxu0 %v1318
    %1967 = vmatprep.subr.mxu0 0.0
    %1968 = vmatpush1.msra.mxu0 %v1317
    %1969 = vmatprep.subr.mxu0 0.0
    %1970 = vmatpush1.msra.mxu0 %v1316
    %1971 = vmatprep.subr.mxu0 0.0
    %1972 = vmatpush2.msra.mxu0 0.0
    %1973 = vmatprep.subr.mxu0 0.0
    %1974 = vmatpush2.msra.mxu0 0.0
    %1975 = vmatprep.subr.mxu0 0.0
    %1976 = vmatpush2.msra.mxu0 0.0
    %1977 = vmatprep.subr.mxu0 0.0
    %1978 = vmatpush2.msra.mxu0 0.0
    %1979 = vmatprep.subr.mxu0 0.0
    %1980 = vmatpush2.msra.mxu0 0.0
    %1981 = vmatprep.subr.mxu0 0.0
    %1982 = vmatpush2.msra.mxu0 0.0
    %1983 = vmatprep.subr.mxu0 0.0
    %1984 = vmatpush2.msra.mxu0 0.0
    %1985 = vmatprep.subr.mxu0 0.0
    %1986 = vmatpush2.msra.mxu0 0.0
    %1987 = vmatprep.subr.mxu0 0.0
    %1988 = vmatpush2.msra.mxu0 0.0
    %1989 = vmatprep.subr.mxu0 0.0
    %1990 = vmatpush2.msra.mxu0 0.0
    %1991 = vmatprep.subr.mxu0 0.0
    %1992 = vmatpush2.msra.mxu0 0.0
    %1993 = vmatprep.subr.mxu0 0.0
    %1994 = vmatpush2.msra.mxu0 0.0
    %1995 = vmatprep.subr.mxu0 0.0
    %1996 = vmatpush2.msra.mxu0 0.0
    %1997 = vmatprep.subr.mxu0 0.0
    %1998 = vmatpush2.msra.mxu0 0.0
    %1999 = vmatprep.subr.mxu0 0.0
    %2000 = vmatpush2.msra.mxu0 0.0
    %2001 = vmatprep.subr.mxu0 0.0
    %2002 = vmatpush2.msra.mxu0 0.0
    %2003 = vmatprep.mubr.f32.mxu0 0.0
    %2004 = vmatmul.mubr.f32.gmra.mxu0 %v1937
    %v2005 = vpop.f32.mrf.mxu0
    %v2006 = vadd.f32 0.0, %v2005
    %v2007 = vpop.f32.mrf.mxu0
    %2008 = vdwg.mxu0
    %v2009 = vadd.f32 %v1933, %v2006
    %v2010 = vxor.u32 %v2009, 2147483648
    %v2011 = vmul.f32 %v2010, 1.442695
    %v2012 = vpow.pop %v2011
    %v2013 = vadd.f32 %v2012, 1.0
    %v2014 = vrcp.pop %v2013
    %v2015 = vmul.f32 1.0, %v2014
    %v2016 = vtanh.pop %v2009
    %v2017 = vmul.f32 %v2015, %v1932
    %2019 = vrot.lane.b32.xlu0 %v2016, 64
    %v2020 = vpop.permute.xlu0 %2019
    %v2022 = vmul.f32 %v2015, %v2020
    %2024 = vrot.lane.b32.xlu0 %v2022, 32
    %v2025 = vpop.permute.xlu0 %2024
    %v2027 = vadd.f32 %v2017, %v2025
    %v2028 = vtanh.pop %v2027
    %2030 = vrot.lane.b32.xlu0 %v2028, 64
    %v2031 = vpop.permute.xlu0 %2030
    %v2033 = vmul.f32 %v2015, %v2031
    %v2034 = vsel %vm1028, %v2033, %v1931
    %v2035 = vsel %vm1028, %v2027, %v1932
    %v2036 = vld [vmem:[%s1031] sm:$0xff]
    %2038 = vrot.lane.b32.xlu0 %v2034, 32
    %v2039 = vpop.permute.xlu0 %2038
    %v2040 = vsel %vm271, %v2039, 0
    %2042 = vmatprep.subr.mxu0 0.0
    %2043 = vmatpush1.msra.mxu0 0.0
    %2044 = vmatprep.subr.mxu0 0.0
    %2045 = vmatpush1.msra.mxu0 0.0
    %2046 = vmatprep.subr.mxu0 0.0
    %2047 = vmatpush1.msra.mxu0 0.0
    %2048 = vmatprep.subr.mxu0 0.0
    %2049 = vmatpush1.msra.mxu0 0.0
    %2050 = vmatprep.subr.mxu0 0.0
    %2051 = vmatpush1.msra.mxu0 0.0
    %2052 = vmatprep.subr.mxu0 0.0
    %2053 = vmatpush1.msra.mxu0 0.0
    %2054 = vmatprep.subr.mxu0 0.0
    %2055 = vmatpush1.msra.mxu0 0.0
    %2056 = vmatprep.subr.mxu0 0.0
    %2057 = vmatpush1.msra.mxu0 0.0
    %2058 = vmatprep.subr.mxu0 0.0
    %2059 = vmatpush1.msra.mxu0 0.0
    %2060 = vmatprep.subr.mxu0 0.0
    %2061 = vmatpush1.msra.mxu0 0.0
    %2062 = vmatprep.subr.mxu0 0.0
    %2063 = vmatpush1.msra.mxu0 0.0
    %2064 = vmatprep.subr.mxu0 0.0
    %2065 = vmatpush1.msra.mxu0 0.0
    %2066 = vmatprep.subr.mxu0 0.0
    %2067 = vmatpush1.msra.mxu0 %v1319
    %2068 = vmatprep.subr.mxu0 0.0
    %2069 = vmatpush1.msra.mxu0 %v1318
    %2070 = vmatprep.subr.mxu0 0.0
    %2071 = vmatpush1.msra.mxu0 %v1317
    %2072 = vmatprep.subr.mxu0 0.0
    %2073 = vmatpush1.msra.mxu0 %v1316
    %2074 = vmatprep.subr.mxu0 0.0
    %2075 = vmatpush2.msra.mxu0 0.0
    %2076 = vmatprep.subr.mxu0 0.0
    %2077 = vmatpush2.msra.mxu0 0.0
    %2078 = vmatprep.subr.mxu0 0.0
    %2079 = vmatpush2.msra.mxu0 0.0
    %2080 = vmatprep.subr.mxu0 0.0
    %2081 = vmatpush2.msra.mxu0 0.0
    %2082 = vmatprep.subr.mxu0 0.0
    %2083 = vmatpush2.msra.mxu0 0.0
    %2084 = vmatprep.subr.mxu0 0.0
    %2085 = vmatpush2.msra.mxu0 0.0
    %2086 = vmatprep.subr.mxu0 0.0
    %2087 = vmatpush2.msra.mxu0 0.0
    %2088 = vmatprep.subr.mxu0 0.0
    %2089 = vmatpush2.msra.mxu0 0.0
    %2090 = vmatprep.subr.mxu0 0.0
    %2091 = vmatpush2.msra.mxu0 0.0
    %2092 = vmatprep.subr.mxu0 0.0
    %2093 = vmatpush2.msra.mxu0 0.0
    %2094 = vmatprep.subr.mxu0 0.0
    %2095 = vmatpush2.msra.mxu0 0.0
    %2096 = vmatprep.subr.mxu0 0.0
    %2097 = vmatpush2.msra.mxu0 0.0
    %2098 = vmatprep.subr.mxu0 0.0
    %2099 = vmatpush2.msra.mxu0 0.0
    %2100 = vmatprep.subr.mxu0 0.0
    %2101 = vmatpush2.msra.mxu0 0.0
    %2102 = vmatprep.subr.mxu0 0.0
    %2103 = vmatpush2.msra.mxu0 0.0
    %2104 = vmatprep.subr.mxu0 0.0
    %2105 = vmatpush2.msra.mxu0 0.0
    %2106 = vmatprep.mubr.f32.mxu0 0.0
    %2107 = vmatmul.mubr.f32.gmra.mxu0 %v2040
    %v2108 = vpop.f32.mrf.mxu0
    %v2109 = vadd.f32 0.0, %v2108
    %v2110 = vpop.f32.mrf.mxu0
    %2111 = vdwg.mxu0
    %v2112 = vadd.f32 %v2036, %v2109
    %v2113 = vxor.u32 %v2112, 2147483648
    %v2114 = vmul.f32 %v2113, 1.442695
    %v2115 = vpow.pop %v2114
    %v2116 = vadd.f32 %v2115, 1.0
    %v2117 = vrcp.pop %v2116
    %v2118 = vmul.f32 1.0, %v2117
    %v2119 = vtanh.pop %v2112
    %v2120 = vmul.f32 %v2118, %v2035
    %2122 = vrot.lane.b32.xlu0 %v2119, 64
    %v2123 = vpop.permute.xlu0 %2122
    %v2125 = vmul.f32 %v2118, %v2123
    %2127 = vrot.lane.b32.xlu0 %v2125, 32
    %v2128 = vpop.permute.xlu0 %2127
    %v2130 = vadd.f32 %v2120, %v2128
    %v2131 = vtanh.pop %v2130
    %2133 = vrot.lane.b32.xlu0 %v2131, 64
    %v2134 = vpop.permute.xlu0 %2133
    %v2136 = vmul.f32 %v2118, %v2134
    %v2137 = vsel %vm1137, %v2136, %v2034
    %v2138 = vsel %vm1137, %v2130, %v2035
    %v2139 = vsel %vm483, %v1518, 0.0
    %v2140 = vsel %vm592, %v1621, 0.0
    %v2141 = vsel %vm701, %v1724, 0.0
    %v2142 = vsel %vm810, %v1827, 0.0
    %v2143 = vsel %vm919, %v1930, 0.0
    %v2144 = vsel %vm1028, %v2033, 0.0
    %v2145 = vsel %vm1137, %v2136, 0.0
    %2147 = vrot.lane.b32.xlu0 %v2137, 32
    %v2148 = vpop.permute.xlu0 %2147
    %s2150 = scalar_lea.vmem [#allocation13], 8
    %2151 = vst.msk [vmem:[%s2150] sm:$0xff] %vm271, %v2148
    %2153 = vrot.lane.b32.xlu0 %v2138, 96
    %v2154 = vpop.permute.xlu0 %2153
    %s2156 = scalar_lea.vmem [#allocation15], 8
    %2157 = vst.msk [vmem:[%s2156] sm:$0xff] %vm271, %v2154
    %2165 = vrot.lane.b32.xlu0 %v2139, 32
    %v2166 = vpop.permute.xlu0 %2165
    %2167 = vrot.lane.b32.xlu0 %v2140, 32
    %v2168 = vpop.permute.xlu0 %2167
    %2169 = vrot.lane.b32.xlu0 %v2141, 32
    %v2170 = vpop.permute.xlu0 %2169
    %2171 = vrot.lane.b32.xlu0 %v2142, 32
    %v2172 = vpop.permute.xlu0 %2171
    %2173 = vrot.lane.b32.xlu0 %v2143, 32
    %v2174 = vpop.permute.xlu0 %2173
    %2175 = vrot.lane.b32.xlu0 %v2144, 32
    %v2176 = vpop.permute.xlu0 %2175
    %2177 = vrot.lane.b32.xlu0 %v2145, 32
    %v2178 = vpop.permute.xlu0 %2177
    %2187 = vst.msk [vmem:[#allocation12] sm:$0xff] %vm271, %v1421
    %2188 = vst.msk [vmem:[#allocation12 + $0x8] sm:$0xff] %vm271, %v2166
    %2189 = vst.msk [vmem:[#allocation12 + $0x10] sm:$0xff] %vm271, %v2168
    %2190 = vst.msk [vmem:[#allocation12 + $0x18] sm:$0xff] %vm271, %v2170
    %2191 = vst.msk [vmem:[#allocation12 + $0x20] sm:$0xff] %vm271, %v2172
    %2192 = vst.msk [vmem:[#allocation12 + $0x28] sm:$0xff] %vm271, %v2174
    %2193 = vst.msk [vmem:[#allocation12 + $0x30] sm:$0xff] %vm271, %v2176
    %2194 = vst.msk [vmem:[#allocation12 + $0x38] sm:$0xff] %vm271, %v2178
    // Predicated region
    $region54: #{tpu_custom_call.1} parent=1 // pred_check
      _
    $region55: #{tpu_custom_call.1} parent=1 // pred_check_branch
      %2196 = sbr.rel (0) target = $region57
    $region56: #{tpu_custom_call.1} parent=1 // pred_region
      %s2198 = ssub.s32 1024, 1024
      %2199 = vsyncadd [#allocation5], %s2198
      %s2200 = sshll.u32 [#allocation12], 4
      %s2201 = int_to_ptr.vmem [resolvable:$true] %s2200
      %2206 = dma.vmem_to_hbm [thread:$0]  %s2201, 1024, %s8, [#allocation5], 128, 128, 8
    $region57: #{tpu_custom_call.1} parent=1 // pred_fallthru
      _
    // Predicated region
    $region58: #{tpu_custom_call.1} parent=1 // pred_check
      _
    $region59: #{tpu_custom_call.1} parent=1 // pred_check_branch
      %2208 = sbr.rel (0) target = $region61
    $region60: #{tpu_custom_call.1} parent=1 // pred_region
      %s2210 = ssub.s32 256, 256
      %2211 = vsyncadd [#allocation14], %s2210
      %s2212 = sshll.u32 [#allocation13], 4
      %s2213 = int_to_ptr.vmem [resolvable:$true] %s2212
      %2218 = dma.vmem_to_hbm [thread:$0]  %s2213, 256, %s9, [#allocation14], 128, 128, 8
    $region61: #{tpu_custom_call.1} parent=1 // pred_fallthru
      _
    // Predicated region
    $region62: #{tpu_custom_call.1} parent=1 // pred_check
      _
    $region63: #{tpu_custom_call.1} parent=1 // pred_check_branch
      %2220 = sbr.rel (0) target = $region65
    $region64: #{tpu_custom_call.1} parent=1 // pred_region
      %s2222 = ssub.s32 256, 256
      %2223 = vsyncadd [#allocation14], %s2222
      %s2224 = sshll.u32 [#allocation15], 4
      %s2225 = int_to_ptr.vmem [resolvable:$true] %s2224
      %2230 = dma.vmem_to_hbm [thread:$0]  %s2225, 256, %s10, [#allocation14], 128, 128, 8
    $region65: #{tpu_custom_call.1} parent=1 // pred_fallthru
      _
    // Predicated region
    $region66: #{tpu_custom_call.1} parent=1 // pred_check
      _
    $region67: #{tpu_custom_call.1} parent=1 // pred_check_branch
      %2232 = sbr.rel (0) target = $region69
    $region68: #{tpu_custom_call.1} parent=1 // pred_region
      %2233 = dma.done [#allocation5], 1024
    $region69: #{tpu_custom_call.1} parent=1 // pred_fallthru
      _
    // Predicated region
    $region70: #{tpu_custom_call.1} parent=1 // pred_check
      _
    $region71: #{tpu_custom_call.1} parent=1 // pred_check_branch
      %2235 = sbr.rel (0) target = $region73
    $region72: #{tpu_custom_call.1} parent=1 // pred_region
      %2236 = dma.done [#allocation14], 256
    $region73: #{tpu_custom_call.1} parent=1 // pred_fallthru
      _
    // Predicated region
    $region74: #{tpu_custom_call.1} parent=1 // pred_check
      _
    $region75: #{tpu_custom_call.1} parent=1 // pred_check_branch
      %2238 = sbr.rel (0) target = $region77
    $region76: #{tpu_custom_call.1} parent=1 // pred_region
      %2239 = dma.done [#allocation14], 256
    $region77: #{tpu_custom_call.1} parent=1 // pred_fallthru
      _
    %2240 = vsyncpa [#allocation4], 1
    %2241 = vsyncpa [#allocation7], 1
    %2242 = vsyncpa [#allocation10], 1
    %2243 = vsyncpa [#allocation5], 1
    %2244 = vsyncpa [#allocation14], 1

</llo_original>
